<compile_context>
chip_gen: v6e
topology: v6e:2x2x1
jax: 0.10.0
libtpu: 0.0.40
codegen_flags: <defaults>
</compile_context>

<pallas_src>
import math

import jax
import jax.numpy as jnp
from jax.experimental import pallas as pl
from jax.experimental.pallas import tpu as pltpu


def _layernorm(x, gamma, beta, eps=1e-5):
    mu = jnp.mean(x, axis=-1, keepdims=True)
    var = jnp.mean((x - mu) ** 2, axis=-1, keepdims=True)
    return (x - mu) * jax.lax.rsqrt(var + eps) * gamma + beta


def vae_encoder_kernel(
    x_ref,                                # (TB, S, D)  embedded tokens for this block
    wq_ref, wk_ref, wv_ref,               # (D, D) each
    bq_ref, bk_ref, bv_ref,               # (1, D) each
    wo_ref, bo_ref,                       # (D, D), (1, D)
    g1_ref, be1_ref,                      # layernorm1 gamma/beta (1, D)
    w1_ref, bf1_ref,                      # FFN linear1: (D, Dff), (1, Dff)
    w2_ref, bf2_ref,                      # FFN linear2: (Dff, D), (1, D)
    g2_ref, be2_ref,                      # layernorm2 gamma/beta (1, D)
    whead_ref, bhead_ref,                 # fused mu/logvar head: (D, 2L), (1, 2L)
    eps_ref,                              # (TB, L)   N(0,1) noise
    out_ref,                              # (TB, 3L)  [z | mu | logvar]
):
    TB, S, D = x_ref.shape
    L = eps_ref.shape[-1]

    # Flatten batch*seq so every dense layer runs with M = TB*S on the MXU.
    x = x_ref[...].reshape(TB * S, D)

    # --- single-head self-attention ---
    q = jnp.dot(x, wq_ref[...], preferred_element_type=jnp.float32) + bq_ref[...]
    k = jnp.dot(x, wk_ref[...], preferred_element_type=jnp.float32) + bk_ref[...]
    v = jnp.dot(x, wv_ref[...], preferred_element_type=jnp.float32) + bv_ref[...]

    q3 = q.reshape(TB, S, D)
    k3 = k.reshape(TB, S, D)
    v3 = v.reshape(TB, S, D)

    scores = jnp.einsum("bqd,bkd->bqk", q3, k3,
                        preferred_element_type=jnp.float32) * (1.0 / math.sqrt(D))
    scores = scores - jnp.max(scores, axis=-1, keepdims=True)
    p = jnp.exp(scores)
    attn = p * pl.reciprocal(jnp.sum(p, axis=-1, keepdims=True), approx=True)

    sa = jnp.einsum("bqk,bkd->bqd", attn, v3,
                    preferred_element_type=jnp.float32).reshape(TB * S, D)
    sa = jnp.dot(sa, wo_ref[...], preferred_element_type=jnp.float32) + bo_ref[...]

    # --- residual + layernorm 1 (post-norm, as in nn.TransformerEncoderLayer) ---
    x1 = _layernorm(x + sa, g1_ref[...], be1_ref[...])

    # --- feed-forward (ReLU) ---
    h = jnp.dot(x1, w1_ref[...], preferred_element_type=jnp.float32) + bf1_ref[...]
    h = jnp.maximum(h, 0.0)
    ff = jnp.dot(h, w2_ref[...], preferred_element_type=jnp.float32) + bf2_ref[...]

    # --- residual + layernorm 2 ---
    x2 = _layernorm(x1 + ff, g2_ref[...], be2_ref[...])

    # --- mean over the sequence dimension ---
    pooled = jnp.mean(x2.reshape(TB, S, D), axis=1)            # (TB, D)

    # --- fused fc_mu / fc_logvar (one (D, 2L) matmul, Linear + ReLU) ---
    head = jnp.maximum(
        jnp.dot(pooled, whead_ref[...], preferred_element_type=jnp.float32)
        + bhead_ref[...],
        0.0)                                                    # (TB, 2L)
    mu = head[:, :L]
    lv = head[:, L:]

    # --- reparameterization trick ---
    z = mu + eps_ref[...] * jnp.exp(0.5 * lv)

    out_ref[...] = jnp.concatenate([z, mu, lv], axis=-1)        # (TB, 3L)


def _full_spec(arr):
    nd = arr.ndim
    return pl.BlockSpec(arr.shape, lambda b, _nd=nd: (0,) * _nd)


def vae_encoder_forward(token_ids, params, eps_noise, rows_per_block=256):
    """token_ids: (B, S) int32, eps_noise: (B, L) f32  ->  (z, mu, logvar) each (B, L)."""
    B, S = token_ids.shape
    D = params["emb"].shape[1]
    L = params["wmu"].shape[1]

    # Block-of-batch tiling: target ~rows_per_block = TB*S rows per grid step so the
    # MXU M-dim is filled (128 on v5e, 256 on v6e/v7x); keep TB sublane-friendly when
    # tiling, and keep >=2 grid blocks when B is large so both v7x TCs get work.
    if B * S <= rows_per_block:
        TB = B
    else:
        TB = max(8, (rows_per_block // S) // 8 * 8)
    B_pad = -(-B // TB) * TB

    # Embedding lookup (memory gather) kept as plain-JAX glue.
    x_emb = jnp.take(params["emb"], token_ids, axis=0).astype(jnp.float32)  # (B, S, D)
    eps = eps_noise.astype(jnp.float32)                                     # (B, L)
    if B_pad != B:
        x_emb = jnp.pad(x_emb, ((0, B_pad - B), (0, 0), (0, 0)))
        eps = jnp.pad(eps, ((0, B_pad - B), (0, 0)))

    # Fuse the two latent heads into one matmul.
    whead = jnp.concatenate([params["wmu"], params["wlv"]], axis=1)   # (D, 2L)
    bhead = jnp.concatenate([params["bmu"], params["blv"]], axis=1)   # (1, 2L)

    weight_args = [
        params["wq"], params["wk"], params["wv"],
        params["bq"], params["bk"], params["bv"],
        params["wo"], params["bo"],
        params["g1"], params["be1"],
        params["w1"], params["bf1"],
        params["w2"], params["bf2"],
        params["g2"], params["be2"],
        whead, bhead,
    ]

    in_specs = (
        [pl.BlockSpec((TB, S, D), lambda b: (b, 0, 0))]
        + [_full_spec(w) for w in weight_args]
        + [pl.BlockSpec((TB, L), lambda b: (b, 0))]
    )
    out_specs = pl.BlockSpec((TB, 3 * L), lambda b: (b, 0))
    out_shape = jax.ShapeDtypeStruct((B_pad, 3 * L), jnp.float32)

    fused = pl.pallas_call(
        vae_encoder_kernel,
        grid=(B_pad // TB,),
        in_specs=in_specs,
        out_specs=out_specs,
        out_shape=out_shape,
        compiler_params=pltpu.CompilerParams(
            dimension_semantics=("parallel",)),
    )(x_emb, *weight_args, eps)

    fused = fused[:B]
    return fused[:, :L], fused[:, L:2 * L], fused[:, 2 * L:]


def make_params(key, word_count, d_model, latent_dim, dim_feedforward):
    ks = jax.random.split(key, 16)
    n = lambda k, shp, s=0.05: (s * jax.random.normal(k, shp)).astype(jnp.float32)
    return {
        "emb": n(ks[0], (word_count, d_model), 1.0),
        # attention in/out projections, stored as (in, out) for x @ W
        "wq": n(ks[1], (d_model, d_model)), "bq": n(ks[2], (1, d_model)),
        "wk": n(ks[3], (d_model, d_model)), "bk": n(ks[4], (1, d_model)),
        "wv": n(ks[5], (d_model, d_model)), "bv": n(ks[6], (1, d_model)),
        "wo": n(ks[7], (d_model, d_model)), "bo": n(ks[8], (1, d_model)),
        "g1": jnp.ones((1, d_model), jnp.float32), "be1": jnp.zeros((1, d_model), jnp.float32),
        "w1": n(ks[9], (d_model, dim_feedforward)), "bf1": n(ks[10], (1, dim_feedforward)),
        "w2": n(ks[11], (dim_feedforward, d_model)), "bf2": n(ks[12], (1, d_model)),
        "g2": jnp.ones((1, d_model), jnp.float32), "be2": jnp.zeros((1, d_model), jnp.float32),
        "wmu": n(ks[13], (d_model, latent_dim)), "bmu": jnp.zeros((1, latent_dim), jnp.float32),
        "wlv": n(ks[14], (d_model, latent_dim)), "blv": jnp.zeros((1, latent_dim), jnp.float32),
    }


def reference_forward(token_ids, params, eps_noise):
    """Pure-JAX reference of the same math, for a numerical sanity check."""
    x = jnp.take(params["emb"], token_ids, axis=0).astype(jnp.float32)
    D = x.shape[-1]
    q = x @ params["wq"] + params["bq"]
    k = x @ params["wk"] + params["bk"]
    v = x @ params["wv"] + params["bv"]
    scores = jnp.einsum("bqd,bkd->bqk", q, k) / math.sqrt(D)
    attn = jax.nn.softmax(scores, axis=-1)
    sa = jnp.einsum("bqk,bkd->bqd", attn, v) @ params["wo"] + params["bo"]
    x1 = _layernorm(x + sa, params["g1"], params["be1"])
    ff = jnp.maximum(x1 @ params["w1"] + params["bf1"], 0.0) @ params["w2"] + params["bf2"]
    x2 = _layernorm(x1 + ff, params["g2"], params["be2"])
    pooled = jnp.mean(x2, axis=1)
    mu = jnp.maximum(pooled @ params["wmu"] + params["bmu"], 0.0)
    lv = jnp.maximum(pooled @ params["wlv"] + params["blv"], 0.0)
    z = mu + eps_noise * jnp.exp(0.5 * lv)
    return z, mu, lv


if __name__ == "__main__":
    # Small shapes consistent with the module's forward:
    #   tokens (B=2, S=8) int, word_count=100, d_model=32, latent_dim=16,
    #   dim_feedforward=2048 (nn.TransformerEncoderLayer default), nhead=1.
    B, S = 2, 8
    word_count, d_model, latent_dim, dim_feedforward = 100, 32, 16, 2048

    root = jax.random.PRNGKey(0)
    k_param, k_tok, k_eps = jax.random.split(root, 3)

    params = make_params(k_param, word_count, d_model, latent_dim, dim_feedforward)
    token_ids = jax.random.randint(k_tok, (B, S), 0, word_count, dtype=jnp.int32)
    eps_noise = jax.random.normal(k_eps, (B, latent_dim), dtype=jnp.float32)

    z, mu, logvar = vae_encoder_forward(token_ids, params, eps_noise)
    jax.block_until_ready((z, mu, logvar))

    # numerical sanity check against pure-JAX reference (tolerance allows for the
    # approx EUP reciprocal used in the in-kernel softmax denominator)
    z_r, mu_r, lv_r = reference_forward(token_ids, params, eps_noise)
    assert jnp.allclose(z, z_r, rtol=1e-3, atol=1e-3)
    assert jnp.allclose(mu, mu_r, rtol=1e-3, atol=1e-3)
    assert jnp.allclose(logvar, lv_r, rtol=1e-3, atol=1e-3)
    assert z.shape == (B, latent_dim) and mu.shape == (B, latent_dim) and logvar.shape == (B, latent_dim)

    print("KERNEL_OK")
</pallas_src>

<mosaic_0001>
module attributes {stable_mosaic.version = 11 : i64} {
  func.func @vae_encoder_kernel(%arg0: i32, %arg1: memref<2x8x32xf32, #tpu.memory_space<vmem>>, %arg2: memref<32x32xf32, #tpu.memory_space<vmem>>, %arg3: memref<32x32xf32, #tpu.memory_space<vmem>>, %arg4: memref<32x32xf32, #tpu.memory_space<vmem>>, %arg5: memref<1x32xf32, #tpu.memory_space<vmem>>, %arg6: memref<1x32xf32, #tpu.memory_space<vmem>>, %arg7: memref<1x32xf32, #tpu.memory_space<vmem>>, %arg8: memref<32x32xf32, #tpu.memory_space<vmem>>, %arg9: memref<1x32xf32, #tpu.memory_space<vmem>>, %arg10: memref<1x32xf32, #tpu.memory_space<vmem>>, %arg11: memref<1x32xf32, #tpu.memory_space<vmem>>, %arg12: memref<32x2048xf32, #tpu.memory_space<vmem>>, %arg13: memref<1x2048xf32, #tpu.memory_space<vmem>>, %arg14: memref<2048x32xf32, #tpu.memory_space<vmem>>, %arg15: memref<1x32xf32, #tpu.memory_space<vmem>>, %arg16: memref<1x32xf32, #tpu.memory_space<vmem>>, %arg17: memref<1x32xf32, #tpu.memory_space<vmem>>, %arg18: memref<32x32xf32, #tpu.memory_space<vmem>>, %arg19: memref<1x32xf32, #tpu.memory_space<vmem>>, %arg20: memref<2x16xf32, #tpu.memory_space<vmem>>, %arg21: memref<2x48xf32, #tpu.memory_space<vmem>>) attributes {dimension_semantics = [#tpu.dimension_semantics<parallel>], iteration_bounds = array<i64: 1>, scalar_prefetch = 0 : i64, scratch_operands = 0 : i64, tpu.core_type = #tpu.core_type<tc>, window_params = [{transform_indices = @transform_0, window_bounds = array<i64: 2, 8, 32>}, {pipeline_mode = #tpu.pipeline_mode<synchronous>, transform_indices = @transform_1, window_bounds = array<i64: 32, 32>}, {pipeline_mode = #tpu.pipeline_mode<synchronous>, transform_indices = @transform_2, window_bounds = array<i64: 32, 32>}, {pipeline_mode = #tpu.pipeline_mode<synchronous>, transform_indices = @transform_3, window_bounds = array<i64: 32, 32>}, {pipeline_mode = #tpu.pipeline_mode<synchronous>, transform_indices = @transform_4, window_bounds = array<i64: 1, 32>}, {pipeline_mode = #tpu.pipeline_mode<synchronous>, transform_indices = @transform_5, window_bounds = array<i64: 1, 32>}, {pipeline_mode = #tpu.pipeline_mode<synchronous>, transform_indices = @transform_6, window_bounds = array<i64: 1, 32>}, {pipeline_mode = #tpu.pipeline_mode<synchronous>, transform_indices = @transform_7, window_bounds = array<i64: 32, 32>}, {pipeline_mode = #tpu.pipeline_mode<synchronous>, transform_indices = @transform_8, window_bounds = array<i64: 1, 32>}, {pipeline_mode = #tpu.pipeline_mode<synchronous>, transform_indices = @transform_9, window_bounds = array<i64: 1, 32>}, {pipeline_mode = #tpu.pipeline_mode<synchronous>, transform_indices = @transform_10, window_bounds = array<i64: 1, 32>}, {pipeline_mode = #tpu.pipeline_mode<synchronous>, transform_indices = @transform_11, window_bounds = array<i64: 32, 2048>}, {pipeline_mode = #tpu.pipeline_mode<synchronous>, transform_indices = @transform_12, window_bounds = array<i64: 1, 2048>}, {pipeline_mode = #tpu.pipeline_mode<synchronous>, transform_indices = @transform_13, window_bounds = array<i64: 2048, 32>}, {pipeline_mode = #tpu.pipeline_mode<synchronous>, transform_indices = @transform_14, window_bounds = array<i64: 1, 32>}, {pipeline_mode = #tpu.pipeline_mode<synchronous>, transform_indices = @transform_15, window_bounds = array<i64: 1, 32>}, {pipeline_mode = #tpu.pipeline_mode<synchronous>, transform_indices = @transform_16, window_bounds = array<i64: 1, 32>}, {pipeline_mode = #tpu.pipeline_mode<synchronous>, transform_indices = @transform_17, window_bounds = array<i64: 32, 32>}, {pipeline_mode = #tpu.pipeline_mode<synchronous>, transform_indices = @transform_18, window_bounds = array<i64: 1, 32>}, {transform_indices = @transform_19, window_bounds = array<i64: 2, 16>}, {transform_indices = @transform_20, window_bounds = array<i64: 2, 48>}]} {
    %c0 = arith.constant 0 : index
    %c0_0 = arith.constant 0 : index
    %c0_1 = arith.constant 0 : index
    %0 = vector.load %arg1[%c0, %c0_0, %c0_1] : memref<2x8x32xf32, #tpu.memory_space<vmem>>, vector<2x8x32xf32>
    %1 = vector.shape_cast %0 : vector<2x8x32xf32> to vector<16x32xf32>
    %c0_2 = arith.constant 0 : index
    %c0_3 = arith.constant 0 : index
    %2 = vector.load %arg2[%c0_2, %c0_3] : memref<32x32xf32, #tpu.memory_space<vmem>>, vector<32x32xf32>
    %cst = arith.constant dense<0.000000e+00> : vector<16x32xf32>
    %3 = tpu.matmul %1, %2, %cst {dimension_numbers = #tpu.dot_dimension_numbers<[1], [0], [0], [1], [0, 0, 1, 1], [], []>} : vector<16x32xf32>, vector<32x32xf32>, vector<16x32xf32> -> vector<16x32xf32>
    %c0_4 = arith.constant 0 : index
    %c0_5 = arith.constant 0 : index
    %4 = vector.load %arg5[%c0_4, %c0_5] : memref<1x32xf32, #tpu.memory_space<vmem>>, vector<1x32xf32>
    %5 = vector.broadcast %4 : vector<1x32xf32> to vector<16x32xf32>
    %6 = arith.addf %3, %5 : vector<16x32xf32>
    %c0_6 = arith.constant 0 : index
    %c0_7 = arith.constant 0 : index
    %7 = vector.load %arg3[%c0_6, %c0_7] : memref<32x32xf32, #tpu.memory_space<vmem>>, vector<32x32xf32>
    %cst_8 = arith.constant dense<0.000000e+00> : vector<16x32xf32>
    %8 = tpu.matmul %1, %7, %cst_8 {dimension_numbers = #tpu.dot_dimension_numbers<[1], [0], [0], [1], [0, 0, 1, 1], [], []>} : vector<16x32xf32>, vector<32x32xf32>, vector<16x32xf32> -> vector<16x32xf32>
    %c0_9 = arith.constant 0 : index
    %c0_10 = arith.constant 0 : index
    %9 = vector.load %arg6[%c0_9, %c0_10] : memref<1x32xf32, #tpu.memory_space<vmem>>, vector<1x32xf32>
    %10 = vector.broadcast %9 : vector<1x32xf32> to vector<16x32xf32>
    %11 = arith.addf %8, %10 : vector<16x32xf32>
    %c0_11 = arith.constant 0 : index
    %c0_12 = arith.constant 0 : index
    %12 = vector.load %arg4[%c0_11, %c0_12] : memref<32x32xf32, #tpu.memory_space<vmem>>, vector<32x32xf32>
    %cst_13 = arith.constant dense<0.000000e+00> : vector<16x32xf32>
    %13 = tpu.matmul %1, %12, %cst_13 {dimension_numbers = #tpu.dot_dimension_numbers<[1], [0], [0], [1], [0, 0, 1, 1], [], []>} : vector<16x32xf32>, vector<32x32xf32>, vector<16x32xf32> -> vector<16x32xf32>
    %c0_14 = arith.constant 0 : index
    %c0_15 = arith.constant 0 : index
    %14 = vector.load %arg7[%c0_14, %c0_15] : memref<1x32xf32, #tpu.memory_space<vmem>>, vector<1x32xf32>
    %15 = vector.broadcast %14 : vector<1x32xf32> to vector<16x32xf32>
    %16 = arith.addf %13, %15 : vector<16x32xf32>
    %17 = vector.shape_cast %6 : vector<16x32xf32> to vector<2x8x32xf32>
    %18 = vector.shape_cast %11 : vector<16x32xf32> to vector<2x8x32xf32>
    %19 = vector.shape_cast %16 : vector<16x32xf32> to vector<2x8x32xf32>
    "tpu.trace_start"() <{level = 10 : i32, message = "bqd,bkd->bqk"}> : () -> ()
    %cst_16 = arith.constant dense<0.000000e+00> : vector<2x8x8xf32>
    %20 = tpu.matmul %17, %18, %cst_16 {dimension_numbers = #tpu.dot_dimension_numbers<[2], [2], [1], [1], [0, 0, 0, 1, 1, 1], [0], [0]>} : vector<2x8x32xf32>, vector<2x8x32xf32>, vector<2x8x8xf32> -> vector<2x8x8xf32>
    "tpu.trace_stop"() : () -> ()
    %cst_17 = arith.constant 0.176776692 : f32
    %21 = vector.broadcast %cst_17 : f32 to vector<2x8x8xf32>
    %22 = arith.mulf %20, %21 : vector<2x8x8xf32>
    %cst_18 = arith.constant dense<0xFF800000> : vector<2x8xf32>
    %23 = vector.multi_reduction <maximumf>, %22, %cst_18 [2] : vector<2x8x8xf32> to vector<2x8xf32>
    %24 = vector.shape_cast %23 : vector<2x8xf32> to vector<2x8x1xf32>
    %25 = vector.broadcast %24 : vector<2x8x1xf32> to vector<2x8x8xf32>
    %26 = arith.subf %22, %25 : vector<2x8x8xf32>
    %27 = math.exp %26 : vector<2x8x8xf32>
    %cst_19 = arith.constant dense<0.000000e+00> : vector<2x8xf32>
    %28 = vector.multi_reduction <add>, %27, %cst_19 [2] : vector<2x8x8xf32> to vector<2x8xf32>
    %29 = vector.shape_cast %28 : vector<2x8xf32> to vector<2x8x1xf32>
    %30 = tpu.reciprocal %29 {approx = true} : vector<2x8x1xf32> -> vector<2x8x1xf32>
    %31 = vector.broadcast %30 : vector<2x8x1xf32> to vector<2x8x8xf32>
    %32 = arith.mulf %27, %31 : vector<2x8x8xf32>
    "tpu.trace_start"() <{level = 10 : i32, message = "bqk,bkd->bqd"}> : () -> ()
    %cst_20 = arith.constant dense<0.000000e+00> : vector<2x8x32xf32>
    %33 = tpu.matmul %32, %19, %cst_20 {dimension_numbers = #tpu.dot_dimension_numbers<[2], [1], [1], [2], [0, 0, 0, 1, 1, 2], [0], [0]>} : vector<2x8x8xf32>, vector<2x8x32xf32>, vector<2x8x32xf32> -> vector<2x8x32xf32>
    "tpu.trace_stop"() : () -> ()
    %34 = vector.shape_cast %33 : vector<2x8x32xf32> to vector<16x32xf32>
    %c0_21 = arith.constant 0 : index
    %c0_22 = arith.constant 0 : index
    %35 = vector.load %arg8[%c0_21, %c0_22] : memref<32x32xf32, #tpu.memory_space<vmem>>, vector<32x32xf32>
    %cst_23 = arith.constant dense<0.000000e+00> : vector<16x32xf32>
    %36 = tpu.matmul %34, %35, %cst_23 {dimension_numbers = #tpu.dot_dimension_numbers<[1], [0], [0], [1], [0, 0, 1, 1], [], []>} : vector<16x32xf32>, vector<32x32xf32>, vector<16x32xf32> -> vector<16x32xf32>
    %c0_24 = arith.constant 0 : index
    %c0_25 = arith.constant 0 : index
    %37 = vector.load %arg9[%c0_24, %c0_25] : memref<1x32xf32, #tpu.memory_space<vmem>>, vector<1x32xf32>
    %38 = vector.broadcast %37 : vector<1x32xf32> to vector<16x32xf32>
    %39 = arith.addf %36, %38 : vector<16x32xf32>
    %40 = arith.addf %1, %39 : vector<16x32xf32>
    %c0_26 = arith.constant 0 : index
    %c0_27 = arith.constant 0 : index
    %41 = vector.load %arg10[%c0_26, %c0_27] : memref<1x32xf32, #tpu.memory_space<vmem>>, vector<1x32xf32>
    %c0_28 = arith.constant 0 : index
    %c0_29 = arith.constant 0 : index
    %42 = vector.load %arg11[%c0_28, %c0_29] : memref<1x32xf32, #tpu.memory_space<vmem>>, vector<1x32xf32>
    %cst_30 = arith.constant dense<0.000000e+00> : vector<16xf32>
    %43 = vector.multi_reduction <add>, %40, %cst_30 [1] : vector<16x32xf32> to vector<16xf32>
    %44 = vector.shape_cast %43 : vector<16xf32> to vector<16x1xf32>
    %cst_31 = arith.constant 3.200000e+01 : f32
    %45 = vector.broadcast %cst_31 : f32 to vector<16x1xf32>
    %46 = arith.divf %44, %45 : vector<16x1xf32>
    %47 = vector.broadcast %46 : vector<16x1xf32> to vector<16x32xf32>
    %48 = arith.subf %40, %47 : vector<16x32xf32>
    %49 = arith.mulf %48, %48 : vector<16x32xf32>
    %cst_32 = arith.constant dense<0.000000e+00> : vector<16xf32>
    %50 = vector.multi_reduction <add>, %49, %cst_32 [1] : vector<16x32xf32> to vector<16xf32>
    %51 = vector.shape_cast %50 : vector<16xf32> to vector<16x1xf32>
    %cst_33 = arith.constant 3.200000e+01 : f32
    %52 = vector.broadcast %cst_33 : f32 to vector<16x1xf32>
    %53 = arith.divf %51, %52 : vector<16x1xf32>
    %54 = vector.broadcast %46 : vector<16x1xf32> to vector<16x32xf32>
    %55 = arith.subf %40, %54 : vector<16x32xf32>
    %cst_34 = arith.constant 9.99999974E-6 : f32
    %56 = vector.broadcast %cst_34 : f32 to vector<16x1xf32>
    %57 = arith.addf %53, %56 : vector<16x1xf32>
    %58 = math.rsqrt %57 : vector<16x1xf32>
    %59 = vector.broadcast %58 : vector<16x1xf32> to vector<16x32xf32>
    %60 = arith.mulf %55, %59 : vector<16x32xf32>
    %61 = vector.broadcast %41 : vector<1x32xf32> to vector<16x32xf32>
    %62 = arith.mulf %60, %61 : vector<16x32xf32>
    %63 = vector.broadcast %42 : vector<1x32xf32> to vector<16x32xf32>
    %64 = arith.addf %62, %63 : vector<16x32xf32>
    %c0_35 = arith.constant 0 : index
    %c0_36 = arith.constant 0 : index
    %65 = vector.load %arg12[%c0_35, %c0_36] : memref<32x2048xf32, #tpu.memory_space<vmem>>, vector<32x2048xf32>
    %cst_37 = arith.constant dense<0.000000e+00> : vector<16x2048xf32>
    %66 = tpu.matmul %64, %65, %cst_37 {dimension_numbers = #tpu.dot_dimension_numbers<[1], [0], [0], [1], [0, 0, 1, 1], [], []>} : vector<16x32xf32>, vector<32x2048xf32>, vector<16x2048xf32> -> vector<16x2048xf32>
    %c0_38 = arith.constant 0 : index
    %c0_39 = arith.constant 0 : index
    %67 = vector.load %arg13[%c0_38, %c0_39] : memref<1x2048xf32, #tpu.memory_space<vmem>>, vector<1x2048xf32>
    %68 = vector.broadcast %67 : vector<1x2048xf32> to vector<16x2048xf32>
    %69 = arith.addf %66, %68 : vector<16x2048xf32>
    %cst_40 = arith.constant 0.000000e+00 : f32
    %70 = vector.broadcast %cst_40 : f32 to vector<16x2048xf32>
    %71 = arith.maximumf %69, %70 : vector<16x2048xf32>
    %c0_41 = arith.constant 0 : index
    %c0_42 = arith.constant 0 : index
    %72 = vector.load %arg14[%c0_41, %c0_42] : memref<2048x32xf32, #tpu.memory_space<vmem>>, vector<2048x32xf32>
    %cst_43 = arith.constant dense<0.000000e+00> : vector<16x32xf32>
    %73 = tpu.matmul %71, %72, %cst_43 {dimension_numbers = #tpu.dot_dimension_numbers<[1], [0], [0], [1], [0, 0, 1, 1], [], []>} : vector<16x2048xf32>, vector<2048x32xf32>, vector<16x32xf32> -> vector<16x32xf32>
    %c0_44 = arith.constant 0 : index
    %c0_45 = arith.constant 0 : index
    %74 = vector.load %arg15[%c0_44, %c0_45] : memref<1x32xf32, #tpu.memory_space<vmem>>, vector<1x32xf32>
    %75 = vector.broadcast %74 : vector<1x32xf32> to vector<16x32xf32>
    %76 = arith.addf %73, %75 : vector<16x32xf32>
    %77 = arith.addf %64, %76 : vector<16x32xf32>
    %c0_46 = arith.constant 0 : index
    %c0_47 = arith.constant 0 : index
    %78 = vector.load %arg16[%c0_46, %c0_47] : memref<1x32xf32, #tpu.memory_space<vmem>>, vector<1x32xf32>
    %c0_48 = arith.constant 0 : index
    %c0_49 = arith.constant 0 : index
    %79 = vector.load %arg17[%c0_48, %c0_49] : memref<1x32xf32, #tpu.memory_space<vmem>>, vector<1x32xf32>
    %cst_50 = arith.constant dense<0.000000e+00> : vector<16xf32>
    %80 = vector.multi_reduction <add>, %77, %cst_50 [1] : vector<16x32xf32> to vector<16xf32>
    %81 = vector.shape_cast %80 : vector<16xf32> to vector<16x1xf32>
    %cst_51 = arith.constant 3.200000e+01 : f32
    %82 = vector.broadcast %cst_51 : f32 to vector<16x1xf32>
    %83 = arith.divf %81, %82 : vector<16x1xf32>
    %84 = vector.broadcast %83 : vector<16x1xf32> to vector<16x32xf32>
    %85 = arith.subf %77, %84 : vector<16x32xf32>
    %86 = arith.mulf %85, %85 : vector<16x32xf32>
    %cst_52 = arith.constant dense<0.000000e+00> : vector<16xf32>
    %87 = vector.multi_reduction <add>, %86, %cst_52 [1] : vector<16x32xf32> to vector<16xf32>
    %88 = vector.shape_cast %87 : vector<16xf32> to vector<16x1xf32>
    %cst_53 = arith.constant 3.200000e+01 : f32
    %89 = vector.broadcast %cst_53 : f32 to vector<16x1xf32>
    %90 = arith.divf %88, %89 : vector<16x1xf32>
    %91 = vector.broadcast %83 : vector<16x1xf32> to vector<16x32xf32>
    %92 = arith.subf %77, %91 : vector<16x32xf32>
    %cst_54 = arith.constant 9.99999974E-6 : f32
    %93 = vector.broadcast %cst_54 : f32 to vector<16x1xf32>
    %94 = arith.addf %90, %93 : vector<16x1xf32>
    %95 = math.rsqrt %94 : vector<16x1xf32>
    %96 = vector.broadcast %95 : vector<16x1xf32> to vector<16x32xf32>
    %97 = arith.mulf %92, %96 : vector<16x32xf32>
    %98 = vector.broadcast %78 : vector<1x32xf32> to vector<16x32xf32>
    %99 = arith.mulf %97, %98 : vector<16x32xf32>
    %100 = vector.broadcast %79 : vector<1x32xf32> to vector<16x32xf32>
    %101 = arith.addf %99, %100 : vector<16x32xf32>
    %102 = vector.shape_cast %101 : vector<16x32xf32> to vector<2x8x32xf32>
    %cst_55 = arith.constant dense<0.000000e+00> : vector<2x32xf32>
    %103 = vector.multi_reduction <add>, %102, %cst_55 [1] : vector<2x8x32xf32> to vector<2x32xf32>
    %cst_56 = arith.constant 8.000000e+00 : f32
    %104 = vector.broadcast %cst_56 : f32 to vector<2x32xf32>
    %105 = arith.divf %103, %104 : vector<2x32xf32>
    %c0_57 = arith.constant 0 : index
    %c0_58 = arith.constant 0 : index
    %106 = vector.load %arg18[%c0_57, %c0_58] : memref<32x32xf32, #tpu.memory_space<vmem>>, vector<32x32xf32>
    %cst_59 = arith.constant dense<0.000000e+00> : vector<2x32xf32>
    %107 = tpu.matmul %105, %106, %cst_59 {dimension_numbers = #tpu.dot_dimension_numbers<[1], [0], [0], [1], [0, 0, 1, 1], [], []>} : vector<2x32xf32>, vector<32x32xf32>, vector<2x32xf32> -> vector<2x32xf32>
    %c0_60 = arith.constant 0 : index
    %c0_61 = arith.constant 0 : index
    %108 = vector.load %arg19[%c0_60, %c0_61] : memref<1x32xf32, #tpu.memory_space<vmem>>, vector<1x32xf32>
    %109 = vector.broadcast %108 : vector<1x32xf32> to vector<2x32xf32>
    %110 = arith.addf %107, %109 : vector<2x32xf32>
    %cst_62 = arith.constant 0.000000e+00 : f32
    %111 = vector.broadcast %cst_62 : f32 to vector<2x32xf32>
    %112 = arith.maximumf %110, %111 : vector<2x32xf32>
    %113 = vector.extract_strided_slice %112 {offsets = [0, 0], sizes = [2, 16], strides = [1, 1]} : vector<2x32xf32> to vector<2x16xf32>
    %114 = vector.extract_strided_slice %112 {offsets = [0, 16], sizes = [2, 16], strides = [1, 1]} : vector<2x32xf32> to vector<2x16xf32>
    %c0_63 = arith.constant 0 : index
    %c0_64 = arith.constant 0 : index
    %115 = vector.load %arg20[%c0_63, %c0_64] : memref<2x16xf32, #tpu.memory_space<vmem>>, vector<2x16xf32>
    %cst_65 = arith.constant 5.000000e-01 : f32
    %116 = vector.broadcast %cst_65 : f32 to vector<2x16xf32>
    %117 = arith.mulf %116, %114 : vector<2x16xf32>
    %118 = math.exp %117 : vector<2x16xf32>
    %119 = arith.mulf %115, %118 : vector<2x16xf32>
    %120 = arith.addf %113, %119 : vector<2x16xf32>
    %121 = tpu.concatenate %120, %113, %114 in 1 : vector<2x16xf32>, vector<2x16xf32>, vector<2x16xf32> -> vector<2x48xf32>
    %c0_66 = arith.constant 0 : index
    %c0_67 = arith.constant 0 : index
    %122 = vector.load %arg21[%c0_66, %c0_67] : memref<2x48xf32, #tpu.memory_space<vmem>>, vector<2x48xf32>
    tpu.vector_store %arg21[%c0_66, %c0_67], %121 {strides = array<i32>} : memref<2x48xf32, #tpu.memory_space<vmem>>, vector<2x48xf32>,
    return
  }
  func.func @transform_0(%arg0: i32) -> (i32, i32, i32) {
    %c0_i32 = arith.constant 0 : i32
    %c0_i32_0 = arith.constant 0 : i32
    %c0_i32_1 = arith.constant 0 : i32
    return %arg0, %c0_i32, %c0_i32_0 : i32, i32, i32
  }
  func.func @transform_1(%arg0: i32) -> (i32, i32) {
    %c0_i32 = arith.constant 0 : i32
    %c0_i32_0 = arith.constant 0 : i32
    %c0_i32_1 = arith.constant 0 : i32
    return %c0_i32, %c0_i32_0 : i32, i32
  }
  func.func @transform_2(%arg0: i32) -> (i32, i32) {
    %c0_i32 = arith.constant 0 : i32
    %c0_i32_0 = arith.constant 0 : i32
    %c0_i32_1 = arith.constant 0 : i32
    return %c0_i32, %c0_i32_0 : i32, i32
  }
  func.func @transform_3(%arg0: i32) -> (i32, i32) {
    %c0_i32 = arith.constant 0 : i32
    %c0_i32_0 = arith.constant 0 : i32
    %c0_i32_1 = arith.constant 0 : i32
    return %c0_i32, %c0_i32_0 : i32, i32
  }
  func.func @transform_4(%arg0: i32) -> (i32, i32) {
    %c0_i32 = arith.constant 0 : i32
    %c0_i32_0 = arith.constant 0 : i32
    %c0_i32_1 = arith.constant 0 : i32
    return %c0_i32, %c0_i32_0 : i32, i32
  }
  func.func @transform_5(%arg0: i32) -> (i32, i32) {
    %c0_i32 = arith.constant 0 : i32
    %c0_i32_0 = arith.constant 0 : i32
    %c0_i32_1 = arith.constant 0 : i32
    return %c0_i32, %c0_i32_0 : i32, i32
  }
  func.func @transform_6(%arg0: i32) -> (i32, i32) {
    %c0_i32 = arith.constant 0 : i32
    %c0_i32_0 = arith.constant 0 : i32
    %c0_i32_1 = arith.constant 0 : i32
    return %c0_i32, %c0_i32_0 : i32, i32
  }
  func.func @transform_7(%arg0: i32) -> (i32, i32) {
    %c0_i32 = arith.constant 0 : i32
    %c0_i32_0 = arith.constant 0 : i32
    %c0_i32_1 = arith.constant 0 : i32
    return %c0_i32, %c0_i32_0 : i32, i32
  }
  func.func @transform_8(%arg0: i32) -> (i32, i32) {
    %c0_i32 = arith.constant 0 : i32
    %c0_i32_0 = arith.constant 0 : i32
    %c0_i32_1 = arith.constant 0 : i32
    return %c0_i32, %c0_i32_0 : i32, i32
  }
  func.func @transform_9(%arg0: i32) -> (i32, i32) {
    %c0_i32 = arith.constant 0 : i32
    %c0_i32_0 = arith.constant 0 : i32
    %c0_i32_1 = arith.constant 0 : i32
    return %c0_i32, %c0_i32_0 : i32, i32
  }
  func.func @transform_10(%arg0: i32) -> (i32, i32) {
    %c0_i32 = arith.constant 0 : i32
    %c0_i32_0 = arith.constant 0 : i32
    %c0_i32_1 = arith.constant 0 : i32
    return %c0_i32, %c0_i32_0 : i32, i32
  }
  func.func @transform_11(%arg0: i32) -> (i32, i32) {
    %c0_i32 = arith.constant 0 : i32
    %c0_i32_0 = arith.constant 0 : i32
    %c0_i32_1 = arith.constant 0 : i32
    return %c0_i32, %c0_i32_0 : i32, i32
  }
  func.func @transform_12(%arg0: i32) -> (i32, i32) {
    %c0_i32 = arith.constant 0 : i32
    %c0_i32_0 = arith.constant 0 : i32
    %c0_i32_1 = arith.constant 0 : i32
    return %c0_i32, %c0_i32_0 : i32, i32
  }
  func.func @transform_13(%arg0: i32) -> (i32, i32) {
    %c0_i32 = arith.constant 0 : i32
    %c0_i32_0 = arith.constant 0 : i32
    %c0_i32_1 = arith.constant 0 : i32
    return %c0_i32, %c0_i32_0 : i32, i32
  }
  func.func @transform_14(%arg0: i32) -> (i32, i32) {
    %c0_i32 = arith.constant 0 : i32
    %c0_i32_0 = arith.constant 0 : i32
    %c0_i32_1 = arith.constant 0 : i32
    return %c0_i32, %c0_i32_0 : i32, i32
  }
  func.func @transform_15(%arg0: i32) -> (i32, i32) {
    %c0_i32 = arith.constant 0 : i32
    %c0_i32_0 = arith.constant 0 : i32
    %c0_i32_1 = arith.constant 0 : i32
    return %c0_i32, %c0_i32_0 : i32, i32
  }
  func.func @transform_16(%arg0: i32) -> (i32, i32) {
    %c0_i32 = arith.constant 0 : i32
    %c0_i32_0 = arith.constant 0 : i32
    %c0_i32_1 = arith.constant 0 : i32
    return %c0_i32, %c0_i32_0 : i32, i32
  }
  func.func @transform_17(%arg0: i32) -> (i32, i32) {
    %c0_i32 = arith.constant 0 : i32
    %c0_i32_0 = arith.constant 0 : i32
    %c0_i32_1 = arith.constant 0 : i32
    return %c0_i32, %c0_i32_0 : i32, i32
  }
  func.func @transform_18(%arg0: i32) -> (i32, i32) {
    %c0_i32 = arith.constant 0 : i32
    %c0_i32_0 = arith.constant 0 : i32
    %c0_i32_1 = arith.constant 0 : i32
    return %c0_i32, %c0_i32_0 : i32, i32
  }
  func.func @transform_19(%arg0: i32) -> (i32, i32) {
    %c0_i32 = arith.constant 0 : i32
    %c0_i32_0 = arith.constant 0 : i32
    return %arg0, %c0_i32 : i32, i32
  }
  func.func @transform_20(%arg0: i32) -> (i32, i32) {
    %c0_i32 = arith.constant 0 : i32
    %c0_i32_0 = arith.constant 0 : i32
    return %arg0, %c0_i32 : i32, i32
  }
}

</mosaic_0001>

<llo_original>
// kernel: tpu_custom_call.1
$region0: #{tpu_custom_call.1}
  #allocation0 [shape = 'u32[]', space=smem, size = 0x4, offset = 0x4, fixed_abs, tag = 'smem constant byte address 0x4 - core index']
  #allocation1 [shape = 'u32[144,128]{1,0:T(1,128)}', space=vmem, size = 0x12000, scoped, tag = 'internal scratch']
  %s0 = inlined_call_operand.vmem [shape: f32[2,8,32], index: 0, kind: input, shape index: {}]
  %s1 = inlined_call_operand.vmem [shape: f32[32,32], index: 1, kind: input, shape index: {}]
  %s2 = inlined_call_operand.vmem [shape: f32[32,32], index: 2, kind: input, shape index: {}]
  %s3 = inlined_call_operand.vmem [shape: f32[32,32], index: 3, kind: input, shape index: {}]
  %s4 = inlined_call_operand.vmem [shape: f32[1,32], index: 4, kind: input, shape index: {}]
  %s5 = inlined_call_operand.vmem [shape: f32[1,32], index: 5, kind: input, shape index: {}]
  %s6 = inlined_call_operand.vmem [shape: f32[1,32], index: 6, kind: input, shape index: {}]
  %s7 = inlined_call_operand.vmem [shape: f32[32,32], index: 7, kind: input, shape index: {}]
  %s8 = inlined_call_operand.vmem [shape: f32[1,32], index: 8, kind: input, shape index: {}]
  %s9 = inlined_call_operand.vmem [shape: f32[1,32], index: 9, kind: input, shape index: {}]
  %s10 = inlined_call_operand.vmem [shape: f32[1,32], index: 10, kind: input, shape index: {}]
  %s11 = inlined_call_operand.vmem [shape: f32[32,2048], index: 11, kind: input, shape index: {}]
  %s12 = inlined_call_operand.vmem [shape: f32[1,2048], index: 12, kind: input, shape index: {}]
  %s13 = inlined_call_operand.vmem [shape: f32[2048,32], index: 13, kind: input, shape index: {}]
  %s14 = inlined_call_operand.vmem [shape: f32[1,32], index: 14, kind: input, shape index: {}]
  %s15 = inlined_call_operand.vmem [shape: f32[1,32], index: 15, kind: input, shape index: {}]
  %s16 = inlined_call_operand.vmem [shape: f32[1,32], index: 16, kind: input, shape index: {}]
  %s17 = inlined_call_operand.vmem [shape: f32[32,32], index: 17, kind: input, shape index: {}]
  %s18 = inlined_call_operand.vmem [shape: f32[1,32], index: 18, kind: input, shape index: {}]
  %s19 = inlined_call_operand.vmem [shape: f32[2,16], index: 19, kind: input, shape index: {}]
  %s20 = inlined_call_operand.hbm [shape: f32[2,48], index: 20, kind: output, shape index: {}]
  %s21 = sld [smem:[#allocation0]]
  $region90: #{tpu_custom_call.1} parent=0
    _
  %s23 = ssub.s32 1, %s21
  %s24 = scalar_select 0, %s23, %s21
  $region1: #{tpu_custom_call.1} parent=0
    #allocation2 [shape = 'u8[1024]{0}', space=vmem, size = 0x400, scoped, tag = 'output window, operand 0, single buffered']
    #allocation3 [shape = 's32[1]{0}', space=sflag, size = 0x4, scoped, tag = 'scoped memory for tpu_custom_call.1']
    %25 = vsyncpa [#allocation3], 0
    // Predicated region
    $region2: #{tpu_custom_call.1} parent=1 // pred_check
      _
    $region3: #{tpu_custom_call.1} parent=1 // pred_check_branch
      %27 = sbr.rel (0) target = $region5
    $region4: #{tpu_custom_call.1} parent=1 // pred_region
      _
    $region5: #{tpu_custom_call.1} parent=1 // pred_fallthru
      _
    // Predicated region
    $region6: #{tpu_custom_call.1} parent=1 // pred_check
      _
    $region7: #{tpu_custom_call.1} parent=1 // pred_check_branch
      %29 = sbr.rel (0) target = $region9
    $region8: #{tpu_custom_call.1} parent=1 // pred_region
      _
    $region9: #{tpu_custom_call.1} parent=1 // pred_fallthru
      _
    // Predicated region
    $region10: #{tpu_custom_call.1} parent=1 // pred_check
      _
    $region11: #{tpu_custom_call.1} parent=1 // pred_check_branch
      %31 = sbr.rel (0) target = $region13
    $region12: #{tpu_custom_call.1} parent=1 // pred_region
      _
    $region13: #{tpu_custom_call.1} parent=1 // pred_fallthru
      _
    // Predicated region
    $region14: #{tpu_custom_call.1} parent=1 // pred_check
      _
    $region15: #{tpu_custom_call.1} parent=1 // pred_check_branch
      %33 = sbr.rel (0) target = $region17
    $region16: #{tpu_custom_call.1} parent=1 // pred_region
      _
    $region17: #{tpu_custom_call.1} parent=1 // pred_fallthru
      _
    // Predicated region
    $region18: #{tpu_custom_call.1} parent=1 // pred_check
      _
    $region19: #{tpu_custom_call.1} parent=1 // pred_check_branch
      %35 = sbr.rel (0) target = $region21
    $region20: #{tpu_custom_call.1} parent=1 // pred_region
      _
    $region21: #{tpu_custom_call.1} parent=1 // pred_fallthru
      _
    // Predicated region
    $region22: #{tpu_custom_call.1} parent=1 // pred_check
      _
    $region23: #{tpu_custom_call.1} parent=1 // pred_check_branch
      %37 = sbr.rel (0) target = $region25
    $region24: #{tpu_custom_call.1} parent=1 // pred_region
      _
    $region25: #{tpu_custom_call.1} parent=1 // pred_fallthru
      _
    // Predicated region
    $region26: #{tpu_custom_call.1} parent=1 // pred_check
      _
    $region27: #{tpu_custom_call.1} parent=1 // pred_check_branch
      %39 = sbr.rel (0) target = $region29
    $region28: #{tpu_custom_call.1} parent=1 // pred_region
      _
    $region29: #{tpu_custom_call.1} parent=1 // pred_fallthru
      _
    // Predicated region
    $region30: #{tpu_custom_call.1} parent=1 // pred_check
      _
    $region31: #{tpu_custom_call.1} parent=1 // pred_check_branch
      %41 = sbr.rel (0) target = $region33
    $region32: #{tpu_custom_call.1} parent=1 // pred_region
      _
    $region33: #{tpu_custom_call.1} parent=1 // pred_fallthru
      _
    // Predicated region
    $region34: #{tpu_custom_call.1} parent=1 // pred_check
      _
    $region35: #{tpu_custom_call.1} parent=1 // pred_check_branch
      %43 = sbr.rel (0) target = $region37
    $region36: #{tpu_custom_call.1} parent=1 // pred_region
      _
    $region37: #{tpu_custom_call.1} parent=1 // pred_fallthru
      _
    // Predicated region
    $region38: #{tpu_custom_call.1} parent=1 // pred_check
      _
    $region39: #{tpu_custom_call.1} parent=1 // pred_check_branch
      %45 = sbr.rel (0) target = $region41
    $region40: #{tpu_custom_call.1} parent=1 // pred_region
      _
    $region41: #{tpu_custom_call.1} parent=1 // pred_fallthru
      _
    // Predicated region
    $region42: #{tpu_custom_call.1} parent=1 // pred_check
      _
    $region43: #{tpu_custom_call.1} parent=1 // pred_check_branch
      %47 = sbr.rel (0) target = $region45
    $region44: #{tpu_custom_call.1} parent=1 // pred_region
      _
    $region45: #{tpu_custom_call.1} parent=1 // pred_fallthru
      _
    // Predicated region
    $region46: #{tpu_custom_call.1} parent=1 // pred_check
      _
    $region47: #{tpu_custom_call.1} parent=1 // pred_check_branch
      %49 = sbr.rel (0) target = $region49
    $region48: #{tpu_custom_call.1} parent=1 // pred_region
      _
    $region49: #{tpu_custom_call.1} parent=1 // pred_fallthru
      _
    // Predicated region
    $region50: #{tpu_custom_call.1} parent=1 // pred_check
      _
    $region51: #{tpu_custom_call.1} parent=1 // pred_check_branch
      %51 = sbr.rel (0) target = $region53
    $region52: #{tpu_custom_call.1} parent=1 // pred_region
      _
    $region53: #{tpu_custom_call.1} parent=1 // pred_fallthru
      _
    // Predicated region
    $region54: #{tpu_custom_call.1} parent=1 // pred_check
      _
    $region55: #{tpu_custom_call.1} parent=1 // pred_check_branch
      %53 = sbr.rel (0) target = $region57
    $region56: #{tpu_custom_call.1} parent=1 // pred_region
      _
    $region57: #{tpu_custom_call.1} parent=1 // pred_fallthru
      _
    // Predicated region
    $region58: #{tpu_custom_call.1} parent=1 // pred_check
      _
    $region59: #{tpu_custom_call.1} parent=1 // pred_check_branch
      %55 = sbr.rel (0) target = $region61
    $region60: #{tpu_custom_call.1} parent=1 // pred_region
      _
    $region61: #{tpu_custom_call.1} parent=1 // pred_fallthru
      _
    // Predicated region
    $region62: #{tpu_custom_call.1} parent=1 // pred_check
      _
    $region63: #{tpu_custom_call.1} parent=1 // pred_check_branch
      %57 = sbr.rel (0) target = $region65
    $region64: #{tpu_custom_call.1} parent=1 // pred_region
      _
    $region65: #{tpu_custom_call.1} parent=1 // pred_fallthru
      _
    // Predicated region
    $region66: #{tpu_custom_call.1} parent=1 // pred_check
      _
    $region67: #{tpu_custom_call.1} parent=1 // pred_check_branch
      %59 = sbr.rel (0) target = $region69
    $region68: #{tpu_custom_call.1} parent=1 // pred_region
      _
    $region69: #{tpu_custom_call.1} parent=1 // pred_fallthru
      _
    // Predicated region
    $region70: #{tpu_custom_call.1} parent=1 // pred_check
      _
    $region71: #{tpu_custom_call.1} parent=1 // pred_check_branch
      %61 = sbr.rel (0) target = $region73
    $region72: #{tpu_custom_call.1} parent=1 // pred_region
      _
    $region73: #{tpu_custom_call.1} parent=1 // pred_fallthru
      _
    // Predicated region
    $region74: #{tpu_custom_call.1} parent=1 // pred_check
      _
    $region75: #{tpu_custom_call.1} parent=1 // pred_check_branch
      %63 = sbr.rel (0) target = $region77
    $region76: #{tpu_custom_call.1} parent=1 // pred_region
      _
    $region77: #{tpu_custom_call.1} parent=1 // pred_fallthru
      _
    // Predicated region
    $region78: #{tpu_custom_call.1} parent=1 // pred_check
      _
    $region79: #{tpu_custom_call.1} parent=1 // pred_check_branch
      %65 = sbr.rel (0) target = $region81
    $region80: #{tpu_custom_call.1} parent=1 // pred_region
      _
    $region81: #{tpu_custom_call.1} parent=1 // pred_fallthru
      _
    %v66 = vld [vmem:[%s0] sm:$0xff]
    %v67 = vld [vmem:[%s0 + $0x8] sm:$0xff]
    %v68 = vld [vmem:[%s1] sm:$0xff]
    %v69 = vld [vmem:[%s1 + $0x8] sm:$0xff]
    %v70 = vld [vmem:[%s1 + $0x10] sm:$0xff]
    %v71 = vld [vmem:[%s1 + $0x18] sm:$0xff]
    %v72 = vld [vmem:[%s4] sm:$0x1]
    %v74 = vlaneseq
    %v75 = vshrl.u32 %v74, 7
    %v76 = vsub.s32 0, %v75
    %v77 = vrot.slane %v72, %v76
    %vm79 = vcmask 261120
    %v81 = vsel %vm79, %v66, 0
    %v84 = vsel %vm79, %v67, 0
    %86 = vmatprep.subr.mxu0 0.0
    %87 = vmatpush1.msra.mxu0 0.0
    %88 = vmatprep.subr.mxu0 0.0
    %89 = vmatpush1.msra.mxu0 0.0
    %90 = vmatprep.subr.mxu0 0.0
    %91 = vmatpush1.msra.mxu0 0.0
    %92 = vmatprep.subr.mxu0 0.0
    %93 = vmatpush1.msra.mxu0 0.0
    %94 = vmatprep.subr.mxu0 0.0
    %95 = vmatpush1.msra.mxu0 0.0
    %96 = vmatprep.subr.mxu0 0.0
    %97 = vmatpush1.msra.mxu0 0.0
    %98 = vmatprep.subr.mxu0 0.0
    %99 = vmatpush1.msra.mxu0 0.0
    %100 = vmatprep.subr.mxu0 0.0
    %101 = vmatpush1.msra.mxu0 0.0
    %102 = vmatprep.subr.mxu0 0.0
    %103 = vmatpush1.msra.mxu0 0.0
    %104 = vmatprep.subr.mxu0 0.0
    %105 = vmatpush1.msra.mxu0 0.0
    %106 = vmatprep.subr.mxu0 0.0
    %107 = vmatpush1.msra.mxu0 0.0
    %108 = vmatprep.subr.mxu0 0.0
    %109 = vmatpush1.msra.mxu0 0.0
    %110 = vmatprep.subr.mxu0 0.0
    %111 = vmatpush1.msra.mxu0 %v71
    %112 = vmatprep.subr.mxu0 0.0
    %113 = vmatpush1.msra.mxu0 %v70
    %114 = vmatprep.subr.mxu0 0.0
    %115 = vmatpush1.msra.mxu0 %v69
    %116 = vmatprep.subr.mxu0 0.0
    %117 = vmatpush1.msra.mxu0 %v68
    %118 = vmatprep.subr.mxu0 0.0
    %119 = vmatpush2.msra.mxu0 0.0
    %120 = vmatprep.subr.mxu0 0.0
    %121 = vmatpush2.msra.mxu0 0.0
    %122 = vmatprep.subr.mxu0 0.0
    %123 = vmatpush2.msra.mxu0 0.0
    %124 = vmatprep.subr.mxu0 0.0
    %125 = vmatpush2.msra.mxu0 0.0
    %126 = vmatprep.subr.mxu0 0.0
    %127 = vmatpush2.msra.mxu0 0.0
    %128 = vmatprep.subr.mxu0 0.0
    %129 = vmatpush2.msra.mxu0 0.0
    %130 = vmatprep.subr.mxu0 0.0
    %131 = vmatpush2.msra.mxu0 0.0
    %132 = vmatprep.subr.mxu0 0.0
    %133 = vmatpush2.msra.mxu0 0.0
    %134 = vmatprep.subr.mxu0 0.0
    %135 = vmatpush2.msra.mxu0 0.0
    %136 = vmatprep.subr.mxu0 0.0
    %137 = vmatpush2.msra.mxu0 0.0
    %138 = vmatprep.subr.mxu0 0.0
    %139 = vmatpush2.msra.mxu0 0.0
    %140 = vmatprep.subr.mxu0 0.0
    %141 = vmatpush2.msra.mxu0 0.0
    %142 = vmatprep.subr.mxu0 0.0
    %143 = vmatpush2.msra.mxu0 0.0
    %144 = vmatprep.subr.mxu0 0.0
    %145 = vmatpush2.msra.mxu0 0.0
    %146 = vmatprep.subr.mxu0 0.0
    %147 = vmatpush2.msra.mxu0 0.0
    %148 = vmatprep.subr.mxu0 0.0
    %149 = vmatpush2.msra.mxu0 0.0
    %150 = vmatprep.mubr.f32.mxu0 0.0
    %151 = vmatmul.mubr.f32.gmra.mxu0 %v81
    %v152 = vpop.f32.mrf.mxu0
    %v153 = vadd.f32 %v77, %v152
    %v154 = vpop.f32.mrf.mxu0
    %155 = vmatprep.mubr.f32.mxu0 0.0
    %156 = vmatmul.mubr.f32.gmra.mxu0 %v84
    %v157 = vpop.f32.mrf.mxu0
    %v158 = vadd.f32 %v77, %v157
    %v159 = vpop.f32.mrf.mxu0
    %160 = vdwg.mxu0
    %v161 = vld [vmem:[%s2] sm:$0xff]
    %v162 = vld [vmem:[%s2 + $0x8] sm:$0xff]
    %v163 = vld [vmem:[%s2 + $0x10] sm:$0xff]
    %v164 = vld [vmem:[%s2 + $0x18] sm:$0xff]
    %v165 = vld [vmem:[%s5] sm:$0x1]
    %v167 = vlaneseq
    %v168 = vshrl.u32 %v167, 7
    %v169 = vsub.s32 0, %v168
    %v170 = vrot.slane %v165, %v169
    %172 = vmatprep.subr.mxu0 0.0
    %173 = vmatpush1.msra.mxu0 0.0
    %174 = vmatprep.subr.mxu0 0.0
    %175 = vmatpush1.msra.mxu0 0.0
    %176 = vmatprep.subr.mxu0 0.0
    %177 = vmatpush1.msra.mxu0 0.0
    %178 = vmatprep.subr.mxu0 0.0
    %179 = vmatpush1.msra.mxu0 0.0
    %180 = vmatprep.subr.mxu0 0.0
    %181 = vmatpush1.msra.mxu0 0.0
    %182 = vmatprep.subr.mxu0 0.0
    %183 = vmatpush1.msra.mxu0 0.0
    %184 = vmatprep.subr.mxu0 0.0
    %185 = vmatpush1.msra.mxu0 0.0
    %186 = vmatprep.subr.mxu0 0.0
    %187 = vmatpush1.msra.mxu0 0.0
    %188 = vmatprep.subr.mxu0 0.0
    %189 = vmatpush1.msra.mxu0 0.0
    %190 = vmatprep.subr.mxu0 0.0
    %191 = vmatpush1.msra.mxu0 0.0
    %192 = vmatprep.subr.mxu0 0.0
    %193 = vmatpush1.msra.mxu0 0.0
    %194 = vmatprep.subr.mxu0 0.0
    %195 = vmatpush1.msra.mxu0 0.0
    %196 = vmatprep.subr.mxu0 0.0
    %197 = vmatpush1.msra.mxu0 %v164
    %198 = vmatprep.subr.mxu0 0.0
    %199 = vmatpush1.msra.mxu0 %v163
    %200 = vmatprep.subr.mxu0 0.0
    %201 = vmatpush1.msra.mxu0 %v162
    %202 = vmatprep.subr.mxu0 0.0
    %203 = vmatpush1.msra.mxu0 %v161
    %204 = vmatprep.subr.mxu0 0.0
    %205 = vmatpush2.msra.mxu0 0.0
    %206 = vmatprep.subr.mxu0 0.0
    %207 = vmatpush2.msra.mxu0 0.0
    %208 = vmatprep.subr.mxu0 0.0
    %209 = vmatpush2.msra.mxu0 0.0
    %210 = vmatprep.subr.mxu0 0.0
    %211 = vmatpush2.msra.mxu0 0.0
    %212 = vmatprep.subr.mxu0 0.0
    %213 = vmatpush2.msra.mxu0 0.0
    %214 = vmatprep.subr.mxu0 0.0
    %215 = vmatpush2.msra.mxu0 0.0
    %216 = vmatprep.subr.mxu0 0.0
    %217 = vmatpush2.msra.mxu0 0.0
    %218 = vmatprep.subr.mxu0 0.0
    %219 = vmatpush2.msra.mxu0 0.0
    %220 = vmatprep.subr.mxu0 0.0
    %221 = vmatpush2.msra.mxu0 0.0
    %222 = vmatprep.subr.mxu0 0.0
    %223 = vmatpush2.msra.mxu0 0.0
    %224 = vmatprep.subr.mxu0 0.0
    %225 = vmatpush2.msra.mxu0 0.0
    %226 = vmatprep.subr.mxu0 0.0
    %227 = vmatpush2.msra.mxu0 0.0
    %228 = vmatprep.subr.mxu0 0.0
    %229 = vmatpush2.msra.mxu0 0.0
    %230 = vmatprep.subr.mxu0 0.0
    %231 = vmatpush2.msra.mxu0 0.0
    %232 = vmatprep.subr.mxu0 0.0
    %233 = vmatpush2.msra.mxu0 0.0
    %234 = vmatprep.subr.mxu0 0.0
    %235 = vmatpush2.msra.mxu0 0.0
    %236 = vmatprep.mubr.f32.mxu0 0.0
    %237 = vmatmul.mubr.f32.gmra.mxu0 %v81
    %v238 = vpop.f32.mrf.mxu0
    %v239 = vadd.f32 %v170, %v238
    %v240 = vpop.f32.mrf.mxu0
    %241 = vmatprep.mubr.f32.mxu0 0.0
    %242 = vmatmul.mubr.f32.gmra.mxu0 %v84
    %v243 = vpop.f32.mrf.mxu0
    %v244 = vadd.f32 %v170, %v243
    %v245 = vpop.f32.mrf.mxu0
    %246 = vdwg.mxu0
    %v247 = vld [vmem:[%s3] sm:$0xff]
    %v248 = vld [vmem:[%s3 + $0x8] sm:$0xff]
    %v249 = vld [vmem:[%s3 + $0x10] sm:$0xff]
    %v250 = vld [vmem:[%s3 + $0x18] sm:$0xff]
    %v251 = vld [vmem:[%s6] sm:$0x1]
    %v253 = vlaneseq
    %v254 = vshrl.u32 %v253, 7
    %v255 = vsub.s32 0, %v254
    %v256 = vrot.slane %v251, %v255
    %258 = vmatprep.subr.mxu0 0.0
    %259 = vmatpush1.msra.mxu0 0.0
    %260 = vmatprep.subr.mxu0 0.0
    %261 = vmatpush1.msra.mxu0 0.0
    %262 = vmatprep.subr.mxu0 0.0
    %263 = vmatpush1.msra.mxu0 0.0
    %264 = vmatprep.subr.mxu0 0.0
    %265 = vmatpush1.msra.mxu0 0.0
    %266 = vmatprep.subr.mxu0 0.0
    %267 = vmatpush1.msra.mxu0 0.0
    %268 = vmatprep.subr.mxu0 0.0
    %269 = vmatpush1.msra.mxu0 0.0
    %270 = vmatprep.subr.mxu0 0.0
    %271 = vmatpush1.msra.mxu0 0.0
    %272 = vmatprep.subr.mxu0 0.0
    %273 = vmatpush1.msra.mxu0 0.0
    %274 = vmatprep.subr.mxu0 0.0
    %275 = vmatpush1.msra.mxu0 0.0
    %276 = vmatprep.subr.mxu0 0.0
    %277 = vmatpush1.msra.mxu0 0.0
    %278 = vmatprep.subr.mxu0 0.0
    %279 = vmatpush1.msra.mxu0 0.0
    %280 = vmatprep.subr.mxu0 0.0
    %281 = vmatpush1.msra.mxu0 0.0
    %282 = vmatprep.subr.mxu0 0.0
    %283 = vmatpush1.msra.mxu0 %v250
    %284 = vmatprep.subr.mxu0 0.0
    %285 = vmatpush1.msra.mxu0 %v249
    %286 = vmatprep.subr.mxu0 0.0
    %287 = vmatpush1.msra.mxu0 %v248
    %288 = vmatprep.subr.mxu0 0.0
    %289 = vmatpush1.msra.mxu0 %v247
    %290 = vmatprep.subr.mxu0 0.0
    %291 = vmatpush2.msra.mxu0 0.0
    %292 = vmatprep.subr.mxu0 0.0
    %293 = vmatpush2.msra.mxu0 0.0
    %294 = vmatprep.subr.mxu0 0.0
    %295 = vmatpush2.msra.mxu0 0.0
    %296 = vmatprep.subr.mxu0 0.0
    %297 = vmatpush2.msra.mxu0 0.0
    %298 = vmatprep.subr.mxu0 0.0
    %299 = vmatpush2.msra.mxu0 0.0
    %300 = vmatprep.subr.mxu0 0.0
    %301 = vmatpush2.msra.mxu0 0.0
    %302 = vmatprep.subr.mxu0 0.0
    %303 = vmatpush2.msra.mxu0 0.0
    %304 = vmatprep.subr.mxu0 0.0
    %305 = vmatpush2.msra.mxu0 0.0
    %306 = vmatprep.subr.mxu0 0.0
    %307 = vmatpush2.msra.mxu0 0.0
    %308 = vmatprep.subr.mxu0 0.0
    %309 = vmatpush2.msra.mxu0 0.0
    %310 = vmatprep.subr.mxu0 0.0
    %311 = vmatpush2.msra.mxu0 0.0
    %312 = vmatprep.subr.mxu0 0.0
    %313 = vmatpush2.msra.mxu0 0.0
    %314 = vmatprep.subr.mxu0 0.0
    %315 = vmatpush2.msra.mxu0 0.0
    %316 = vmatprep.subr.mxu0 0.0
    %317 = vmatpush2.msra.mxu0 0.0
    %318 = vmatprep.subr.mxu0 0.0
    %319 = vmatpush2.msra.mxu0 0.0
    %320 = vmatprep.subr.mxu0 0.0
    %321 = vmatpush2.msra.mxu0 0.0
    %322 = vmatprep.mubr.f32.mxu0 0.0
    %323 = vmatmul.mubr.f32.gmra.mxu0 %v81
    %v324 = vpop.f32.mrf.mxu0
    %v325 = vadd.f32 %v256, %v324
    %v326 = vpop.f32.mrf.mxu0
    %327 = vmatprep.mubr.f32.mxu0 0.0
    %328 = vmatmul.mubr.f32.gmra.mxu0 %v84
    %v329 = vpop.f32.mrf.mxu0
    %v330 = vadd.f32 %v256, %v329
    %v331 = vpop.f32.mrf.mxu0
    %332 = vdwg.mxu0
    %v334 = vsel %vm79, %v153, 0
    %v337 = vsel %vm79, %v239, 0
    %339 = vmatprep.subr.mxu0 0.0
    %340 = vmatpush1.xpose.msra.mxu0 0.0
    %341 = vmatprep.subr.mxu0 0.0
    %342 = vmatpush1.xpose.msra.mxu0 0.0
    %343 = vmatprep.subr.mxu0 0.0
    %344 = vmatpush1.xpose.msra.mxu0 0.0
    %345 = vmatprep.subr.mxu0 0.0
    %346 = vmatpush1.xpose.msra.mxu0 0.0
    %347 = vmatprep.subr.mxu0 0.0
    %348 = vmatpush1.xpose.msra.mxu0 0.0
    %349 = vmatprep.subr.mxu0 0.0
    %350 = vmatpush1.xpose.msra.mxu0 0.0
    %351 = vmatprep.subr.mxu0 0.0
    %352 = vmatpush1.xpose.msra.mxu0 0.0
    %353 = vmatprep.subr.mxu0 0.0
    %354 = vmatpush1.xpose.msra.mxu0 0.0
    %355 = vmatprep.subr.mxu0 0.0
    %356 = vmatpush1.xpose.msra.mxu0 0.0
    %357 = vmatprep.subr.mxu0 0.0
    %358 = vmatpush1.xpose.msra.mxu0 0.0
    %359 = vmatprep.subr.mxu0 0.0
    %360 = vmatpush1.xpose.msra.mxu0 0.0
    %361 = vmatprep.subr.mxu0 0.0
    %362 = vmatpush1.xpose.msra.mxu0 0.0
    %363 = vmatprep.subr.mxu0 0.0
    %364 = vmatpush1.xpose.msra.mxu0 0.0
    %365 = vmatprep.subr.mxu0 0.0
    %366 = vmatpush1.xpose.msra.mxu0 0.0
    %367 = vmatprep.subr.mxu0 0.0
    %368 = vmatpush1.xpose.msra.mxu0 0.0
    %369 = vmatprep.subr.mxu0 0.0
    %370 = vmatpush1.xpose.msra.mxu0 %v337
    %371 = vmatprep.subr.mxu0 0.0
    %372 = vmatpush2.xpose.msra.mxu0 0.0
    %373 = vmatprep.subr.mxu0 0.0
    %374 = vmatpush2.xpose.msra.mxu0 0.0
    %375 = vmatprep.subr.mxu0 0.0
    %376 = vmatpush2.xpose.msra.mxu0 0.0
    %377 = vmatprep.subr.mxu0 0.0
    %378 = vmatpush2.xpose.msra.mxu0 0.0
    %379 = vmatprep.subr.mxu0 0.0
    %380 = vmatpush2.xpose.msra.mxu0 0.0
    %381 = vmatprep.subr.mxu0 0.0
    %382 = vmatpush2.xpose.msra.mxu0 0.0
    %383 = vmatprep.subr.mxu0 0.0
    %384 = vmatpush2.xpose.msra.mxu0 0.0
    %385 = vmatprep.subr.mxu0 0.0
    %386 = vmatpush2.xpose.msra.mxu0 0.0
    %387 = vmatprep.subr.mxu0 0.0
    %388 = vmatpush2.xpose.msra.mxu0 0.0
    %389 = vmatprep.subr.mxu0 0.0
    %390 = vmatpush2.xpose.msra.mxu0 0.0
    %391 = vmatprep.subr.mxu0 0.0
    %392 = vmatpush2.xpose.msra.mxu0 0.0
    %393 = vmatprep.subr.mxu0 0.0
    %394 = vmatpush2.xpose.msra.mxu0 0.0
    %395 = vmatprep.subr.mxu0 0.0
    %396 = vmatpush2.xpose.msra.mxu0 0.0
    %397 = vmatprep.subr.mxu0 0.0
    %398 = vmatpush2.xpose.msra.mxu0 0.0
    %399 = vmatprep.subr.mxu0 0.0
    %400 = vmatpush2.xpose.msra.mxu0 0.0
    %401 = vmatprep.subr.mxu0 0.0
    %402 = vmatpush2.xpose.msra.mxu0 0.0
    %403 = vmatprep.mubr.f32.mxu0 0.0
    %404 = vmatmul.mubr.f32.gmra.mxu0 %v334
    %v405 = vpop.f32.mrf.mxu0
    %v406 = vadd.f32 0.0, %v405
    %v407 = vpop.f32.mrf.mxu0
    %408 = vdwg.mxu0
    %v410 = vsel %vm79, %v158, 0
    %v413 = vsel %vm79, %v244, 0
    %415 = vmatprep.subr.mxu0 0.0
    %416 = vmatpush1.xpose.msra.mxu0 0.0
    %417 = vmatprep.subr.mxu0 0.0
    %418 = vmatpush1.xpose.msra.mxu0 0.0
    %419 = vmatprep.subr.mxu0 0.0
    %420 = vmatpush1.xpose.msra.mxu0 0.0
    %421 = vmatprep.subr.mxu0 0.0
    %422 = vmatpush1.xpose.msra.mxu0 0.0
    %423 = vmatprep.subr.mxu0 0.0
    %424 = vmatpush1.xpose.msra.mxu0 0.0
    %425 = vmatprep.subr.mxu0 0.0
    %426 = vmatpush1.xpose.msra.mxu0 0.0
    %427 = vmatprep.subr.mxu0 0.0
    %428 = vmatpush1.xpose.msra.mxu0 0.0
    %429 = vmatprep.subr.mxu0 0.0
    %430 = vmatpush1.xpose.msra.mxu0 0.0
    %431 = vmatprep.subr.mxu0 0.0
    %432 = vmatpush1.xpose.msra.mxu0 0.0
    %433 = vmatprep.subr.mxu0 0.0
    %434 = vmatpush1.xpose.msra.mxu0 0.0
    %435 = vmatprep.subr.mxu0 0.0
    %436 = vmatpush1.xpose.msra.mxu0 0.0
    %437 = vmatprep.subr.mxu0 0.0
    %438 = vmatpush1.xpose.msra.mxu0 0.0
    %439 = vmatprep.subr.mxu0 0.0
    %440 = vmatpush1.xpose.msra.mxu0 0.0
    %441 = vmatprep.subr.mxu0 0.0
    %442 = vmatpush1.xpose.msra.mxu0 0.0
    %443 = vmatprep.subr.mxu0 0.0
    %444 = vmatpush1.xpose.msra.mxu0 0.0
    %445 = vmatprep.subr.mxu0 0.0
    %446 = vmatpush1.xpose.msra.mxu0 %v413
    %447 = vmatprep.subr.mxu0 0.0
    %448 = vmatpush2.xpose.msra.mxu0 0.0
    %449 = vmatprep.subr.mxu0 0.0
    %450 = vmatpush2.xpose.msra.mxu0 0.0
    %451 = vmatprep.subr.mxu0 0.0
    %452 = vmatpush2.xpose.msra.mxu0 0.0
    %453 = vmatprep.subr.mxu0 0.0
    %454 = vmatpush2.xpose.msra.mxu0 0.0
    %455 = vmatprep.subr.mxu0 0.0
    %456 = vmatpush2.xpose.msra.mxu0 0.0
    %457 = vmatprep.subr.mxu0 0.0
    %458 = vmatpush2.xpose.msra.mxu0 0.0
    %459 = vmatprep.subr.mxu0 0.0
    %460 = vmatpush2.xpose.msra.mxu0 0.0
    %461 = vmatprep.subr.mxu0 0.0
    %462 = vmatpush2.xpose.msra.mxu0 0.0
    %463 = vmatprep.subr.mxu0 0.0
    %464 = vmatpush2.xpose.msra.mxu0 0.0
    %465 = vmatprep.subr.mxu0 0.0
    %466 = vmatpush2.xpose.msra.mxu0 0.0
    %467 = vmatprep.subr.mxu0 0.0
    %468 = vmatpush2.xpose.msra.mxu0 0.0
    %469 = vmatprep.subr.mxu0 0.0
    %470 = vmatpush2.xpose.msra.mxu0 0.0
    %471 = vmatprep.subr.mxu0 0.0
    %472 = vmatpush2.xpose.msra.mxu0 0.0
    %473 = vmatprep.subr.mxu0 0.0
    %474 = vmatpush2.xpose.msra.mxu0 0.0
    %475 = vmatprep.subr.mxu0 0.0
    %476 = vmatpush2.xpose.msra.mxu0 0.0
    %477 = vmatprep.subr.mxu0 0.0
    %478 = vmatpush2.xpose.msra.mxu0 0.0
    %479 = vmatprep.mubr.f32.mxu0 0.0
    %480 = vmatmul.mubr.f32.gmra.mxu0 %v410
    %v481 = vpop.f32.mrf.mxu0
    %v482 = vadd.f32 0.0, %v481
    %v483 = vpop.f32.mrf.mxu0
    %484 = vdwg.mxu0
    %v485 = vmul.f32 %v406, 0.17677669
    %v486 = vmul.f32 %v482, 0.17677669
    %vm487 = vcmask 64512
    %v488 = vsel %vm487, %v485, -inf
    %489 = vmax.xlane.f32.xlu0 %v488
    %v490 = vpop.xlane.xlu0 %489
    %v491 = vsel %vm487, %v486, -inf
    %492 = vmax.xlane.f32.xlu0 %v491
    %v493 = vpop.xlane.xlu0 %492
    %v494 = vsub.f32 %v485, %v490
    %v495 = vsub.f32 %v486, %v493
    %v496 = vmul.f32 %v494, 1.442695
    %v497 = vpow.pop %v496
    %v498 = vmul.f32 %v495, 1.442695
    %v499 = vpow.pop %v498
    %v500 = vsel %vm487, %v497, 0.0
    %501 = vadd.xlane.f32.xlu0 %v500
    %v502 = vpop.xlane.xlu0 %501
    %v503 = vsel %vm487, %v499, 0.0
    %504 = vadd.xlane.f32.xlu0 %v503
    %v505 = vpop.xlane.xlu0 %504
    %v506 = vrcp.pop %v502
    %v507 = vrcp.pop %v505
    %v508 = vmul.f32 %v497, %v506
    %v509 = vmul.f32 %v499, %v507
    %v511 = vsel %vm487, %v508, 0
    %513 = vmatprep.subr.mxu0 0.0
    %514 = vmatpush1.msra.mxu0 0.0
    %515 = vmatprep.subr.mxu0 0.0
    %516 = vmatpush1.msra.mxu0 0.0
    %517 = vmatprep.subr.mxu0 0.0
    %518 = vmatpush1.msra.mxu0 0.0
    %519 = vmatprep.subr.mxu0 0.0
    %520 = vmatpush1.msra.mxu0 0.0
    %521 = vmatprep.subr.mxu0 0.0
    %522 = vmatpush1.msra.mxu0 0.0
    %523 = vmatprep.subr.mxu0 0.0
    %524 = vmatpush1.msra.mxu0 0.0
    %525 = vmatprep.subr.mxu0 0.0
    %526 = vmatpush1.msra.mxu0 0.0
    %527 = vmatprep.subr.mxu0 0.0
    %528 = vmatpush1.msra.mxu0 0.0
    %529 = vmatprep.subr.mxu0 0.0
    %530 = vmatpush1.msra.mxu0 0.0
    %531 = vmatprep.subr.mxu0 0.0
    %532 = vmatpush1.msra.mxu0 0.0
    %533 = vmatprep.subr.mxu0 0.0
    %534 = vmatpush1.msra.mxu0 0.0
    %535 = vmatprep.subr.mxu0 0.0
    %536 = vmatpush1.msra.mxu0 0.0
    %537 = vmatprep.subr.mxu0 0.0
    %538 = vmatpush1.msra.mxu0 0.0
    %539 = vmatprep.subr.mxu0 0.0
    %540 = vmatpush1.msra.mxu0 0.0
    %541 = vmatprep.subr.mxu0 0.0
    %542 = vmatpush1.msra.mxu0 0.0
    %543 = vmatprep.subr.mxu0 0.0
    %544 = vmatpush1.msra.mxu0 %v325
    %545 = vmatprep.subr.mxu0 0.0
    %546 = vmatpush2.msra.mxu0 0.0
    %547 = vmatprep.subr.mxu0 0.0
    %548 = vmatpush2.msra.mxu0 0.0
    %549 = vmatprep.subr.mxu0 0.0
    %550 = vmatpush2.msra.mxu0 0.0
    %551 = vmatprep.subr.mxu0 0.0
    %552 = vmatpush2.msra.mxu0 0.0
    %553 = vmatprep.subr.mxu0 0.0
    %554 = vmatpush2.msra.mxu0 0.0
    %555 = vmatprep.subr.mxu0 0.0
    %556 = vmatpush2.msra.mxu0 0.0
    %557 = vmatprep.subr.mxu0 0.0
    %558 = vmatpush2.msra.mxu0 0.0
    %559 = vmatprep.subr.mxu0 0.0
    %560 = vmatpush2.msra.mxu0 0.0
    %561 = vmatprep.subr.mxu0 0.0
    %562 = vmatpush2.msra.mxu0 0.0
    %563 = vmatprep.subr.mxu0 0.0
    %564 = vmatpush2.msra.mxu0 0.0
    %565 = vmatprep.subr.mxu0 0.0
    %566 = vmatpush2.msra.mxu0 0.0
    %567 = vmatprep.subr.mxu0 0.0
    %568 = vmatpush2.msra.mxu0 0.0
    %569 = vmatprep.subr.mxu0 0.0
    %570 = vmatpush2.msra.mxu0 0.0
    %571 = vmatprep.subr.mxu0 0.0
    %572 = vmatpush2.msra.mxu0 0.0
    %573 = vmatprep.subr.mxu0 0.0
    %574 = vmatpush2.msra.mxu0 0.0
    %575 = vmatprep.subr.mxu0 0.0
    %576 = vmatpush2.msra.mxu0 0.0
    %577 = vmatprep.mubr.f32.mxu0 0.0
    %578 = vmatmul.mubr.f32.gmra.mxu0 %v511
    %v579 = vpop.f32.mrf.mxu0
    %v580 = vadd.f32 0.0, %v579
    %v581 = vpop.f32.mrf.mxu0
    %582 = vdwg.mxu0
    %v584 = vsel %vm487, %v509, 0
    %586 = vmatprep.subr.mxu0 0.0
    %587 = vmatpush1.msra.mxu0 0.0
    %588 = vmatprep.subr.mxu0 0.0
    %589 = vmatpush1.msra.mxu0 0.0
    %590 = vmatprep.subr.mxu0 0.0
    %591 = vmatpush1.msra.mxu0 0.0
    %592 = vmatprep.subr.mxu0 0.0
    %593 = vmatpush1.msra.mxu0 0.0
    %594 = vmatprep.subr.mxu0 0.0
    %595 = vmatpush1.msra.mxu0 0.0
    %596 = vmatprep.subr.mxu0 0.0
    %597 = vmatpush1.msra.mxu0 0.0
    %598 = vmatprep.subr.mxu0 0.0
    %599 = vmatpush1.msra.mxu0 0.0
    %600 = vmatprep.subr.mxu0 0.0
    %601 = vmatpush1.msra.mxu0 0.0
    %602 = vmatprep.subr.mxu0 0.0
    %603 = vmatpush1.msra.mxu0 0.0
    %604 = vmatprep.subr.mxu0 0.0
    %605 = vmatpush1.msra.mxu0 0.0
    %606 = vmatprep.subr.mxu0 0.0
    %607 = vmatpush1.msra.mxu0 0.0
    %608 = vmatprep.subr.mxu0 0.0
    %609 = vmatpush1.msra.mxu0 0.0
    %610 = vmatprep.subr.mxu0 0.0
    %611 = vmatpush1.msra.mxu0 0.0
    %612 = vmatprep.subr.mxu0 0.0
    %613 = vmatpush1.msra.mxu0 0.0
    %614 = vmatprep.subr.mxu0 0.0
    %615 = vmatpush1.msra.mxu0 0.0
    %616 = vmatprep.subr.mxu0 0.0
    %617 = vmatpush1.msra.mxu0 %v330
    %618 = vmatprep.subr.mxu0 0.0
    %619 = vmatpush2.msra.mxu0 0.0
    %620 = vmatprep.subr.mxu0 0.0
    %621 = vmatpush2.msra.mxu0 0.0
    %622 = vmatprep.subr.mxu0 0.0
    %623 = vmatpush2.msra.mxu0 0.0
    %624 = vmatprep.subr.mxu0 0.0
    %625 = vmatpush2.msra.mxu0 0.0
    %626 = vmatprep.subr.mxu0 0.0
    %627 = vmatpush2.msra.mxu0 0.0
    %628 = vmatprep.subr.mxu0 0.0
    %629 = vmatpush2.msra.mxu0 0.0
    %630 = vmatprep.subr.mxu0 0.0
    %631 = vmatpush2.msra.mxu0 0.0
    %632 = vmatprep.subr.mxu0 0.0
    %633 = vmatpush2.msra.mxu0 0.0
    %634 = vmatprep.subr.mxu0 0.0
    %635 = vmatpush2.msra.mxu0 0.0
    %636 = vmatprep.subr.mxu0 0.0
    %637 = vmatpush2.msra.mxu0 0.0
    %638 = vmatprep.subr.mxu0 0.0
    %639 = vmatpush2.msra.mxu0 0.0
    %640 = vmatprep.subr.mxu0 0.0
    %641 = vmatpush2.msra.mxu0 0.0
    %642 = vmatprep.subr.mxu0 0.0
    %643 = vmatpush2.msra.mxu0 0.0
    %644 = vmatprep.subr.mxu0 0.0
    %645 = vmatpush2.msra.mxu0 0.0
    %646 = vmatprep.subr.mxu0 0.0
    %647 = vmatpush2.msra.mxu0 0.0
    %648 = vmatprep.subr.mxu0 0.0
    %649 = vmatpush2.msra.mxu0 0.0
    %650 = vmatprep.mubr.f32.mxu0 0.0
    %651 = vmatmul.mubr.f32.gmra.mxu0 %v584
    %v652 = vpop.f32.mrf.mxu0
    %v653 = vadd.f32 0.0, %v652
    %v654 = vpop.f32.mrf.mxu0
    %655 = vdwg.mxu0
    %v656 = vld [vmem:[%s7] sm:$0xff]
    %v657 = vld [vmem:[%s7 + $0x8] sm:$0xff]
    %v658 = vld [vmem:[%s7 + $0x10] sm:$0xff]
    %v659 = vld [vmem:[%s7 + $0x18] sm:$0xff]
    %v660 = vld [vmem:[%s8] sm:$0x1]
    %v662 = vlaneseq
    %v663 = vshrl.u32 %v662, 7
    %v664 = vsub.s32 0, %v663
    %v665 = vrot.slane %v660, %v664
    %v668 = vsel %vm79, %v580, 0
    %v671 = vsel %vm79, %v653, 0
    %673 = vmatprep.subr.mxu0 0.0
    %674 = vmatpush1.msra.mxu0 0.0
    %675 = vmatprep.subr.mxu0 0.0
    %676 = vmatpush1.msra.mxu0 0.0
    %677 = vmatprep.subr.mxu0 0.0
    %678 = vmatpush1.msra.mxu0 0.0
    %679 = vmatprep.subr.mxu0 0.0
    %680 = vmatpush1.msra.mxu0 0.0
    %681 = vmatprep.subr.mxu0 0.0
    %682 = vmatpush1.msra.mxu0 0.0
    %683 = vmatprep.subr.mxu0 0.0
    %684 = vmatpush1.msra.mxu0 0.0
    %685 = vmatprep.subr.mxu0 0.0
    %686 = vmatpush1.msra.mxu0 0.0
    %687 = vmatprep.subr.mxu0 0.0
    %688 = vmatpush1.msra.mxu0 0.0
    %689 = vmatprep.subr.mxu0 0.0
    %690 = vmatpush1.msra.mxu0 0.0
    %691 = vmatprep.subr.mxu0 0.0
    %692 = vmatpush1.msra.mxu0 0.0
    %693 = vmatprep.subr.mxu0 0.0
    %694 = vmatpush1.msra.mxu0 0.0
    %695 = vmatprep.subr.mxu0 0.0
    %696 = vmatpush1.msra.mxu0 0.0
    %697 = vmatprep.subr.mxu0 0.0
    %698 = vmatpush1.msra.mxu0 %v659
    %699 = vmatprep.subr.mxu0 0.0
    %700 = vmatpush1.msra.mxu0 %v658
    %701 = vmatprep.subr.mxu0 0.0
    %702 = vmatpush1.msra.mxu0 %v657
    %703 = vmatprep.subr.mxu0 0.0
    %704 = vmatpush1.msra.mxu0 %v656
    %705 = vmatprep.subr.mxu0 0.0
    %706 = vmatpush2.msra.mxu0 0.0
    %707 = vmatprep.subr.mxu0 0.0
    %708 = vmatpush2.msra.mxu0 0.0
    %709 = vmatprep.subr.mxu0 0.0
    %710 = vmatpush2.msra.mxu0 0.0
    %711 = vmatprep.subr.mxu0 0.0
    %712 = vmatpush2.msra.mxu0 0.0
    %713 = vmatprep.subr.mxu0 0.0
    %714 = vmatpush2.msra.mxu0 0.0
    %715 = vmatprep.subr.mxu0 0.0
    %716 = vmatpush2.msra.mxu0 0.0
    %717 = vmatprep.subr.mxu0 0.0
    %718 = vmatpush2.msra.mxu0 0.0
    %719 = vmatprep.subr.mxu0 0.0
    %720 = vmatpush2.msra.mxu0 0.0
    %721 = vmatprep.subr.mxu0 0.0
    %722 = vmatpush2.msra.mxu0 0.0
    %723 = vmatprep.subr.mxu0 0.0
    %724 = vmatpush2.msra.mxu0 0.0
    %725 = vmatprep.subr.mxu0 0.0
    %726 = vmatpush2.msra.mxu0 0.0
    %727 = vmatprep.subr.mxu0 0.0
    %728 = vmatpush2.msra.mxu0 0.0
    %729 = vmatprep.subr.mxu0 0.0
    %730 = vmatpush2.msra.mxu0 0.0
    %731 = vmatprep.subr.mxu0 0.0
    %732 = vmatpush2.msra.mxu0 0.0
    %733 = vmatprep.subr.mxu0 0.0
    %734 = vmatpush2.msra.mxu0 0.0
    %735 = vmatprep.subr.mxu0 0.0
    %736 = vmatpush2.msra.mxu0 0.0
    %737 = vmatprep.mubr.f32.mxu0 0.0
    %738 = vmatmul.mubr.f32.gmra.mxu0 %v668
    %v739 = vpop.f32.mrf.mxu0
    %v740 = vadd.f32 %v665, %v739
    %v741 = vpop.f32.mrf.mxu0
    %742 = vmatprep.mubr.f32.mxu0 0.0
    %743 = vmatmul.mubr.f32.gmra.mxu0 %v671
    %v744 = vpop.f32.mrf.mxu0
    %v745 = vadd.f32 %v665, %v744
    %v746 = vpop.f32.mrf.mxu0
    %747 = vdwg.mxu0
    %v748 = vadd.f32 %v66, %v740
    %v749 = vadd.f32 %v67, %v745
    %v750 = vld [vmem:[%s9] sm:$0x1]
    %v751 = vld [vmem:[%s10] sm:$0x1]
    %v752 = vsel %vm79, %v748, 0.0
    %753 = vadd.xlane.f32.xlu0 %v752
    %v754 = vpop.xlane.xlu0 %753
    %v755 = vsel %vm79, %v749, 0.0
    %756 = vadd.xlane.f32.xlu0 %v755
    %v757 = vpop.xlane.xlu0 %756
    %v758 = vrcp.pop 32.0
    %v759 = vmul.f32 %v754, %v758
    %v760 = vmul.f32 %v757, %v758
    %v761 = vsub.f32 %v748, %v759
    %v762 = vsub.f32 %v749, %v760
    %v763 = vmul.f32 %v761, %v761
    %v764 = vmul.f32 %v762, %v762
    %v765 = vsel %vm79, %v763, 0.0
    %766 = vadd.xlane.f32.xlu0 %v765
    %v767 = vpop.xlane.xlu0 %766
    %v768 = vsel %vm79, %v764, 0.0
    %769 = vadd.xlane.f32.xlu0 %v768
    %v770 = vpop.xlane.xlu0 %769
    %v771 = vmul.f32 %v767, %v758
    %v772 = vmul.f32 %v770, %v758
    %v773 = vadd.f32 %v771, 1e-05
    %v774 = vadd.f32 %v772, 1e-05
    %v775 = vrsqrt.pop %v773
    %v776 = vrsqrt.pop %v774
    %v777 = vmul.f32 %v761, %v775
    %v778 = vmul.f32 %v762, %v776
    %v780 = vlaneseq
    %v781 = vshrl.u32 %v780, 7
    %v782 = vsub.s32 0, %v781
    %v783 = vrot.slane %v750, %v782
    %v785 = vmul.f32 %v777, %v783
    %v786 = vmul.f32 %v778, %v783
    %v788 = vlaneseq
    %v789 = vshrl.u32 %v788, 7
    %v790 = vsub.s32 0, %v789
    %v791 = vrot.slane %v751, %v790
    %v793 = vadd.f32 %v785, %v791
    %v794 = vadd.f32 %v786, %v791
    %v795 = vld [vmem:[%s11] sm:$0xff]
    %v796 = vld [vmem:[%s11 + $0x8] sm:$0xff]
    %v797 = vld [vmem:[%s11 + $0x10] sm:$0xff]
    %v798 = vld [vmem:[%s11 + $0x18] sm:$0xff]
    %v799 = vld [vmem:[%s11 + $0x20] sm:$0xff]
    %v800 = vld [vmem:[%s11 + $0x28] sm:$0xff]
    %v801 = vld [vmem:[%s11 + $0x30] sm:$0xff]
    %v802 = vld [vmem:[%s11 + $0x38] sm:$0xff]
    %v803 = vld [vmem:[%s11 + $0x40] sm:$0xff]
    %v804 = vld [vmem:[%s11 + $0x48] sm:$0xff]
    %v805 = vld [vmem:[%s11 + $0x50] sm:$0xff]
    %v806 = vld [vmem:[%s11 + $0x58] sm:$0xff]
    %v807 = vld [vmem:[%s11 + $0x60] sm:$0xff]
    %v808 = vld [vmem:[%s11 + $0x68] sm:$0xff]
    %v809 = vld [vmem:[%s11 + $0x70] sm:$0xff]
    %v810 = vld [vmem:[%s11 + $0x78] sm:$0xff]
    %v811 = vld [vmem:[%s11 + $0x80] sm:$0xff]
    %v812 = vld [vmem:[%s11 + $0x88] sm:$0xff]
    %v813 = vld [vmem:[%s11 + $0x90] sm:$0xff]
    %v814 = vld [vmem:[%s11 + $0x98] sm:$0xff]
    %v815 = vld [vmem:[%s11 + $0xa0] sm:$0xff]
    %v816 = vld [vmem:[%s11 + $0xa8] sm:$0xff]
    %v817 = vld [vmem:[%s11 + $0xb0] sm:$0xff]
    %v818 = vld [vmem:[%s11 + $0xb8] sm:$0xff]
    %v819 = vld [vmem:[%s11 + $0xc0] sm:$0xff]
    %v820 = vld [vmem:[%s11 + $0xc8] sm:$0xff]
    %v821 = vld [vmem:[%s11 + $0xd0] sm:$0xff]
    %v822 = vld [vmem:[%s11 + $0xd8] sm:$0xff]
    %v823 = vld [vmem:[%s11 + $0xe0] sm:$0xff]
    %v824 = vld [vmem:[%s11 + $0xe8] sm:$0xff]
    %v825 = vld [vmem:[%s11 + $0xf0] sm:$0xff]
    %v826 = vld [vmem:[%s11 + $0xf8] sm:$0xff]
    %v827 = vld [vmem:[%s11 + $0x100] sm:$0xff]
    %v828 = vld [vmem:[%s11 + $0x108] sm:$0xff]
    %v829 = vld [vmem:[%s11 + $0x110] sm:$0xff]
    %v830 = vld [vmem:[%s11 + $0x118] sm:$0xff]
    %v831 = vld [vmem:[%s11 + $0x120] sm:$0xff]
    %v832 = vld [vmem:[%s11 + $0x128] sm:$0xff]
    %v833 = vld [vmem:[%s11 + $0x130] sm:$0xff]
    %v834 = vld [vmem:[%s11 + $0x138] sm:$0xff]
    %v835 = vld [vmem:[%s11 + $0x140] sm:$0xff]
    %v836 = vld [vmem:[%s11 + $0x148] sm:$0xff]
    %v837 = vld [vmem:[%s11 + $0x150] sm:$0xff]
    %v838 = vld [vmem:[%s11 + $0x158] sm:$0xff]
    %v839 = vld [vmem:[%s11 + $0x160] sm:$0xff]
    %v840 = vld [vmem:[%s11 + $0x168] sm:$0xff]
    %v841 = vld [vmem:[%s11 + $0x170] sm:$0xff]
    %v842 = vld [vmem:[%s11 + $0x178] sm:$0xff]
    %v843 = vld [vmem:[%s11 + $0x180] sm:$0xff]
    %v844 = vld [vmem:[%s11 + $0x188] sm:$0xff]
    %v845 = vld [vmem:[%s11 + $0x190] sm:$0xff]
    %v846 = vld [vmem:[%s11 + $0x198] sm:$0xff]
    %v847 = vld [vmem:[%s11 + $0x1a0] sm:$0xff]
    %v848 = vld [vmem:[%s11 + $0x1a8] sm:$0xff]
    %v849 = vld [vmem:[%s11 + $0x1b0] sm:$0xff]
    %v850 = vld [vmem:[%s11 + $0x1b8] sm:$0xff]
    %v851 = vld [vmem:[%s11 + $0x1c0] sm:$0xff]
    %v852 = vld [vmem:[%s11 + $0x1c8] sm:$0xff]
    %v853 = vld [vmem:[%s11 + $0x1d0] sm:$0xff]
    %v854 = vld [vmem:[%s11 + $0x1d8] sm:$0xff]
    %v855 = vld [vmem:[%s11 + $0x1e0] sm:$0xff]
    %v856 = vld [vmem:[%s11 + $0x1e8] sm:$0xff]
    %v857 = vld [vmem:[%s11 + $0x1f0] sm:$0xff]
    %v858 = vld [vmem:[%s11 + $0x1f8] sm:$0xff]
    %v859 = vld [vmem:[%s12] sm:$0xff]
    %v860 = vld [vmem:[%s12 + $0x8] sm:$0xff]
    %v863 = vlaneseq
    %v864 = vshrl.u32 %v863, 7
    %v865 = vsub.s32 0, %v864
    %v866 = vrot.slane %v859, %v865
    %v867 = vlaneseq
    %v868 = vshrl.u32 %v867, 7
    %v869 = vsub.s32 1, %v868
    %v870 = vrot.slane %v859, %v869
    %v871 = vlaneseq
    %v872 = vshrl.u32 %v871, 7
    %v873 = vsub.s32 2, %v872
    %v874 = vrot.slane %v859, %v873
    %v875 = vlaneseq
    %v876 = vshrl.u32 %v875, 7
    %v877 = vsub.s32 3, %v876
    %v878 = vrot.slane %v859, %v877
    %v879 = vlaneseq
    %v880 = vshrl.u32 %v879, 7
    %v881 = vsub.s32 4, %v880
    %v882 = vrot.slane %v859, %v881
    %v883 = vlaneseq
    %v884 = vshrl.u32 %v883, 7
    %v885 = vsub.s32 5, %v884
    %v886 = vrot.slane %v859, %v885
    %v887 = vlaneseq
    %v888 = vshrl.u32 %v887, 7
    %v889 = vsub.s32 6, %v888
    %v890 = vrot.slane %v859, %v889
    %v891 = vlaneseq
    %v892 = vshrl.u32 %v891, 7
    %v893 = vsub.s32 7, %v892
    %v894 = vrot.slane %v859, %v893
    %v895 = vlaneseq
    %v896 = vshrl.u32 %v895, 7
    %v897 = vsub.s32 0, %v896
    %v898 = vrot.slane %v860, %v897
    %v899 = vlaneseq
    %v900 = vshrl.u32 %v899, 7
    %v901 = vsub.s32 1, %v900
    %v902 = vrot.slane %v860, %v901
    %v903 = vlaneseq
    %v904 = vshrl.u32 %v903, 7
    %v905 = vsub.s32 2, %v904
    %v906 = vrot.slane %v860, %v905
    %v907 = vlaneseq
    %v908 = vshrl.u32 %v907, 7
    %v909 = vsub.s32 3, %v908
    %v910 = vrot.slane %v860, %v909
    %v911 = vlaneseq
    %v912 = vshrl.u32 %v911, 7
    %v913 = vsub.s32 4, %v912
    %v914 = vrot.slane %v860, %v913
    %v915 = vlaneseq
    %v916 = vshrl.u32 %v915, 7
    %v917 = vsub.s32 5, %v916
    %v918 = vrot.slane %v860, %v917
    %v919 = vlaneseq
    %v920 = vshrl.u32 %v919, 7
    %v921 = vsub.s32 6, %v920
    %v922 = vrot.slane %v860, %v921
    %v923 = vlaneseq
    %v924 = vshrl.u32 %v923, 7
    %v925 = vsub.s32 7, %v924
    %v926 = vrot.slane %v860, %v925
    %v944 = vsel %vm79, %v793, 0
    %v947 = vsel %vm79, %v794, 0
    %949 = vmatprep.subr.mxu0 0.0
    %950 = vmatpush1.msra.mxu0 0.0
    %951 = vmatprep.subr.mxu0 0.0
    %952 = vmatpush1.msra.mxu0 0.0
    %953 = vmatprep.subr.mxu0 0.0
    %954 = vmatpush1.msra.mxu0 0.0
    %955 = vmatprep.subr.mxu0 0.0
    %956 = vmatpush1.msra.mxu0 0.0
    %957 = vmatprep.subr.mxu0 0.0
    %958 = vmatpush1.msra.mxu0 0.0
    %959 = vmatprep.subr.mxu0 0.0
    %960 = vmatpush1.msra.mxu0 0.0
    %961 = vmatprep.subr.mxu0 0.0
    %962 = vmatpush1.msra.mxu0 0.0
    %963 = vmatprep.subr.mxu0 0.0
    %964 = vmatpush1.msra.mxu0 0.0
    %965 = vmatprep.subr.mxu0 0.0
    %966 = vmatpush1.msra.mxu0 0.0
    %967 = vmatprep.subr.mxu0 0.0
    %968 = vmatpush1.msra.mxu0 0.0
    %969 = vmatprep.subr.mxu0 0.0
    %970 = vmatpush1.msra.mxu0 0.0
    %971 = vmatprep.subr.mxu0 0.0
    %972 = vmatpush1.msra.mxu0 0.0
    %973 = vmatprep.subr.mxu0 %v844
    %974 = vmatpush1.msra.mxu0 %v843
    %975 = vmatprep.subr.mxu0 %v828
    %976 = vmatpush1.msra.mxu0 %v827
    %977 = vmatprep.subr.mxu0 %v812
    %978 = vmatpush1.msra.mxu0 %v811
    %979 = vmatprep.subr.mxu0 %v796
    %980 = vmatpush1.msra.mxu0 %v795
    %981 = vmatprep.subr.mxu0 0.0
    %982 = vmatpush2.msra.mxu0 0.0
    %983 = vmatprep.subr.mxu0 0.0
    %984 = vmatpush2.msra.mxu0 0.0
    %985 = vmatprep.subr.mxu0 0.0
    %986 = vmatpush2.msra.mxu0 0.0
    %987 = vmatprep.subr.mxu0 0.0
    %988 = vmatpush2.msra.mxu0 0.0
    %989 = vmatprep.subr.mxu0 0.0
    %990 = vmatpush2.msra.mxu0 0.0
    %991 = vmatprep.subr.mxu0 0.0
    %992 = vmatpush2.msra.mxu0 0.0
    %993 = vmatprep.subr.mxu0 0.0
    %994 = vmatpush2.msra.mxu0 0.0
    %995 = vmatprep.subr.mxu0 0.0
    %996 = vmatpush2.msra.mxu0 0.0
    %997 = vmatprep.subr.mxu0 0.0
    %998 = vmatpush2.msra.mxu0 0.0
    %999 = vmatprep.subr.mxu0 0.0
    %1000 = vmatpush2.msra.mxu0 0.0
    %1001 = vmatprep.subr.mxu0 0.0
    %1002 = vmatpush2.msra.mxu0 0.0
    %1003 = vmatprep.subr.mxu0 0.0
    %1004 = vmatpush2.msra.mxu0 0.0
    %1005 = vmatprep.subr.mxu0 0.0
    %1006 = vmatpush2.msra.mxu0 0.0
    %1007 = vmatprep.subr.mxu0 0.0
    %1008 = vmatpush2.msra.mxu0 0.0
    %1009 = vmatprep.subr.mxu0 0.0
    %1010 = vmatpush2.msra.mxu0 0.0
    %1011 = vmatprep.subr.mxu0 0.0
    %1012 = vmatpush2.msra.mxu0 0.0
    %1013 = vmatprep.mubr.f32.mxu0 0.0
    %1014 = vmatmul.mubr.f32.gmra.mxu0 %v944
    %v1015 = vpop.f32.mrf.mxu0
    %v1016 = vadd.f32 %v866, %v1015
    %v1017 = vpop.f32.mrf.mxu0
    %v1018 = vadd.f32 %v870, %v1017
    %1019 = vmatprep.mubr.f32.mxu0 0.0
    %1020 = vmatmul.mubr.f32.gmra.mxu0 %v947
    %v1021 = vpop.f32.mrf.mxu0
    %v1022 = vadd.f32 %v866, %v1021
    %v1023 = vpop.f32.mrf.mxu0
    %v1024 = vadd.f32 %v870, %v1023
    %1025 = vdwg.mxu0
    %1026 = vmatprep.subr.mxu0 0.0
    %1027 = vmatpush1.msra.mxu0 0.0
    %1028 = vmatprep.subr.mxu0 0.0
    %1029 = vmatpush1.msra.mxu0 0.0
    %1030 = vmatprep.subr.mxu0 0.0
    %1031 = vmatpush1.msra.mxu0 0.0
    %1032 = vmatprep.subr.mxu0 0.0
    %1033 = vmatpush1.msra.mxu0 0.0
    %1034 = vmatprep.subr.mxu0 0.0
    %1035 = vmatpush1.msra.mxu0 0.0
    %1036 = vmatprep.subr.mxu0 0.0
    %1037 = vmatpush1.msra.mxu0 0.0
    %1038 = vmatprep.subr.mxu0 0.0
    %1039 = vmatpush1.msra.mxu0 0.0
    %1040 = vmatprep.subr.mxu0 0.0
    %1041 = vmatpush1.msra.mxu0 0.0
    %1042 = vmatprep.subr.mxu0 0.0
    %1043 = vmatpush1.msra.mxu0 0.0
    %1044 = vmatprep.subr.mxu0 0.0
    %1045 = vmatpush1.msra.mxu0 0.0
    %1046 = vmatprep.subr.mxu0 0.0
    %1047 = vmatpush1.msra.mxu0 0.0
    %1048 = vmatprep.subr.mxu0 0.0
    %1049 = vmatpush1.msra.mxu0 0.0
    %1050 = vmatprep.subr.mxu0 %v846
    %1051 = vmatpush1.msra.mxu0 %v845
    %1052 = vmatprep.subr.mxu0 %v830
    %1053 = vmatpush1.msra.mxu0 %v829
    %1054 = vmatprep.subr.mxu0 %v814
    %1055 = vmatpush1.msra.mxu0 %v813
    %1056 = vmatprep.subr.mxu0 %v798
    %1057 = vmatpush1.msra.mxu0 %v797
    %1058 = vmatprep.subr.mxu0 0.0
    %1059 = vmatpush2.msra.mxu0 0.0
    %1060 = vmatprep.subr.mxu0 0.0
    %1061 = vmatpush2.msra.mxu0 0.0
    %1062 = vmatprep.subr.mxu0 0.0
    %1063 = vmatpush2.msra.mxu0 0.0
    %1064 = vmatprep.subr.mxu0 0.0
    %1065 = vmatpush2.msra.mxu0 0.0
    %1066 = vmatprep.subr.mxu0 0.0
    %1067 = vmatpush2.msra.mxu0 0.0
    %1068 = vmatprep.subr.mxu0 0.0
    %1069 = vmatpush2.msra.mxu0 0.0
    %1070 = vmatprep.subr.mxu0 0.0
    %1071 = vmatpush2.msra.mxu0 0.0
    %1072 = vmatprep.subr.mxu0 0.0
    %1073 = vmatpush2.msra.mxu0 0.0
    %1074 = vmatprep.subr.mxu0 0.0
    %1075 = vmatpush2.msra.mxu0 0.0
    %1076 = vmatprep.subr.mxu0 0.0
    %1077 = vmatpush2.msra.mxu0 0.0
    %1078 = vmatprep.subr.mxu0 0.0
    %1079 = vmatpush2.msra.mxu0 0.0
    %1080 = vmatprep.subr.mxu0 0.0
    %1081 = vmatpush2.msra.mxu0 0.0
    %1082 = vmatprep.subr.mxu0 0.0
    %1083 = vmatpush2.msra.mxu0 0.0
    %1084 = vmatprep.subr.mxu0 0.0
    %1085 = vmatpush2.msra.mxu0 0.0
    %1086 = vmatprep.subr.mxu0 0.0
    %1087 = vmatpush2.msra.mxu0 0.0
    %1088 = vmatprep.subr.mxu0 0.0
    %1089 = vmatpush2.msra.mxu0 0.0
    %1090 = vmatprep.mubr.f32.mxu0 0.0
    %1091 = vmatmul.mubr.f32.gmra.mxu0 %v944
    %v1092 = vpop.f32.mrf.mxu0
    %v1093 = vadd.f32 %v874, %v1092
    %v1094 = vpop.f32.mrf.mxu0
    %v1095 = vadd.f32 %v878, %v1094
    %1096 = vmatprep.mubr.f32.mxu0 0.0
    %1097 = vmatmul.mubr.f32.gmra.mxu0 %v947
    %v1098 = vpop.f32.mrf.mxu0
    %v1099 = vadd.f32 %v874, %v1098
    %v1100 = vpop.f32.mrf.mxu0
    %v1101 = vadd.f32 %v878, %v1100
    %1102 = vdwg.mxu0
    %1103 = vmatprep.subr.mxu0 0.0
    %1104 = vmatpush1.msra.mxu0 0.0
    %1105 = vmatprep.subr.mxu0 0.0
    %1106 = vmatpush1.msra.mxu0 0.0
    %1107 = vmatprep.subr.mxu0 0.0
    %1108 = vmatpush1.msra.mxu0 0.0
    %1109 = vmatprep.subr.mxu0 0.0
    %1110 = vmatpush1.msra.mxu0 0.0
    %1111 = vmatprep.subr.mxu0 0.0
    %1112 = vmatpush1.msra.mxu0 0.0
    %1113 = vmatprep.subr.mxu0 0.0
    %1114 = vmatpush1.msra.mxu0 0.0
    %1115 = vmatprep.subr.mxu0 0.0
    %1116 = vmatpush1.msra.mxu0 0.0
    %1117 = vmatprep.subr.mxu0 0.0
    %1118 = vmatpush1.msra.mxu0 0.0
    %1119 = vmatprep.subr.mxu0 0.0
    %1120 = vmatpush1.msra.mxu0 0.0
    %1121 = vmatprep.subr.mxu0 0.0
    %1122 = vmatpush1.msra.mxu0 0.0
    %1123 = vmatprep.subr.mxu0 0.0
    %1124 = vmatpush1.msra.mxu0 0.0
    %1125 = vmatprep.subr.mxu0 0.0
    %1126 = vmatpush1.msra.mxu0 0.0
    %1127 = vmatprep.subr.mxu0 %v848
    %1128 = vmatpush1.msra.mxu0 %v847
    %1129 = vmatprep.subr.mxu0 %v832
    %1130 = vmatpush1.msra.mxu0 %v831
    %1131 = vmatprep.subr.mxu0 %v816
    %1132 = vmatpush1.msra.mxu0 %v815
    %1133 = vmatprep.subr.mxu0 %v800
    %1134 = vmatpush1.msra.mxu0 %v799
    %1135 = vmatprep.subr.mxu0 0.0
    %1136 = vmatpush2.msra.mxu0 0.0
    %1137 = vmatprep.subr.mxu0 0.0
    %1138 = vmatpush2.msra.mxu0 0.0
    %1139 = vmatprep.subr.mxu0 0.0
    %1140 = vmatpush2.msra.mxu0 0.0
    %1141 = vmatprep.subr.mxu0 0.0
    %1142 = vmatpush2.msra.mxu0 0.0
    %1143 = vmatprep.subr.mxu0 0.0
    %1144 = vmatpush2.msra.mxu0 0.0
    %1145 = vmatprep.subr.mxu0 0.0
    %1146 = vmatpush2.msra.mxu0 0.0
    %1147 = vmatprep.subr.mxu0 0.0
    %1148 = vmatpush2.msra.mxu0 0.0
    %1149 = vmatprep.subr.mxu0 0.0
    %1150 = vmatpush2.msra.mxu0 0.0
    %1151 = vmatprep.subr.mxu0 0.0
    %1152 = vmatpush2.msra.mxu0 0.0
    %1153 = vmatprep.subr.mxu0 0.0
    %1154 = vmatpush2.msra.mxu0 0.0
    %1155 = vmatprep.subr.mxu0 0.0
    %1156 = vmatpush2.msra.mxu0 0.0
    %1157 = vmatprep.subr.mxu0 0.0
    %1158 = vmatpush2.msra.mxu0 0.0
    %1159 = vmatprep.subr.mxu0 0.0
    %1160 = vmatpush2.msra.mxu0 0.0
    %1161 = vmatprep.subr.mxu0 0.0
    %1162 = vmatpush2.msra.mxu0 0.0
    %1163 = vmatprep.subr.mxu0 0.0
    %1164 = vmatpush2.msra.mxu0 0.0
    %1165 = vmatprep.subr.mxu0 0.0
    %1166 = vmatpush2.msra.mxu0 0.0
    %1167 = vmatprep.mubr.f32.mxu0 0.0
    %1168 = vmatmul.mubr.f32.gmra.mxu0 %v944
    %v1169 = vpop.f32.mrf.mxu0
    %v1170 = vadd.f32 %v882, %v1169
    %v1171 = vpop.f32.mrf.mxu0
    %v1172 = vadd.f32 %v886, %v1171
    %1173 = vmatprep.mubr.f32.mxu0 0.0
    %1174 = vmatmul.mubr.f32.gmra.mxu0 %v947
    %v1175 = vpop.f32.mrf.mxu0
    %v1176 = vadd.f32 %v882, %v1175
    %v1177 = vpop.f32.mrf.mxu0
    %v1178 = vadd.f32 %v886, %v1177
    %1179 = vdwg.mxu0
    %1180 = vmatprep.subr.mxu0 0.0
    %1181 = vmatpush1.msra.mxu0 0.0
    %1182 = vmatprep.subr.mxu0 0.0
    %1183 = vmatpush1.msra.mxu0 0.0
    %1184 = vmatprep.subr.mxu0 0.0
    %1185 = vmatpush1.msra.mxu0 0.0
    %1186 = vmatprep.subr.mxu0 0.0
    %1187 = vmatpush1.msra.mxu0 0.0
    %1188 = vmatprep.subr.mxu0 0.0
    %1189 = vmatpush1.msra.mxu0 0.0
    %1190 = vmatprep.subr.mxu0 0.0
    %1191 = vmatpush1.msra.mxu0 0.0
    %1192 = vmatprep.subr.mxu0 0.0
    %1193 = vmatpush1.msra.mxu0 0.0
    %1194 = vmatprep.subr.mxu0 0.0
    %1195 = vmatpush1.msra.mxu0 0.0
    %1196 = vmatprep.subr.mxu0 0.0
    %1197 = vmatpush1.msra.mxu0 0.0
    %1198 = vmatprep.subr.mxu0 0.0
    %1199 = vmatpush1.msra.mxu0 0.0
    %1200 = vmatprep.subr.mxu0 0.0
    %1201 = vmatpush1.msra.mxu0 0.0
    %1202 = vmatprep.subr.mxu0 0.0
    %1203 = vmatpush1.msra.mxu0 0.0
    %1204 = vmatprep.subr.mxu0 %v850
    %1205 = vmatpush1.msra.mxu0 %v849
    %1206 = vmatprep.subr.mxu0 %v834
    %1207 = vmatpush1.msra.mxu0 %v833
    %1208 = vmatprep.subr.mxu0 %v818
    %1209 = vmatpush1.msra.mxu0 %v817
    %1210 = vmatprep.subr.mxu0 %v802
    %1211 = vmatpush1.msra.mxu0 %v801
    %1212 = vmatprep.subr.mxu0 0.0
    %1213 = vmatpush2.msra.mxu0 0.0
    %1214 = vmatprep.subr.mxu0 0.0
    %1215 = vmatpush2.msra.mxu0 0.0
    %1216 = vmatprep.subr.mxu0 0.0
    %1217 = vmatpush2.msra.mxu0 0.0
    %1218 = vmatprep.subr.mxu0 0.0
    %1219 = vmatpush2.msra.mxu0 0.0
    %1220 = vmatprep.subr.mxu0 0.0
    %1221 = vmatpush2.msra.mxu0 0.0
    %1222 = vmatprep.subr.mxu0 0.0
    %1223 = vmatpush2.msra.mxu0 0.0
    %1224 = vmatprep.subr.mxu0 0.0
    %1225 = vmatpush2.msra.mxu0 0.0
    %1226 = vmatprep.subr.mxu0 0.0
    %1227 = vmatpush2.msra.mxu0 0.0
    %1228 = vmatprep.subr.mxu0 0.0
    %1229 = vmatpush2.msra.mxu0 0.0
    %1230 = vmatprep.subr.mxu0 0.0
    %1231 = vmatpush2.msra.mxu0 0.0
    %1232 = vmatprep.subr.mxu0 0.0
    %1233 = vmatpush2.msra.mxu0 0.0
    %1234 = vmatprep.subr.mxu0 0.0
    %1235 = vmatpush2.msra.mxu0 0.0
    %1236 = vmatprep.subr.mxu0 0.0
    %1237 = vmatpush2.msra.mxu0 0.0
    %1238 = vmatprep.subr.mxu0 0.0
    %1239 = vmatpush2.msra.mxu0 0.0
    %1240 = vmatprep.subr.mxu0 0.0
    %1241 = vmatpush2.msra.mxu0 0.0
    %1242 = vmatprep.subr.mxu0 0.0
    %1243 = vmatpush2.msra.mxu0 0.0
    %1244 = vmatprep.mubr.f32.mxu0 0.0
    %1245 = vmatmul.mubr.f32.gmra.mxu0 %v944
    %v1246 = vpop.f32.mrf.mxu0
    %v1247 = vadd.f32 %v890, %v1246
    %v1248 = vpop.f32.mrf.mxu0
    %v1249 = vadd.f32 %v894, %v1248
    %1250 = vmatprep.mubr.f32.mxu0 0.0
    %1251 = vmatmul.mubr.f32.gmra.mxu0 %v947
    %v1252 = vpop.f32.mrf.mxu0
    %v1253 = vadd.f32 %v890, %v1252
    %v1254 = vpop.f32.mrf.mxu0
    %v1255 = vadd.f32 %v894, %v1254
    %1256 = vdwg.mxu0
    %1257 = vmatprep.subr.mxu0 0.0
    %1258 = vmatpush1.msra.mxu0 0.0
    %1259 = vmatprep.subr.mxu0 0.0
    %1260 = vmatpush1.msra.mxu0 0.0
    %1261 = vmatprep.subr.mxu0 0.0
    %1262 = vmatpush1.msra.mxu0 0.0
    %1263 = vmatprep.subr.mxu0 0.0
    %1264 = vmatpush1.msra.mxu0 0.0
    %1265 = vmatprep.subr.mxu0 0.0
    %1266 = vmatpush1.msra.mxu0 0.0
    %1267 = vmatprep.subr.mxu0 0.0
    %1268 = vmatpush1.msra.mxu0 0.0
    %1269 = vmatprep.subr.mxu0 0.0
    %1270 = vmatpush1.msra.mxu0 0.0
    %1271 = vmatprep.subr.mxu0 0.0
    %1272 = vmatpush1.msra.mxu0 0.0
    %1273 = vmatprep.subr.mxu0 0.0
    %1274 = vmatpush1.msra.mxu0 0.0
    %1275 = vmatprep.subr.mxu0 0.0
    %1276 = vmatpush1.msra.mxu0 0.0
    %1277 = vmatprep.subr.mxu0 0.0
    %1278 = vmatpush1.msra.mxu0 0.0
    %1279 = vmatprep.subr.mxu0 0.0
    %1280 = vmatpush1.msra.mxu0 0.0
    %1281 = vmatprep.subr.mxu0 %v852
    %1282 = vmatpush1.msra.mxu0 %v851
    %1283 = vmatprep.subr.mxu0 %v836
    %1284 = vmatpush1.msra.mxu0 %v835
    %1285 = vmatprep.subr.mxu0 %v820
    %1286 = vmatpush1.msra.mxu0 %v819
    %1287 = vmatprep.subr.mxu0 %v804
    %1288 = vmatpush1.msra.mxu0 %v803
    %1289 = vmatprep.subr.mxu0 0.0
    %1290 = vmatpush2.msra.mxu0 0.0
    %1291 = vmatprep.subr.mxu0 0.0
    %1292 = vmatpush2.msra.mxu0 0.0
    %1293 = vmatprep.subr.mxu0 0.0
    %1294 = vmatpush2.msra.mxu0 0.0
    %1295 = vmatprep.subr.mxu0 0.0
    %1296 = vmatpush2.msra.mxu0 0.0
    %1297 = vmatprep.subr.mxu0 0.0
    %1298 = vmatpush2.msra.mxu0 0.0
    %1299 = vmatprep.subr.mxu0 0.0
    %1300 = vmatpush2.msra.mxu0 0.0
    %1301 = vmatprep.subr.mxu0 0.0
    %1302 = vmatpush2.msra.mxu0 0.0
    %1303 = vmatprep.subr.mxu0 0.0
    %1304 = vmatpush2.msra.mxu0 0.0
    %1305 = vmatprep.subr.mxu0 0.0
    %1306 = vmatpush2.msra.mxu0 0.0
    %1307 = vmatprep.subr.mxu0 0.0
    %1308 = vmatpush2.msra.mxu0 0.0
    %1309 = vmatprep.subr.mxu0 0.0
    %1310 = vmatpush2.msra.mxu0 0.0
    %1311 = vmatprep.subr.mxu0 0.0
    %1312 = vmatpush2.msra.mxu0 0.0
    %1313 = vmatprep.subr.mxu0 0.0
    %1314 = vmatpush2.msra.mxu0 0.0
    %1315 = vmatprep.subr.mxu0 0.0
    %1316 = vmatpush2.msra.mxu0 0.0
    %1317 = vmatprep.subr.mxu0 0.0
    %1318 = vmatpush2.msra.mxu0 0.0
    %1319 = vmatprep.subr.mxu0 0.0
    %1320 = vmatpush2.msra.mxu0 0.0
    %1321 = vmatprep.mubr.f32.mxu0 0.0
    %1322 = vmatmul.mubr.f32.gmra.mxu0 %v944
    %v1323 = vpop.f32.mrf.mxu0
    %v1324 = vadd.f32 %v898, %v1323
    %v1325 = vpop.f32.mrf.mxu0
    %v1326 = vadd.f32 %v902, %v1325
    %1327 = vmatprep.mubr.f32.mxu0 0.0
    %1328 = vmatmul.mubr.f32.gmra.mxu0 %v947
    %v1329 = vpop.f32.mrf.mxu0
    %v1330 = vadd.f32 %v898, %v1329
    %v1331 = vpop.f32.mrf.mxu0
    %v1332 = vadd.f32 %v902, %v1331
    %1333 = vdwg.mxu0
    %1334 = vmatprep.subr.mxu0 0.0
    %1335 = vmatpush1.msra.mxu0 0.0
    %1336 = vmatprep.subr.mxu0 0.0
    %1337 = vmatpush1.msra.mxu0 0.0
    %1338 = vmatprep.subr.mxu0 0.0
    %1339 = vmatpush1.msra.mxu0 0.0
    %1340 = vmatprep.subr.mxu0 0.0
    %1341 = vmatpush1.msra.mxu0 0.0
    %1342 = vmatprep.subr.mxu0 0.0
    %1343 = vmatpush1.msra.mxu0 0.0
    %1344 = vmatprep.subr.mxu0 0.0
    %1345 = vmatpush1.msra.mxu0 0.0
    %1346 = vmatprep.subr.mxu0 0.0
    %1347 = vmatpush1.msra.mxu0 0.0
    %1348 = vmatprep.subr.mxu0 0.0
    %1349 = vmatpush1.msra.mxu0 0.0
    %1350 = vmatprep.subr.mxu0 0.0
    %1351 = vmatpush1.msra.mxu0 0.0
    %1352 = vmatprep.subr.mxu0 0.0
    %1353 = vmatpush1.msra.mxu0 0.0
    %1354 = vmatprep.subr.mxu0 0.0
    %1355 = vmatpush1.msra.mxu0 0.0
    %1356 = vmatprep.subr.mxu0 0.0
    %1357 = vmatpush1.msra.mxu0 0.0
    %1358 = vmatprep.subr.mxu0 %v854
    %1359 = vmatpush1.msra.mxu0 %v853
    %1360 = vmatprep.subr.mxu0 %v838
    %1361 = vmatpush1.msra.mxu0 %v837
    %1362 = vmatprep.subr.mxu0 %v822
    %1363 = vmatpush1.msra.mxu0 %v821
    %1364 = vmatprep.subr.mxu0 %v806
    %1365 = vmatpush1.msra.mxu0 %v805
    %1366 = vmatprep.subr.mxu0 0.0
    %1367 = vmatpush2.msra.mxu0 0.0
    %1368 = vmatprep.subr.mxu0 0.0
    %1369 = vmatpush2.msra.mxu0 0.0
    %1370 = vmatprep.subr.mxu0 0.0
    %1371 = vmatpush2.msra.mxu0 0.0
    %1372 = vmatprep.subr.mxu0 0.0
    %1373 = vmatpush2.msra.mxu0 0.0
    %1374 = vmatprep.subr.mxu0 0.0
    %1375 = vmatpush2.msra.mxu0 0.0
    %1376 = vmatprep.subr.mxu0 0.0
    %1377 = vmatpush2.msra.mxu0 0.0
    %1378 = vmatprep.subr.mxu0 0.0
    %1379 = vmatpush2.msra.mxu0 0.0
    %1380 = vmatprep.subr.mxu0 0.0
    %1381 = vmatpush2.msra.mxu0 0.0
    %1382 = vmatprep.subr.mxu0 0.0
    %1383 = vmatpush2.msra.mxu0 0.0
    %1384 = vmatprep.subr.mxu0 0.0
    %1385 = vmatpush2.msra.mxu0 0.0
    %1386 = vmatprep.subr.mxu0 0.0
    %1387 = vmatpush2.msra.mxu0 0.0
    %1388 = vmatprep.subr.mxu0 0.0
    %1389 = vmatpush2.msra.mxu0 0.0
    %1390 = vmatprep.subr.mxu0 0.0
    %1391 = vmatpush2.msra.mxu0 0.0
    %1392 = vmatprep.subr.mxu0 0.0
    %1393 = vmatpush2.msra.mxu0 0.0
    %1394 = vmatprep.subr.mxu0 0.0
    %1395 = vmatpush2.msra.mxu0 0.0
    %1396 = vmatprep.subr.mxu0 0.0
    %1397 = vmatpush2.msra.mxu0 0.0
    %1398 = vmatprep.mubr.f32.mxu0 0.0
    %1399 = vmatmul.mubr.f32.gmra.mxu0 %v944
    %v1400 = vpop.f32.mrf.mxu0
    %v1401 = vadd.f32 %v906, %v1400
    %v1402 = vpop.f32.mrf.mxu0
    %v1403 = vadd.f32 %v910, %v1402
    %1404 = vmatprep.mubr.f32.mxu0 0.0
    %1405 = vmatmul.mubr.f32.gmra.mxu0 %v947
    %v1406 = vpop.f32.mrf.mxu0
    %v1407 = vadd.f32 %v906, %v1406
    %v1408 = vpop.f32.mrf.mxu0
    %v1409 = vadd.f32 %v910, %v1408
    %1410 = vdwg.mxu0
    %1411 = vmatprep.subr.mxu0 0.0
    %1412 = vmatpush1.msra.mxu0 0.0
    %1413 = vmatprep.subr.mxu0 0.0
    %1414 = vmatpush1.msra.mxu0 0.0
    %1415 = vmatprep.subr.mxu0 0.0
    %1416 = vmatpush1.msra.mxu0 0.0
    %1417 = vmatprep.subr.mxu0 0.0
    %1418 = vmatpush1.msra.mxu0 0.0
    %1419 = vmatprep.subr.mxu0 0.0
    %1420 = vmatpush1.msra.mxu0 0.0
    %1421 = vmatprep.subr.mxu0 0.0
    %1422 = vmatpush1.msra.mxu0 0.0
    %1423 = vmatprep.subr.mxu0 0.0
    %1424 = vmatpush1.msra.mxu0 0.0
    %1425 = vmatprep.subr.mxu0 0.0
    %1426 = vmatpush1.msra.mxu0 0.0
    %1427 = vmatprep.subr.mxu0 0.0
    %1428 = vmatpush1.msra.mxu0 0.0
    %1429 = vmatprep.subr.mxu0 0.0
    %1430 = vmatpush1.msra.mxu0 0.0
    %1431 = vmatprep.subr.mxu0 0.0
    %1432 = vmatpush1.msra.mxu0 0.0
    %1433 = vmatprep.subr.mxu0 0.0
    %1434 = vmatpush1.msra.mxu0 0.0
    %1435 = vmatprep.subr.mxu0 %v856
    %1436 = vmatpush1.msra.mxu0 %v855
    %1437 = vmatprep.subr.mxu0 %v840
    %1438 = vmatpush1.msra.mxu0 %v839
    %1439 = vmatprep.subr.mxu0 %v824
    %1440 = vmatpush1.msra.mxu0 %v823
    %1441 = vmatprep.subr.mxu0 %v808
    %1442 = vmatpush1.msra.mxu0 %v807
    %1443 = vmatprep.subr.mxu0 0.0
    %1444 = vmatpush2.msra.mxu0 0.0
    %1445 = vmatprep.subr.mxu0 0.0
    %1446 = vmatpush2.msra.mxu0 0.0
    %1447 = vmatprep.subr.mxu0 0.0
    %1448 = vmatpush2.msra.mxu0 0.0
    %1449 = vmatprep.subr.mxu0 0.0
    %1450 = vmatpush2.msra.mxu0 0.0
    %1451 = vmatprep.subr.mxu0 0.0
    %1452 = vmatpush2.msra.mxu0 0.0
    %1453 = vmatprep.subr.mxu0 0.0
    %1454 = vmatpush2.msra.mxu0 0.0
    %1455 = vmatprep.subr.mxu0 0.0
    %1456 = vmatpush2.msra.mxu0 0.0
    %1457 = vmatprep.subr.mxu0 0.0
    %1458 = vmatpush2.msra.mxu0 0.0
    %1459 = vmatprep.subr.mxu0 0.0
    %1460 = vmatpush2.msra.mxu0 0.0
    %1461 = vmatprep.subr.mxu0 0.0
    %1462 = vmatpush2.msra.mxu0 0.0
    %1463 = vmatprep.subr.mxu0 0.0
    %1464 = vmatpush2.msra.mxu0 0.0
    %1465 = vmatprep.subr.mxu0 0.0
    %1466 = vmatpush2.msra.mxu0 0.0
    %1467 = vmatprep.subr.mxu0 0.0
    %1468 = vmatpush2.msra.mxu0 0.0
    %1469 = vmatprep.subr.mxu0 0.0
    %1470 = vmatpush2.msra.mxu0 0.0
    %1471 = vmatprep.subr.mxu0 0.0
    %1472 = vmatpush2.msra.mxu0 0.0
    %1473 = vmatprep.subr.mxu0 0.0
    %1474 = vmatpush2.msra.mxu0 0.0
    %1475 = vmatprep.mubr.f32.mxu0 0.0
    %1476 = vmatmul.mubr.f32.gmra.mxu0 %v944
    %v1477 = vpop.f32.mrf.mxu0
    %v1478 = vadd.f32 %v914, %v1477
    %v1479 = vpop.f32.mrf.mxu0
    %v1480 = vadd.f32 %v918, %v1479
    %1481 = vmatprep.mubr.f32.mxu0 0.0
    %1482 = vmatmul.mubr.f32.gmra.mxu0 %v947
    %v1483 = vpop.f32.mrf.mxu0
    %v1484 = vadd.f32 %v914, %v1483
    %v1485 = vpop.f32.mrf.mxu0
    %v1486 = vadd.f32 %v918, %v1485
    %1487 = vdwg.mxu0
    %1488 = vmatprep.subr.mxu0 0.0
    %1489 = vmatpush1.msra.mxu0 0.0
    %1490 = vmatprep.subr.mxu0 0.0
    %1491 = vmatpush1.msra.mxu0 0.0
    %1492 = vmatprep.subr.mxu0 0.0
    %1493 = vmatpush1.msra.mxu0 0.0
    %1494 = vmatprep.subr.mxu0 0.0
    %1495 = vmatpush1.msra.mxu0 0.0
    %1496 = vmatprep.subr.mxu0 0.0
    %1497 = vmatpush1.msra.mxu0 0.0
    %1498 = vmatprep.subr.mxu0 0.0
    %1499 = vmatpush1.msra.mxu0 0.0
    %1500 = vmatprep.subr.mxu0 0.0
    %1501 = vmatpush1.msra.mxu0 0.0
    %1502 = vmatprep.subr.mxu0 0.0
    %1503 = vmatpush1.msra.mxu0 0.0
    %1504 = vmatprep.subr.mxu0 0.0
    %1505 = vmatpush1.msra.mxu0 0.0
    %1506 = vmatprep.subr.mxu0 0.0
    %1507 = vmatpush1.msra.mxu0 0.0
    %1508 = vmatprep.subr.mxu0 0.0
    %1509 = vmatpush1.msra.mxu0 0.0
    %1510 = vmatprep.subr.mxu0 0.0
    %1511 = vmatpush1.msra.mxu0 0.0
    %1512 = vmatprep.subr.mxu0 %v858
    %1513 = vmatpush1.msra.mxu0 %v857
    %1514 = vmatprep.subr.mxu0 %v842
    %1515 = vmatpush1.msra.mxu0 %v841
    %1516 = vmatprep.subr.mxu0 %v826
    %1517 = vmatpush1.msra.mxu0 %v825
    %1518 = vmatprep.subr.mxu0 %v810
    %1519 = vmatpush1.msra.mxu0 %v809
    %1520 = vmatprep.subr.mxu0 0.0
    %1521 = vmatpush2.msra.mxu0 0.0
    %1522 = vmatprep.subr.mxu0 0.0
    %1523 = vmatpush2.msra.mxu0 0.0
    %1524 = vmatprep.subr.mxu0 0.0
    %1525 = vmatpush2.msra.mxu0 0.0
    %1526 = vmatprep.subr.mxu0 0.0
    %1527 = vmatpush2.msra.mxu0 0.0
    %1528 = vmatprep.subr.mxu0 0.0
    %1529 = vmatpush2.msra.mxu0 0.0
    %1530 = vmatprep.subr.mxu0 0.0
    %1531 = vmatpush2.msra.mxu0 0.0
    %1532 = vmatprep.subr.mxu0 0.0
    %1533 = vmatpush2.msra.mxu0 0.0
    %1534 = vmatprep.subr.mxu0 0.0
    %1535 = vmatpush2.msra.mxu0 0.0
    %1536 = vmatprep.subr.mxu0 0.0
    %1537 = vmatpush2.msra.mxu0 0.0
    %1538 = vmatprep.subr.mxu0 0.0
    %1539 = vmatpush2.msra.mxu0 0.0
    %1540 = vmatprep.subr.mxu0 0.0
    %1541 = vmatpush2.msra.mxu0 0.0
    %1542 = vmatprep.subr.mxu0 0.0
    %1543 = vmatpush2.msra.mxu0 0.0
    %1544 = vmatprep.subr.mxu0 0.0
    %1545 = vmatpush2.msra.mxu0 0.0
    %1546 = vmatprep.subr.mxu0 0.0
    %1547 = vmatpush2.msra.mxu0 0.0
    %1548 = vmatprep.subr.mxu0 0.0
    %1549 = vmatpush2.msra.mxu0 0.0
    %1550 = vmatprep.subr.mxu0 0.0
    %1551 = vmatpush2.msra.mxu0 0.0
    %1552 = vmatprep.mubr.f32.mxu0 0.0
    %1553 = vmatmul.mubr.f32.gmra.mxu0 %v944
    %v1554 = vpop.f32.mrf.mxu0
    %v1555 = vadd.f32 %v922, %v1554
    %v1556 = vpop.f32.mrf.mxu0
    %v1557 = vadd.f32 %v926, %v1556
    %1558 = vmatprep.mubr.f32.mxu0 0.0
    %1559 = vmatmul.mubr.f32.gmra.mxu0 %v947
    %v1560 = vpop.f32.mrf.mxu0
    %v1561 = vadd.f32 %v922, %v1560
    %v1562 = vpop.f32.mrf.mxu0
    %v1563 = vadd.f32 %v926, %v1562
    %1564 = vdwg.mxu0
    %v1565 = vmax.f32 %v1016, 0.0
    %v1566 = vmax.f32 %v1018, 0.0
    %v1567 = vmax.f32 %v1093, 0.0
    %v1568 = vmax.f32 %v1095, 0.0
    %v1569 = vmax.f32 %v1170, 0.0
    %v1570 = vmax.f32 %v1172, 0.0
    %v1571 = vmax.f32 %v1247, 0.0
    %v1572 = vmax.f32 %v1249, 0.0
    %v1573 = vmax.f32 %v1324, 0.0
    %v1574 = vmax.f32 %v1326, 0.0
    %v1575 = vmax.f32 %v1401, 0.0
    %v1576 = vmax.f32 %v1403, 0.0
    %v1577 = vmax.f32 %v1478, 0.0
    %v1578 = vmax.f32 %v1480, 0.0
    %v1579 = vmax.f32 %v1555, 0.0
    %v1580 = vmax.f32 %v1557, 0.0
    %v1581 = vmax.f32 %v1022, 0.0
    %v1582 = vmax.f32 %v1024, 0.0
    %v1583 = vmax.f32 %v1099, 0.0
    %v1584 = vmax.f32 %v1101, 0.0
    %v1585 = vmax.f32 %v1176, 0.0
    %v1586 = vmax.f32 %v1178, 0.0
    %v1587 = vmax.f32 %v1253, 0.0
    %v1588 = vmax.f32 %v1255, 0.0
    %v1589 = vmax.f32 %v1330, 0.0
    %v1590 = vmax.f32 %v1332, 0.0
    %v1591 = vmax.f32 %v1407, 0.0
    %v1592 = vmax.f32 %v1409, 0.0
    %v1593 = vmax.f32 %v1484, 0.0
    %v1594 = vmax.f32 %v1486, 0.0
    %v1595 = vmax.f32 %v1561, 0.0
    %v1596 = vmax.f32 %v1563, 0.0
    %v1597 = vld [vmem:[%s13] sm:$0xff]
    %v1598 = vld [vmem:[%s13 + $0x8] sm:$0xff]
    %v1599 = vld [vmem:[%s13 + $0x10] sm:$0xff]
    %v1600 = vld [vmem:[%s13 + $0x18] sm:$0xff]
    %v1601 = vld [vmem:[%s13 + $0x20] sm:$0xff]
    %v1602 = vld [vmem:[%s13 + $0x28] sm:$0xff]
    %v1603 = vld [vmem:[%s13 + $0x30] sm:$0xff]
    %v1604 = vld [vmem:[%s13 + $0x38] sm:$0xff]
    %v1605 = vld [vmem:[%s13 + $0x40] sm:$0xff]
    %v1606 = vld [vmem:[%s13 + $0x48] sm:$0xff]
    %v1607 = vld [vmem:[%s13 + $0x50] sm:$0xff]
    %v1608 = vld [vmem:[%s13 + $0x58] sm:$0xff]
    %v1609 = vld [vmem:[%s13 + $0x60] sm:$0xff]
    %v1610 = vld [vmem:[%s13 + $0x68] sm:$0xff]
    %v1611 = vld [vmem:[%s13 + $0x70] sm:$0xff]
    %v1612 = vld [vmem:[%s13 + $0x78] sm:$0xff]
    %v1613 = vld [vmem:[%s13 + $0x80] sm:$0xff]
    %v1614 = vld [vmem:[%s13 + $0x88] sm:$0xff]
    %v1615 = vld [vmem:[%s13 + $0x90] sm:$0xff]
    %v1616 = vld [vmem:[%s13 + $0x98] sm:$0xff]
    %v1617 = vld [vmem:[%s13 + $0xa0] sm:$0xff]
    %v1618 = vld [vmem:[%s13 + $0xa8] sm:$0xff]
    %v1619 = vld [vmem:[%s13 + $0xb0] sm:$0xff]
    %v1620 = vld [vmem:[%s13 + $0xb8] sm:$0xff]
    %v1621 = vld [vmem:[%s13 + $0xc0] sm:$0xff]
    %v1622 = vld [vmem:[%s13 + $0xc8] sm:$0xff]
    %v1623 = vld [vmem:[%s13 + $0xd0] sm:$0xff]
    %v1624 = vld [vmem:[%s13 + $0xd8] sm:$0xff]
    %v1625 = vld [vmem:[%s13 + $0xe0] sm:$0xff]
    %v1626 = vld [vmem:[%s13 + $0xe8] sm:$0xff]
    %v1627 = vld [vmem:[%s13 + $0xf0] sm:$0xff]
    %v1628 = vld [vmem:[%s13 + $0xf8] sm:$0xff]
    %v1629 = vld [vmem:[%s13 + $0x100] sm:$0xff]
    %v1630 = vld [vmem:[%s13 + $0x108] sm:$0xff]
    %v1631 = vld [vmem:[%s13 + $0x110] sm:$0xff]
    %v1632 = vld [vmem:[%s13 + $0x118] sm:$0xff]
    %v1633 = vld [vmem:[%s13 + $0x120] sm:$0xff]
    %v1634 = vld [vmem:[%s13 + $0x128] sm:$0xff]
    %v1635 = vld [vmem:[%s13 + $0x130] sm:$0xff]
    %v1636 = vld [vmem:[%s13 + $0x138] sm:$0xff]
    %v1637 = vld [vmem:[%s13 + $0x140] sm:$0xff]
    %v1638 = vld [vmem:[%s13 + $0x148] sm:$0xff]
    %v1639 = vld [vmem:[%s13 + $0x150] sm:$0xff]
    %v1640 = vld [vmem:[%s13 + $0x158] sm:$0xff]
    %v1641 = vld [vmem:[%s13 + $0x160] sm:$0xff]
    %v1642 = vld [vmem:[%s13 + $0x168] sm:$0xff]
    %v1643 = vld [vmem:[%s13 + $0x170] sm:$0xff]
    %v1644 = vld [vmem:[%s13 + $0x178] sm:$0xff]
    %v1645 = vld [vmem:[%s13 + $0x180] sm:$0xff]
    %v1646 = vld [vmem:[%s13 + $0x188] sm:$0xff]
    %v1647 = vld [vmem:[%s13 + $0x190] sm:$0xff]
    %v1648 = vld [vmem:[%s13 + $0x198] sm:$0xff]
    %v1649 = vld [vmem:[%s13 + $0x1a0] sm:$0xff]
    %v1650 = vld [vmem:[%s13 + $0x1a8] sm:$0xff]
    %v1651 = vld [vmem:[%s13 + $0x1b0] sm:$0xff]
    %v1652 = vld [vmem:[%s13 + $0x1b8] sm:$0xff]
    %v1653 = vld [vmem:[%s13 + $0x1c0] sm:$0xff]
    %v1654 = vld [vmem:[%s13 + $0x1c8] sm:$0xff]
    %v1655 = vld [vmem:[%s13 + $0x1d0] sm:$0xff]
    %v1656 = vld [vmem:[%s13 + $0x1d8] sm:$0xff]
    %v1657 = vld [vmem:[%s13 + $0x1e0] sm:$0xff]
    %v1658 = vld [vmem:[%s13 + $0x1e8] sm:$0xff]
    %v1659 = vld [vmem:[%s13 + $0x1f0] sm:$0xff]
    %v1660 = vld [vmem:[%s13 + $0x1f8] sm:$0xff]
    %v1661 = vld [vmem:[%s13 + $0x200] sm:$0xff]
    %v1662 = vld [vmem:[%s13 + $0x208] sm:$0xff]
    %v1663 = vld [vmem:[%s13 + $0x210] sm:$0xff]
    %v1664 = vld [vmem:[%s13 + $0x218] sm:$0xff]
    %v1665 = vld [vmem:[%s13 + $0x220] sm:$0xff]
    %v1666 = vld [vmem:[%s13 + $0x228] sm:$0xff]
    %v1667 = vld [vmem:[%s13 + $0x230] sm:$0xff]
    %v1668 = vld [vmem:[%s13 + $0x238] sm:$0xff]
    %v1669 = vld [vmem:[%s13 + $0x240] sm:$0xff]
    %v1670 = vld [vmem:[%s13 + $0x248] sm:$0xff]
    %v1671 = vld [vmem:[%s13 + $0x250] sm:$0xff]
    %v1672 = vld [vmem:[%s13 + $0x258] sm:$0xff]
    %v1673 = vld [vmem:[%s13 + $0x260] sm:$0xff]
    %v1674 = vld [vmem:[%s13 + $0x268] sm:$0xff]
    %v1675 = vld [vmem:[%s13 + $0x270] sm:$0xff]
    %v1676 = vld [vmem:[%s13 + $0x278] sm:$0xff]
    %v1677 = vld [vmem:[%s13 + $0x280] sm:$0xff]
    %v1678 = vld [vmem:[%s13 + $0x288] sm:$0xff]
    %v1679 = vld [vmem:[%s13 + $0x290] sm:$0xff]
    %v1680 = vld [vmem:[%s13 + $0x298] sm:$0xff]
    %v1681 = vld [vmem:[%s13 + $0x2a0] sm:$0xff]
    %v1682 = vld [vmem:[%s13 + $0x2a8] sm:$0xff]
    %v1683 = vld [vmem:[%s13 + $0x2b0] sm:$0xff]
    %v1684 = vld [vmem:[%s13 + $0x2b8] sm:$0xff]
    %v1685 = vld [vmem:[%s13 + $0x2c0] sm:$0xff]
    %v1686 = vld [vmem:[%s13 + $0x2c8] sm:$0xff]
    %v1687 = vld [vmem:[%s13 + $0x2d0] sm:$0xff]
    %v1688 = vld [vmem:[%s13 + $0x2d8] sm:$0xff]
    %v1689 = vld [vmem:[%s13 + $0x2e0] sm:$0xff]
    %v1690 = vld [vmem:[%s13 + $0x2e8] sm:$0xff]
    %v1691 = vld [vmem:[%s13 + $0x2f0] sm:$0xff]
    %v1692 = vld [vmem:[%s13 + $0x2f8] sm:$0xff]
    %v1693 = vld [vmem:[%s13 + $0x300] sm:$0xff]
    %v1694 = vld [vmem:[%s13 + $0x308] sm:$0xff]
    %v1695 = vld [vmem:[%s13 + $0x310] sm:$0xff]
    %v1696 = vld [vmem:[%s13 + $0x318] sm:$0xff]
    %v1697 = vld [vmem:[%s13 + $0x320] sm:$0xff]
    %v1698 = vld [vmem:[%s13 + $0x328] sm:$0xff]
    %v1699 = vld [vmem:[%s13 + $0x330] sm:$0xff]
    %v1700 = vld [vmem:[%s13 + $0x338] sm:$0xff]
    %v1701 = vld [vmem:[%s13 + $0x340] sm:$0xff]
    %v1702 = vld [vmem:[%s13 + $0x348] sm:$0xff]
    %v1703 = vld [vmem:[%s13 + $0x350] sm:$0xff]
    %v1704 = vld [vmem:[%s13 + $0x358] sm:$0xff]
    %v1705 = vld [vmem:[%s13 + $0x360] sm:$0xff]
    %v1706 = vld [vmem:[%s13 + $0x368] sm:$0xff]
    %v1707 = vld [vmem:[%s13 + $0x370] sm:$0xff]
    %v1708 = vld [vmem:[%s13 + $0x378] sm:$0xff]
    %v1709 = vld [vmem:[%s13 + $0x380] sm:$0xff]
    %v1710 = vld [vmem:[%s13 + $0x388] sm:$0xff]
    %v1711 = vld [vmem:[%s13 + $0x390] sm:$0xff]
    %v1712 = vld [vmem:[%s13 + $0x398] sm:$0xff]
    %v1713 = vld [vmem:[%s13 + $0x3a0] sm:$0xff]
    %v1714 = vld [vmem:[%s13 + $0x3a8] sm:$0xff]
    %v1715 = vld [vmem:[%s13 + $0x3b0] sm:$0xff]
    %v1716 = vld [vmem:[%s13 + $0x3b8] sm:$0xff]
    %v1717 = vld [vmem:[%s13 + $0x3c0] sm:$0xff]
    %v1718 = vld [vmem:[%s13 + $0x3c8] sm:$0xff]
    %v1719 = vld [vmem:[%s13 + $0x3d0] sm:$0xff]
    %v1720 = vld [vmem:[%s13 + $0x3d8] sm:$0xff]
    %v1721 = vld [vmem:[%s13 + $0x3e0] sm:$0xff]
    %v1722 = vld [vmem:[%s13 + $0x3e8] sm:$0xff]
    %v1723 = vld [vmem:[%s13 + $0x3f0] sm:$0xff]
    %v1724 = vld [vmem:[%s13 + $0x3f8] sm:$0xff]
    %v1725 = vld [vmem:[%s13 + $0x400] sm:$0xff]
    %v1726 = vld [vmem:[%s13 + $0x408] sm:$0xff]
    %v1727 = vld [vmem:[%s13 + $0x410] sm:$0xff]
    %v1728 = vld [vmem:[%s13 + $0x418] sm:$0xff]
    %v1729 = vld [vmem:[%s13 + $0x420] sm:$0xff]
    %v1730 = vld [vmem:[%s13 + $0x428] sm:$0xff]
    %v1731 = vld [vmem:[%s13 + $0x430] sm:$0xff]
    %v1732 = vld [vmem:[%s13 + $0x438] sm:$0xff]
    %v1733 = vld [vmem:[%s13 + $0x440] sm:$0xff]
    %v1734 = vld [vmem:[%s13 + $0x448] sm:$0xff]
    %v1735 = vld [vmem:[%s13 + $0x450] sm:$0xff]
    %v1736 = vld [vmem:[%s13 + $0x458] sm:$0xff]
    %v1737 = vld [vmem:[%s13 + $0x460] sm:$0xff]
    %v1738 = vld [vmem:[%s13 + $0x468] sm:$0xff]
    %v1739 = vld [vmem:[%s13 + $0x470] sm:$0xff]
    %v1740 = vld [vmem:[%s13 + $0x478] sm:$0xff]
    %v1741 = vld [vmem:[%s13 + $0x480] sm:$0xff]
    %v1742 = vld [vmem:[%s13 + $0x488] sm:$0xff]
    %v1743 = vld [vmem:[%s13 + $0x490] sm:$0xff]
    %v1744 = vld [vmem:[%s13 + $0x498] sm:$0xff]
    %v1745 = vld [vmem:[%s13 + $0x4a0] sm:$0xff]
    %v1746 = vld [vmem:[%s13 + $0x4a8] sm:$0xff]
    %v1747 = vld [vmem:[%s13 + $0x4b0] sm:$0xff]
    %v1748 = vld [vmem:[%s13 + $0x4b8] sm:$0xff]
    %v1749 = vld [vmem:[%s13 + $0x4c0] sm:$0xff]
    %v1750 = vld [vmem:[%s13 + $0x4c8] sm:$0xff]
    %v1751 = vld [vmem:[%s13 + $0x4d0] sm:$0xff]
    %v1752 = vld [vmem:[%s13 + $0x4d8] sm:$0xff]
    %v1753 = vld [vmem:[%s13 + $0x4e0] sm:$0xff]
    %v1754 = vld [vmem:[%s13 + $0x4e8] sm:$0xff]
    %v1755 = vld [vmem:[%s13 + $0x4f0] sm:$0xff]
    %v1756 = vld [vmem:[%s13 + $0x4f8] sm:$0xff]
    %v1757 = vld [vmem:[%s13 + $0x500] sm:$0xff]
    %v1758 = vld [vmem:[%s13 + $0x508] sm:$0xff]
    %v1759 = vld [vmem:[%s13 + $0x510] sm:$0xff]
    %v1760 = vld [vmem:[%s13 + $0x518] sm:$0xff]
    %v1761 = vld [vmem:[%s13 + $0x520] sm:$0xff]
    %v1762 = vld [vmem:[%s13 + $0x528] sm:$0xff]
    %v1763 = vld [vmem:[%s13 + $0x530] sm:$0xff]
    %v1764 = vld [vmem:[%s13 + $0x538] sm:$0xff]
    %v1765 = vld [vmem:[%s13 + $0x540] sm:$0xff]
    %v1766 = vld [vmem:[%s13 + $0x548] sm:$0xff]
    %v1767 = vld [vmem:[%s13 + $0x550] sm:$0xff]
    %v1768 = vld [vmem:[%s13 + $0x558] sm:$0xff]
    %v1769 = vld [vmem:[%s13 + $0x560] sm:$0xff]
    %v1770 = vld [vmem:[%s13 + $0x568] sm:$0xff]
    %v1771 = vld [vmem:[%s13 + $0x570] sm:$0xff]
    %v1772 = vld [vmem:[%s13 + $0x578] sm:$0xff]
    %v1773 = vld [vmem:[%s13 + $0x580] sm:$0xff]
    %v1774 = vld [vmem:[%s13 + $0x588] sm:$0xff]
    %v1775 = vld [vmem:[%s13 + $0x590] sm:$0xff]
    %v1776 = vld [vmem:[%s13 + $0x598] sm:$0xff]
    %v1777 = vld [vmem:[%s13 + $0x5a0] sm:$0xff]
    %v1778 = vld [vmem:[%s13 + $0x5a8] sm:$0xff]
    %v1779 = vld [vmem:[%s13 + $0x5b0] sm:$0xff]
    %v1780 = vld [vmem:[%s13 + $0x5b8] sm:$0xff]
    %v1781 = vld [vmem:[%s13 + $0x5c0] sm:$0xff]
    %v1782 = vld [vmem:[%s13 + $0x5c8] sm:$0xff]
    %v1783 = vld [vmem:[%s13 + $0x5d0] sm:$0xff]
    %v1784 = vld [vmem:[%s13 + $0x5d8] sm:$0xff]
    %v1785 = vld [vmem:[%s13 + $0x5e0] sm:$0xff]
    %v1786 = vld [vmem:[%s13 + $0x5e8] sm:$0xff]
    %v1787 = vld [vmem:[%s13 + $0x5f0] sm:$0xff]
    %v1788 = vld [vmem:[%s13 + $0x5f8] sm:$0xff]
    %v1789 = vld [vmem:[%s13 + $0x600] sm:$0xff]
    %v1790 = vld [vmem:[%s13 + $0x608] sm:$0xff]
    %v1791 = vld [vmem:[%s13 + $0x610] sm:$0xff]
    %v1792 = vld [vmem:[%s13 + $0x618] sm:$0xff]
    %v1793 = vld [vmem:[%s13 + $0x620] sm:$0xff]
    %v1794 = vld [vmem:[%s13 + $0x628] sm:$0xff]
    %v1795 = vld [vmem:[%s13 + $0x630] sm:$0xff]
    %v1796 = vld [vmem:[%s13 + $0x638] sm:$0xff]
    %v1797 = vld [vmem:[%s13 + $0x640] sm:$0xff]
    %v1798 = vld [vmem:[%s13 + $0x648] sm:$0xff]
    %v1799 = vld [vmem:[%s13 + $0x650] sm:$0xff]
    %v1800 = vld [vmem:[%s13 + $0x658] sm:$0xff]
    %v1801 = vld [vmem:[%s13 + $0x660] sm:$0xff]
    %v1802 = vld [vmem:[%s13 + $0x668] sm:$0xff]
    %v1803 = vld [vmem:[%s13 + $0x670] sm:$0xff]
    %v1804 = vld [vmem:[%s13 + $0x678] sm:$0xff]
    %v1805 = vld [vmem:[%s13 + $0x680] sm:$0xff]
    %v1806 = vld [vmem:[%s13 + $0x688] sm:$0xff]
    %v1807 = vld [vmem:[%s13 + $0x690] sm:$0xff]
    %v1808 = vld [vmem:[%s13 + $0x698] sm:$0xff]
    %v1809 = vld [vmem:[%s13 + $0x6a0] sm:$0xff]
    %v1810 = vld [vmem:[%s13 + $0x6a8] sm:$0xff]
    %v1811 = vld [vmem:[%s13 + $0x6b0] sm:$0xff]
    %v1812 = vld [vmem:[%s13 + $0x6b8] sm:$0xff]
    %v1813 = vld [vmem:[%s13 + $0x6c0] sm:$0xff]
    %v1814 = vld [vmem:[%s13 + $0x6c8] sm:$0xff]
    %v1815 = vld [vmem:[%s13 + $0x6d0] sm:$0xff]
    %v1816 = vld [vmem:[%s13 + $0x6d8] sm:$0xff]
    %v1817 = vld [vmem:[%s13 + $0x6e0] sm:$0xff]
    %v1818 = vld [vmem:[%s13 + $0x6e8] sm:$0xff]
    %v1819 = vld [vmem:[%s13 + $0x6f0] sm:$0xff]
    %v1820 = vld [vmem:[%s13 + $0x6f8] sm:$0xff]
    %v1821 = vld [vmem:[%s13 + $0x700] sm:$0xff]
    %v1822 = vld [vmem:[%s13 + $0x708] sm:$0xff]
    %v1823 = vld [vmem:[%s13 + $0x710] sm:$0xff]
    %v1824 = vld [vmem:[%s13 + $0x718] sm:$0xff]
    %v1825 = vld [vmem:[%s13 + $0x720] sm:$0xff]
    %v1826 = vld [vmem:[%s13 + $0x728] sm:$0xff]
    %v1827 = vld [vmem:[%s13 + $0x730] sm:$0xff]
    %v1828 = vld [vmem:[%s13 + $0x738] sm:$0xff]
    %v1829 = vld [vmem:[%s13 + $0x740] sm:$0xff]
    %v1830 = vld [vmem:[%s13 + $0x748] sm:$0xff]
    %v1831 = vld [vmem:[%s13 + $0x750] sm:$0xff]
    %v1832 = vld [vmem:[%s13 + $0x758] sm:$0xff]
    %v1833 = vld [vmem:[%s13 + $0x760] sm:$0xff]
    %v1834 = vld [vmem:[%s13 + $0x768] sm:$0xff]
    %v1835 = vld [vmem:[%s13 + $0x770] sm:$0xff]
    %v1836 = vld [vmem:[%s13 + $0x778] sm:$0xff]
    %v1837 = vld [vmem:[%s13 + $0x780] sm:$0xff]
    %v1838 = vld [vmem:[%s13 + $0x788] sm:$0xff]
    %v1839 = vld [vmem:[%s13 + $0x790] sm:$0xff]
    %v1840 = vld [vmem:[%s13 + $0x798] sm:$0xff]
    %v1841 = vld [vmem:[%s13 + $0x7a0] sm:$0xff]
    %v1842 = vld [vmem:[%s13 + $0x7a8] sm:$0xff]
    %v1843 = vld [vmem:[%s13 + $0x7b0] sm:$0xff]
    %v1844 = vld [vmem:[%s13 + $0x7b8] sm:$0xff]
    %v1845 = vld [vmem:[%s13 + $0x7c0] sm:$0xff]
    %v1846 = vld [vmem:[%s13 + $0x7c8] sm:$0xff]
    %v1847 = vld [vmem:[%s13 + $0x7d0] sm:$0xff]
    %v1848 = vld [vmem:[%s13 + $0x7d8] sm:$0xff]
    %v1849 = vld [vmem:[%s13 + $0x7e0] sm:$0xff]
    %v1850 = vld [vmem:[%s13 + $0x7e8] sm:$0xff]
    %v1851 = vld [vmem:[%s13 + $0x7f0] sm:$0xff]
    %v1852 = vld [vmem:[%s13 + $0x7f8] sm:$0xff]
    %v1853 = vld [vmem:[%s14] sm:$0x1]
    %v1855 = vlaneseq
    %v1856 = vshrl.u32 %v1855, 7
    %v1857 = vsub.s32 0, %v1856
    %v1858 = vrot.slane %v1853, %v1857
    %1860 = vmatprep.subr.mxu0 0.0
    %1861 = vmatpush1.msra.mxu0 %v1612
    %1862 = vmatprep.subr.mxu0 0.0
    %1863 = vmatpush1.msra.mxu0 %v1611
    %1864 = vmatprep.subr.mxu0 0.0
    %1865 = vmatpush1.msra.mxu0 %v1610
    %1866 = vmatprep.subr.mxu0 0.0
    %1867 = vmatpush1.msra.mxu0 %v1609
    %1868 = vmatprep.subr.mxu0 0.0
    %1869 = vmatpush1.msra.mxu0 %v1608
    %1870 = vmatprep.subr.mxu0 0.0
    %1871 = vmatpush1.msra.mxu0 %v1607
    %1872 = vmatprep.subr.mxu0 0.0
    %1873 = vmatpush1.msra.mxu0 %v1606
    %1874 = vmatprep.subr.mxu0 0.0
    %1875 = vmatpush1.msra.mxu0 %v1605
    %1876 = vmatprep.subr.mxu0 0.0
    %1877 = vmatpush1.msra.mxu0 %v1604
    %1878 = vmatprep.subr.mxu0 0.0
    %1879 = vmatpush1.msra.mxu0 %v1603
    %1880 = vmatprep.subr.mxu0 0.0
    %1881 = vmatpush1.msra.mxu0 %v1602
    %1882 = vmatprep.subr.mxu0 0.0
    %1883 = vmatpush1.msra.mxu0 %v1601
    %1884 = vmatprep.subr.mxu0 0.0
    %1885 = vmatpush1.msra.mxu0 %v1600
    %1886 = vmatprep.subr.mxu0 0.0
    %1887 = vmatpush1.msra.mxu0 %v1599
    %1888 = vmatprep.subr.mxu0 0.0
    %1889 = vmatpush1.msra.mxu0 %v1598
    %1890 = vmatprep.subr.mxu0 0.0
    %1891 = vmatpush1.msra.mxu0 %v1597
    %1892 = vmatprep.subr.mxu0 0.0
    %1893 = vmatpush2.msra.mxu0 %v1628
    %1894 = vmatprep.subr.mxu0 0.0
    %1895 = vmatpush2.msra.mxu0 %v1627
    %1896 = vmatprep.subr.mxu0 0.0
    %1897 = vmatpush2.msra.mxu0 %v1626
    %1898 = vmatprep.subr.mxu0 0.0
    %1899 = vmatpush2.msra.mxu0 %v1625
    %1900 = vmatprep.subr.mxu0 0.0
    %1901 = vmatpush2.msra.mxu0 %v1624
    %1902 = vmatprep.subr.mxu0 0.0
    %1903 = vmatpush2.msra.mxu0 %v1623
    %1904 = vmatprep.subr.mxu0 0.0
    %1905 = vmatpush2.msra.mxu0 %v1622
    %1906 = vmatprep.subr.mxu0 0.0
    %1907 = vmatpush2.msra.mxu0 %v1621
    %1908 = vmatprep.subr.mxu0 0.0
    %1909 = vmatpush2.msra.mxu0 %v1620
    %1910 = vmatprep.subr.mxu0 0.0
    %1911 = vmatpush2.msra.mxu0 %v1619
    %1912 = vmatprep.subr.mxu0 0.0
    %1913 = vmatpush2.msra.mxu0 %v1618
    %1914 = vmatprep.subr.mxu0 0.0
    %1915 = vmatpush2.msra.mxu0 %v1617
    %1916 = vmatprep.subr.mxu0 0.0
    %1917 = vmatpush2.msra.mxu0 %v1616
    %1918 = vmatprep.subr.mxu0 0.0
    %1919 = vmatpush2.msra.mxu0 %v1615
    %1920 = vmatprep.subr.mxu0 0.0
    %1921 = vmatpush2.msra.mxu0 %v1614
    %1922 = vmatprep.subr.mxu0 0.0
    %1923 = vmatpush2.msra.mxu0 %v1613
    %1924 = vmatprep.mubr.f32.mxu0 %v1566
    %1925 = vmatmul.mubr.f32.gmra.mxu0 %v1565
    %v1926 = vpop.f32.mrf.mxu0
    %v1927 = vadd.f32 %v1858, %v1926
    %v1928 = vpop.f32.mrf.mxu0
    %1929 = vmatprep.mubr.f32.mxu0 %v1582
    %1930 = vmatmul.mubr.f32.gmra.mxu0 %v1581
    %v1931 = vpop.f32.mrf.mxu0
    %v1932 = vadd.f32 %v1858, %v1931
    %v1933 = vpop.f32.mrf.mxu0
    %1934 = vdwg.mxu0
    %1935 = vmatprep.subr.mxu0 0.0
    %1936 = vmatpush1.msra.mxu0 %v1644
    %1937 = vmatprep.subr.mxu0 0.0
    %1938 = vmatpush1.msra.mxu0 %v1643
    %1939 = vmatprep.subr.mxu0 0.0
    %1940 = vmatpush1.msra.mxu0 %v1642
    %1941 = vmatprep.subr.mxu0 0.0
    %1942 = vmatpush1.msra.mxu0 %v1641
    %1943 = vmatprep.subr.mxu0 0.0
    %1944 = vmatpush1.msra.mxu0 %v1640
    %1945 = vmatprep.subr.mxu0 0.0
    %1946 = vmatpush1.msra.mxu0 %v1639
    %1947 = vmatprep.subr.mxu0 0.0
    %1948 = vmatpush1.msra.mxu0 %v1638
    %1949 = vmatprep.subr.mxu0 0.0
    %1950 = vmatpush1.msra.mxu0 %v1637
    %1951 = vmatprep.subr.mxu0 0.0
    %1952 = vmatpush1.msra.mxu0 %v1636
    %1953 = vmatprep.subr.mxu0 0.0
    %1954 = vmatpush1.msra.mxu0 %v1635
    %1955 = vmatprep.subr.mxu0 0.0
    %1956 = vmatpush1.msra.mxu0 %v1634
    %1957 = vmatprep.subr.mxu0 0.0
    %1958 = vmatpush1.msra.mxu0 %v1633
    %1959 = vmatprep.subr.mxu0 0.0
    %1960 = vmatpush1.msra.mxu0 %v1632
    %1961 = vmatprep.subr.mxu0 0.0
    %1962 = vmatpush1.msra.mxu0 %v1631
    %1963 = vmatprep.subr.mxu0 0.0
    %1964 = vmatpush1.msra.mxu0 %v1630
    %1965 = vmatprep.subr.mxu0 0.0
    %1966 = vmatpush1.msra.mxu0 %v1629
    %1967 = vmatprep.subr.mxu0 0.0
    %1968 = vmatpush2.msra.mxu0 %v1660
    %1969 = vmatprep.subr.mxu0 0.0
    %1970 = vmatpush2.msra.mxu0 %v1659
    %1971 = vmatprep.subr.mxu0 0.0
    %1972 = vmatpush2.msra.mxu0 %v1658
    %1973 = vmatprep.subr.mxu0 0.0
    %1974 = vmatpush2.msra.mxu0 %v1657
    %1975 = vmatprep.subr.mxu0 0.0
    %1976 = vmatpush2.msra.mxu0 %v1656
    %1977 = vmatprep.subr.mxu0 0.0
    %1978 = vmatpush2.msra.mxu0 %v1655
    %1979 = vmatprep.subr.mxu0 0.0
    %1980 = vmatpush2.msra.mxu0 %v1654
    %1981 = vmatprep.subr.mxu0 0.0
    %1982 = vmatpush2.msra.mxu0 %v1653
    %1983 = vmatprep.subr.mxu0 0.0
    %1984 = vmatpush2.msra.mxu0 %v1652
    %1985 = vmatprep.subr.mxu0 0.0
    %1986 = vmatpush2.msra.mxu0 %v1651
    %1987 = vmatprep.subr.mxu0 0.0
    %1988 = vmatpush2.msra.mxu0 %v1650
    %1989 = vmatprep.subr.mxu0 0.0
    %1990 = vmatpush2.msra.mxu0 %v1649
    %1991 = vmatprep.subr.mxu0 0.0
    %1992 = vmatpush2.msra.mxu0 %v1648
    %1993 = vmatprep.subr.mxu0 0.0
    %1994 = vmatpush2.msra.mxu0 %v1647
    %1995 = vmatprep.subr.mxu0 0.0
    %1996 = vmatpush2.msra.mxu0 %v1646
    %1997 = vmatprep.subr.mxu0 0.0
    %1998 = vmatpush2.msra.mxu0 %v1645
    %1999 = vmatprep.mubr.f32.mxu0 %v1568
    %2000 = vmatmul.mubr.f32.gmra.mxu0 %v1567
    %v2001 = vpop.f32.mrf.mxu0
    %v2002 = vadd.f32 %v1927, %v2001
    %v2003 = vpop.f32.mrf.mxu0
    %2004 = vmatprep.mubr.f32.mxu0 %v1584
    %2005 = vmatmul.mubr.f32.gmra.mxu0 %v1583
    %v2006 = vpop.f32.mrf.mxu0
    %v2007 = vadd.f32 %v1932, %v2006
    %v2008 = vpop.f32.mrf.mxu0
    %2009 = vdwg.mxu0
    %2010 = vmatprep.subr.mxu0 0.0
    %2011 = vmatpush1.msra.mxu0 %v1676
    %2012 = vmatprep.subr.mxu0 0.0
    %2013 = vmatpush1.msra.mxu0 %v1675
    %2014 = vmatprep.subr.mxu0 0.0
    %2015 = vmatpush1.msra.mxu0 %v1674
    %2016 = vmatprep.subr.mxu0 0.0
    %2017 = vmatpush1.msra.mxu0 %v1673
    %2018 = vmatprep.subr.mxu0 0.0
    %2019 = vmatpush1.msra.mxu0 %v1672
    %2020 = vmatprep.subr.mxu0 0.0
    %2021 = vmatpush1.msra.mxu0 %v1671
    %2022 = vmatprep.subr.mxu0 0.0
    %2023 = vmatpush1.msra.mxu0 %v1670
    %2024 = vmatprep.subr.mxu0 0.0
    %2025 = vmatpush1.msra.mxu0 %v1669
    %2026 = vmatprep.subr.mxu0 0.0
    %2027 = vmatpush1.msra.mxu0 %v1668
    %2028 = vmatprep.subr.mxu0 0.0
    %2029 = vmatpush1.msra.mxu0 %v1667
    %2030 = vmatprep.subr.mxu0 0.0
    %2031 = vmatpush1.msra.mxu0 %v1666
    %2032 = vmatprep.subr.mxu0 0.0
    %2033 = vmatpush1.msra.mxu0 %v1665
    %2034 = vmatprep.subr.mxu0 0.0
    %2035 = vmatpush1.msra.mxu0 %v1664
    %2036 = vmatprep.subr.mxu0 0.0
    %2037 = vmatpush1.msra.mxu0 %v1663
    %2038 = vmatprep.subr.mxu0 0.0
    %2039 = vmatpush1.msra.mxu0 %v1662
    %2040 = vmatprep.subr.mxu0 0.0
    %2041 = vmatpush1.msra.mxu0 %v1661
    %2042 = vmatprep.subr.mxu0 0.0
    %2043 = vmatpush2.msra.mxu0 %v1692
    %2044 = vmatprep.subr.mxu0 0.0
    %2045 = vmatpush2.msra.mxu0 %v1691
    %2046 = vmatprep.subr.mxu0 0.0
    %2047 = vmatpush2.msra.mxu0 %v1690
    %2048 = vmatprep.subr.mxu0 0.0
    %2049 = vmatpush2.msra.mxu0 %v1689
    %2050 = vmatprep.subr.mxu0 0.0
    %2051 = vmatpush2.msra.mxu0 %v1688
    %2052 = vmatprep.subr.mxu0 0.0
    %2053 = vmatpush2.msra.mxu0 %v1687
    %2054 = vmatprep.subr.mxu0 0.0
    %2055 = vmatpush2.msra.mxu0 %v1686
    %2056 = vmatprep.subr.mxu0 0.0
    %2057 = vmatpush2.msra.mxu0 %v1685
    %2058 = vmatprep.subr.mxu0 0.0
    %2059 = vmatpush2.msra.mxu0 %v1684
    %2060 = vmatprep.subr.mxu0 0.0
    %2061 = vmatpush2.msra.mxu0 %v1683
    %2062 = vmatprep.subr.mxu0 0.0
    %2063 = vmatpush2.msra.mxu0 %v1682
    %2064 = vmatprep.subr.mxu0 0.0
    %2065 = vmatpush2.msra.mxu0 %v1681
    %2066 = vmatprep.subr.mxu0 0.0
    %2067 = vmatpush2.msra.mxu0 %v1680
    %2068 = vmatprep.subr.mxu0 0.0
    %2069 = vmatpush2.msra.mxu0 %v1679
    %2070 = vmatprep.subr.mxu0 0.0
    %2071 = vmatpush2.msra.mxu0 %v1678
    %2072 = vmatprep.subr.mxu0 0.0
    %2073 = vmatpush2.msra.mxu0 %v1677
    %2074 = vmatprep.mubr.f32.mxu0 %v1570
    %2075 = vmatmul.mubr.f32.gmra.mxu0 %v1569
    %v2076 = vpop.f32.mrf.mxu0
    %v2077 = vadd.f32 %v2002, %v2076
    %v2078 = vpop.f32.mrf.mxu0
    %2079 = vmatprep.mubr.f32.mxu0 %v1586
    %2080 = vmatmul.mubr.f32.gmra.mxu0 %v1585
    %v2081 = vpop.f32.mrf.mxu0
    %v2082 = vadd.f32 %v2007, %v2081
    %v2083 = vpop.f32.mrf.mxu0
    %2084 = vdwg.mxu0
    %2085 = vmatprep.subr.mxu0 0.0
    %2086 = vmatpush1.msra.mxu0 %v1708
    %2087 = vmatprep.subr.mxu0 0.0
    %2088 = vmatpush1.msra.mxu0 %v1707
    %2089 = vmatprep.subr.mxu0 0.0
    %2090 = vmatpush1.msra.mxu0 %v1706
    %2091 = vmatprep.subr.mxu0 0.0
    %2092 = vmatpush1.msra.mxu0 %v1705
    %2093 = vmatprep.subr.mxu0 0.0
    %2094 = vmatpush1.msra.mxu0 %v1704
    %2095 = vmatprep.subr.mxu0 0.0
    %2096 = vmatpush1.msra.mxu0 %v1703
    %2097 = vmatprep.subr.mxu0 0.0
    %2098 = vmatpush1.msra.mxu0 %v1702
    %2099 = vmatprep.subr.mxu0 0.0
    %2100 = vmatpush1.msra.mxu0 %v1701
    %2101 = vmatprep.subr.mxu0 0.0
    %2102 = vmatpush1.msra.mxu0 %v1700
    %2103 = vmatprep.subr.mxu0 0.0
    %2104 = vmatpush1.msra.mxu0 %v1699
    %2105 = vmatprep.subr.mxu0 0.0
    %2106 = vmatpush1.msra.mxu0 %v1698
    %2107 = vmatprep.subr.mxu0 0.0
    %2108 = vmatpush1.msra.mxu0 %v1697
    %2109 = vmatprep.subr.mxu0 0.0
    %2110 = vmatpush1.msra.mxu0 %v1696
    %2111 = vmatprep.subr.mxu0 0.0
    %2112 = vmatpush1.msra.mxu0 %v1695
    %2113 = vmatprep.subr.mxu0 0.0
    %2114 = vmatpush1.msra.mxu0 %v1694
    %2115 = vmatprep.subr.mxu0 0.0
    %2116 = vmatpush1.msra.mxu0 %v1693
    %2117 = vmatprep.subr.mxu0 0.0
    %2118 = vmatpush2.msra.mxu0 %v1724
    %2119 = vmatprep.subr.mxu0 0.0
    %2120 = vmatpush2.msra.mxu0 %v1723
    %2121 = vmatprep.subr.mxu0 0.0
    %2122 = vmatpush2.msra.mxu0 %v1722
    %2123 = vmatprep.subr.mxu0 0.0
    %2124 = vmatpush2.msra.mxu0 %v1721
    %2125 = vmatprep.subr.mxu0 0.0
    %2126 = vmatpush2.msra.mxu0 %v1720
    %2127 = vmatprep.subr.mxu0 0.0
    %2128 = vmatpush2.msra.mxu0 %v1719
    %2129 = vmatprep.subr.mxu0 0.0
    %2130 = vmatpush2.msra.mxu0 %v1718
    %2131 = vmatprep.subr.mxu0 0.0
    %2132 = vmatpush2.msra.mxu0 %v1717
    %2133 = vmatprep.subr.mxu0 0.0
    %2134 = vmatpush2.msra.mxu0 %v1716
    %2135 = vmatprep.subr.mxu0 0.0
    %2136 = vmatpush2.msra.mxu0 %v1715
    %2137 = vmatprep.subr.mxu0 0.0
    %2138 = vmatpush2.msra.mxu0 %v1714
    %2139 = vmatprep.subr.mxu0 0.0
    %2140 = vmatpush2.msra.mxu0 %v1713
    %2141 = vmatprep.subr.mxu0 0.0
    %2142 = vmatpush2.msra.mxu0 %v1712
    %2143 = vmatprep.subr.mxu0 0.0
    %2144 = vmatpush2.msra.mxu0 %v1711
    %2145 = vmatprep.subr.mxu0 0.0
    %2146 = vmatpush2.msra.mxu0 %v1710
    %2147 = vmatprep.subr.mxu0 0.0
    %2148 = vmatpush2.msra.mxu0 %v1709
    %2149 = vmatprep.mubr.f32.mxu0 %v1572
    %2150 = vmatmul.mubr.f32.gmra.mxu0 %v1571
    %v2151 = vpop.f32.mrf.mxu0
    %v2152 = vadd.f32 %v2077, %v2151
    %v2153 = vpop.f32.mrf.mxu0
    %2154 = vmatprep.mubr.f32.mxu0 %v1588
    %2155 = vmatmul.mubr.f32.gmra.mxu0 %v1587
    %v2156 = vpop.f32.mrf.mxu0
    %v2157 = vadd.f32 %v2082, %v2156
    %v2158 = vpop.f32.mrf.mxu0
    %2159 = vdwg.mxu0
    %2160 = vmatprep.subr.mxu0 0.0
    %2161 = vmatpush1.msra.mxu0 %v1740
    %2162 = vmatprep.subr.mxu0 0.0
    %2163 = vmatpush1.msra.mxu0 %v1739
    %2164 = vmatprep.subr.mxu0 0.0
    %2165 = vmatpush1.msra.mxu0 %v1738
    %2166 = vmatprep.subr.mxu0 0.0
    %2167 = vmatpush1.msra.mxu0 %v1737
    %2168 = vmatprep.subr.mxu0 0.0
    %2169 = vmatpush1.msra.mxu0 %v1736
    %2170 = vmatprep.subr.mxu0 0.0
    %2171 = vmatpush1.msra.mxu0 %v1735
    %2172 = vmatprep.subr.mxu0 0.0
    %2173 = vmatpush1.msra.mxu0 %v1734
    %2174 = vmatprep.subr.mxu0 0.0
    %2175 = vmatpush1.msra.mxu0 %v1733
    %2176 = vmatprep.subr.mxu0 0.0
    %2177 = vmatpush1.msra.mxu0 %v1732
    %2178 = vmatprep.subr.mxu0 0.0
    %2179 = vmatpush1.msra.mxu0 %v1731
    %2180 = vmatprep.subr.mxu0 0.0
    %2181 = vmatpush1.msra.mxu0 %v1730
    %2182 = vmatprep.subr.mxu0 0.0
    %2183 = vmatpush1.msra.mxu0 %v1729
    %2184 = vmatprep.subr.mxu0 0.0
    %2185 = vmatpush1.msra.mxu0 %v1728
    %2186 = vmatprep.subr.mxu0 0.0
    %2187 = vmatpush1.msra.mxu0 %v1727
    %2188 = vmatprep.subr.mxu0 0.0
    %2189 = vmatpush1.msra.mxu0 %v1726
    %2190 = vmatprep.subr.mxu0 0.0
    %2191 = vmatpush1.msra.mxu0 %v1725
    %2192 = vmatprep.subr.mxu0 0.0
    %2193 = vmatpush2.msra.mxu0 %v1756
    %2194 = vmatprep.subr.mxu0 0.0
    %2195 = vmatpush2.msra.mxu0 %v1755
    %2196 = vmatprep.subr.mxu0 0.0
    %2197 = vmatpush2.msra.mxu0 %v1754
    %2198 = vmatprep.subr.mxu0 0.0
    %2199 = vmatpush2.msra.mxu0 %v1753
    %2200 = vmatprep.subr.mxu0 0.0
    %2201 = vmatpush2.msra.mxu0 %v1752
    %2202 = vmatprep.subr.mxu0 0.0
    %2203 = vmatpush2.msra.mxu0 %v1751
    %2204 = vmatprep.subr.mxu0 0.0
    %2205 = vmatpush2.msra.mxu0 %v1750
    %2206 = vmatprep.subr.mxu0 0.0
    %2207 = vmatpush2.msra.mxu0 %v1749
    %2208 = vmatprep.subr.mxu0 0.0
    %2209 = vmatpush2.msra.mxu0 %v1748
    %2210 = vmatprep.subr.mxu0 0.0
    %2211 = vmatpush2.msra.mxu0 %v1747
    %2212 = vmatprep.subr.mxu0 0.0
    %2213 = vmatpush2.msra.mxu0 %v1746
    %2214 = vmatprep.subr.mxu0 0.0
    %2215 = vmatpush2.msra.mxu0 %v1745
    %2216 = vmatprep.subr.mxu0 0.0
    %2217 = vmatpush2.msra.mxu0 %v1744
    %2218 = vmatprep.subr.mxu0 0.0
    %2219 = vmatpush2.msra.mxu0 %v1743
    %2220 = vmatprep.subr.mxu0 0.0
    %2221 = vmatpush2.msra.mxu0 %v1742
    %2222 = vmatprep.subr.mxu0 0.0
    %2223 = vmatpush2.msra.mxu0 %v1741
    %2224 = vmatprep.mubr.f32.mxu0 %v1574
    %2225 = vmatmul.mubr.f32.gmra.mxu0 %v1573
    %v2226 = vpop.f32.mrf.mxu0
    %v2227 = vadd.f32 %v2152, %v2226
    %v2228 = vpop.f32.mrf.mxu0
    %2229 = vmatprep.mubr.f32.mxu0 %v1590
    %2230 = vmatmul.mubr.f32.gmra.mxu0 %v1589
    %v2231 = vpop.f32.mrf.mxu0
    %v2232 = vadd.f32 %v2157, %v2231
    %v2233 = vpop.f32.mrf.mxu0
    %2234 = vdwg.mxu0
    %2235 = vmatprep.subr.mxu0 0.0
    %2236 = vmatpush1.msra.mxu0 %v1772
    %2237 = vmatprep.subr.mxu0 0.0
    %2238 = vmatpush1.msra.mxu0 %v1771
    %2239 = vmatprep.subr.mxu0 0.0
    %2240 = vmatpush1.msra.mxu0 %v1770
    %2241 = vmatprep.subr.mxu0 0.0
    %2242 = vmatpush1.msra.mxu0 %v1769
    %2243 = vmatprep.subr.mxu0 0.0
    %2244 = vmatpush1.msra.mxu0 %v1768
    %2245 = vmatprep.subr.mxu0 0.0
    %2246 = vmatpush1.msra.mxu0 %v1767
    %2247 = vmatprep.subr.mxu0 0.0
    %2248 = vmatpush1.msra.mxu0 %v1766
    %2249 = vmatprep.subr.mxu0 0.0
    %2250 = vmatpush1.msra.mxu0 %v1765
    %2251 = vmatprep.subr.mxu0 0.0
    %2252 = vmatpush1.msra.mxu0 %v1764
    %2253 = vmatprep.subr.mxu0 0.0
    %2254 = vmatpush1.msra.mxu0 %v1763
    %2255 = vmatprep.subr.mxu0 0.0
    %2256 = vmatpush1.msra.mxu0 %v1762
    %2257 = vmatprep.subr.mxu0 0.0
    %2258 = vmatpush1.msra.mxu0 %v1761
    %2259 = vmatprep.subr.mxu0 0.0
    %2260 = vmatpush1.msra.mxu0 %v1760
    %2261 = vmatprep.subr.mxu0 0.0
    %2262 = vmatpush1.msra.mxu0 %v1759
    %2263 = vmatprep.subr.mxu0 0.0
    %2264 = vmatpush1.msra.mxu0 %v1758
    %2265 = vmatprep.subr.mxu0 0.0
    %2266 = vmatpush1.msra.mxu0 %v1757
    %2267 = vmatprep.subr.mxu0 0.0
    %2268 = vmatpush2.msra.mxu0 %v1788
    %2269 = vmatprep.subr.mxu0 0.0
    %2270 = vmatpush2.msra.mxu0 %v1787
    %2271 = vmatprep.subr.mxu0 0.0
    %2272 = vmatpush2.msra.mxu0 %v1786
    %2273 = vmatprep.subr.mxu0 0.0
    %2274 = vmatpush2.msra.mxu0 %v1785
    %2275 = vmatprep.subr.mxu0 0.0
    %2276 = vmatpush2.msra.mxu0 %v1784
    %2277 = vmatprep.subr.mxu0 0.0
    %2278 = vmatpush2.msra.mxu0 %v1783
    %2279 = vmatprep.subr.mxu0 0.0
    %2280 = vmatpush2.msra.mxu0 %v1782
    %2281 = vmatprep.subr.mxu0 0.0
    %2282 = vmatpush2.msra.mxu0 %v1781
    %2283 = vmatprep.subr.mxu0 0.0
    %2284 = vmatpush2.msra.mxu0 %v1780
    %2285 = vmatprep.subr.mxu0 0.0
    %2286 = vmatpush2.msra.mxu0 %v1779
    %2287 = vmatprep.subr.mxu0 0.0
    %2288 = vmatpush2.msra.mxu0 %v1778
    %2289 = vmatprep.subr.mxu0 0.0
    %2290 = vmatpush2.msra.mxu0 %v1777
    %2291 = vmatprep.subr.mxu0 0.0
    %2292 = vmatpush2.msra.mxu0 %v1776
    %2293 = vmatprep.subr.mxu0 0.0
    %2294 = vmatpush2.msra.mxu0 %v1775
    %2295 = vmatprep.subr.mxu0 0.0
    %2296 = vmatpush2.msra.mxu0 %v1774
    %2297 = vmatprep.subr.mxu0 0.0
    %2298 = vmatpush2.msra.mxu0 %v1773
    %2299 = vmatprep.mubr.f32.mxu0 %v1576
    %2300 = vmatmul.mubr.f32.gmra.mxu0 %v1575
    %v2301 = vpop.f32.mrf.mxu0
    %v2302 = vadd.f32 %v2227, %v2301
    %v2303 = vpop.f32.mrf.mxu0
    %2304 = vmatprep.mubr.f32.mxu0 %v1592
    %2305 = vmatmul.mubr.f32.gmra.mxu0 %v1591
    %v2306 = vpop.f32.mrf.mxu0
    %v2307 = vadd.f32 %v2232, %v2306
    %v2308 = vpop.f32.mrf.mxu0
    %2309 = vdwg.mxu0
    %2310 = vmatprep.subr.mxu0 0.0
    %2311 = vmatpush1.msra.mxu0 %v1804
    %2312 = vmatprep.subr.mxu0 0.0
    %2313 = vmatpush1.msra.mxu0 %v1803
    %2314 = vmatprep.subr.mxu0 0.0
    %2315 = vmatpush1.msra.mxu0 %v1802
    %2316 = vmatprep.subr.mxu0 0.0
    %2317 = vmatpush1.msra.mxu0 %v1801
    %2318 = vmatprep.subr.mxu0 0.0
    %2319 = vmatpush1.msra.mxu0 %v1800
    %2320 = vmatprep.subr.mxu0 0.0
    %2321 = vmatpush1.msra.mxu0 %v1799
    %2322 = vmatprep.subr.mxu0 0.0
    %2323 = vmatpush1.msra.mxu0 %v1798
    %2324 = vmatprep.subr.mxu0 0.0
    %2325 = vmatpush1.msra.mxu0 %v1797
    %2326 = vmatprep.subr.mxu0 0.0
    %2327 = vmatpush1.msra.mxu0 %v1796
    %2328 = vmatprep.subr.mxu0 0.0
    %2329 = vmatpush1.msra.mxu0 %v1795
    %2330 = vmatprep.subr.mxu0 0.0
    %2331 = vmatpush1.msra.mxu0 %v1794
    %2332 = vmatprep.subr.mxu0 0.0
    %2333 = vmatpush1.msra.mxu0 %v1793
    %2334 = vmatprep.subr.mxu0 0.0
    %2335 = vmatpush1.msra.mxu0 %v1792
    %2336 = vmatprep.subr.mxu0 0.0
    %2337 = vmatpush1.msra.mxu0 %v1791
    %2338 = vmatprep.subr.mxu0 0.0
    %2339 = vmatpush1.msra.mxu0 %v1790
    %2340 = vmatprep.subr.mxu0 0.0
    %2341 = vmatpush1.msra.mxu0 %v1789
    %2342 = vmatprep.subr.mxu0 0.0
    %2343 = vmatpush2.msra.mxu0 %v1820
    %2344 = vmatprep.subr.mxu0 0.0
    %2345 = vmatpush2.msra.mxu0 %v1819
    %2346 = vmatprep.subr.mxu0 0.0
    %2347 = vmatpush2.msra.mxu0 %v1818
    %2348 = vmatprep.subr.mxu0 0.0
    %2349 = vmatpush2.msra.mxu0 %v1817
    %2350 = vmatprep.subr.mxu0 0.0
    %2351 = vmatpush2.msra.mxu0 %v1816
    %2352 = vmatprep.subr.mxu0 0.0
    %2353 = vmatpush2.msra.mxu0 %v1815
    %2354 = vmatprep.subr.mxu0 0.0
    %2355 = vmatpush2.msra.mxu0 %v1814
    %2356 = vmatprep.subr.mxu0 0.0
    %2357 = vmatpush2.msra.mxu0 %v1813
    %2358 = vmatprep.subr.mxu0 0.0
    %2359 = vmatpush2.msra.mxu0 %v1812
    %2360 = vmatprep.subr.mxu0 0.0
    %2361 = vmatpush2.msra.mxu0 %v1811
    %2362 = vmatprep.subr.mxu0 0.0
    %2363 = vmatpush2.msra.mxu0 %v1810
    %2364 = vmatprep.subr.mxu0 0.0
    %2365 = vmatpush2.msra.mxu0 %v1809
    %2366 = vmatprep.subr.mxu0 0.0
    %2367 = vmatpush2.msra.mxu0 %v1808
    %2368 = vmatprep.subr.mxu0 0.0
    %2369 = vmatpush2.msra.mxu0 %v1807
    %2370 = vmatprep.subr.mxu0 0.0
    %2371 = vmatpush2.msra.mxu0 %v1806
    %2372 = vmatprep.subr.mxu0 0.0
    %2373 = vmatpush2.msra.mxu0 %v1805
    %2374 = vmatprep.mubr.f32.mxu0 %v1578
    %2375 = vmatmul.mubr.f32.gmra.mxu0 %v1577
    %v2376 = vpop.f32.mrf.mxu0
    %v2377 = vadd.f32 %v2302, %v2376
    %v2378 = vpop.f32.mrf.mxu0
    %2379 = vmatprep.mubr.f32.mxu0 %v1594
    %2380 = vmatmul.mubr.f32.gmra.mxu0 %v1593
    %v2381 = vpop.f32.mrf.mxu0
    %v2382 = vadd.f32 %v2307, %v2381
    %v2383 = vpop.f32.mrf.mxu0
    %2384 = vdwg.mxu0
    %2385 = vmatprep.subr.mxu0 0.0
    %2386 = vmatpush1.msra.mxu0 %v1836
    %2387 = vmatprep.subr.mxu0 0.0
    %2388 = vmatpush1.msra.mxu0 %v1835
    %2389 = vmatprep.subr.mxu0 0.0
    %2390 = vmatpush1.msra.mxu0 %v1834
    %2391 = vmatprep.subr.mxu0 0.0
    %2392 = vmatpush1.msra.mxu0 %v1833
    %2393 = vmatprep.subr.mxu0 0.0
    %2394 = vmatpush1.msra.mxu0 %v1832
    %2395 = vmatprep.subr.mxu0 0.0
    %2396 = vmatpush1.msra.mxu0 %v1831
    %2397 = vmatprep.subr.mxu0 0.0
    %2398 = vmatpush1.msra.mxu0 %v1830
    %2399 = vmatprep.subr.mxu0 0.0
    %2400 = vmatpush1.msra.mxu0 %v1829
    %2401 = vmatprep.subr.mxu0 0.0
    %2402 = vmatpush1.msra.mxu0 %v1828
    %2403 = vmatprep.subr.mxu0 0.0
    %2404 = vmatpush1.msra.mxu0 %v1827
    %2405 = vmatprep.subr.mxu0 0.0
    %2406 = vmatpush1.msra.mxu0 %v1826
    %2407 = vmatprep.subr.mxu0 0.0
    %2408 = vmatpush1.msra.mxu0 %v1825
    %2409 = vmatprep.subr.mxu0 0.0
    %2410 = vmatpush1.msra.mxu0 %v1824
    %2411 = vmatprep.subr.mxu0 0.0
    %2412 = vmatpush1.msra.mxu0 %v1823
    %2413 = vmatprep.subr.mxu0 0.0
    %2414 = vmatpush1.msra.mxu0 %v1822
    %2415 = vmatprep.subr.mxu0 0.0
    %2416 = vmatpush1.msra.mxu0 %v1821
    %2417 = vmatprep.subr.mxu0 0.0
    %2418 = vmatpush2.msra.mxu0 %v1852
    %2419 = vmatprep.subr.mxu0 0.0
    %2420 = vmatpush2.msra.mxu0 %v1851
    %2421 = vmatprep.subr.mxu0 0.0
    %2422 = vmatpush2.msra.mxu0 %v1850
    %2423 = vmatprep.subr.mxu0 0.0
    %2424 = vmatpush2.msra.mxu0 %v1849
    %2425 = vmatprep.subr.mxu0 0.0
    %2426 = vmatpush2.msra.mxu0 %v1848
    %2427 = vmatprep.subr.mxu0 0.0
    %2428 = vmatpush2.msra.mxu0 %v1847
    %2429 = vmatprep.subr.mxu0 0.0
    %2430 = vmatpush2.msra.mxu0 %v1846
    %2431 = vmatprep.subr.mxu0 0.0
    %2432 = vmatpush2.msra.mxu0 %v1845
    %2433 = vmatprep.subr.mxu0 0.0
    %2434 = vmatpush2.msra.mxu0 %v1844
    %2435 = vmatprep.subr.mxu0 0.0
    %2436 = vmatpush2.msra.mxu0 %v1843
    %2437 = vmatprep.subr.mxu0 0.0
    %2438 = vmatpush2.msra.mxu0 %v1842
    %2439 = vmatprep.subr.mxu0 0.0
    %2440 = vmatpush2.msra.mxu0 %v1841
    %2441 = vmatprep.subr.mxu0 0.0
    %2442 = vmatpush2.msra.mxu0 %v1840
    %2443 = vmatprep.subr.mxu0 0.0
    %2444 = vmatpush2.msra.mxu0 %v1839
    %2445 = vmatprep.subr.mxu0 0.0
    %2446 = vmatpush2.msra.mxu0 %v1838
    %2447 = vmatprep.subr.mxu0 0.0
    %2448 = vmatpush2.msra.mxu0 %v1837
    %2449 = vmatprep.mubr.f32.mxu0 %v1580
    %2450 = vmatmul.mubr.f32.gmra.mxu0 %v1579
    %v2451 = vpop.f32.mrf.mxu0
    %v2452 = vadd.f32 %v2377, %v2451
    %v2453 = vpop.f32.mrf.mxu0
    %2454 = vmatprep.mubr.f32.mxu0 %v1596
    %2455 = vmatmul.mubr.f32.gmra.mxu0 %v1595
    %v2456 = vpop.f32.mrf.mxu0
    %v2457 = vadd.f32 %v2382, %v2456
    %v2458 = vpop.f32.mrf.mxu0
    %2459 = vdwg.mxu0
    %v2460 = vadd.f32 %v793, %v2452
    %v2461 = vadd.f32 %v794, %v2457
    %v2462 = vld [vmem:[%s15] sm:$0x1]
    %v2463 = vld [vmem:[%s16] sm:$0x1]
    %v2464 = vsel %vm79, %v2460, 0.0
    %2465 = vadd.xlane.f32.xlu0 %v2464
    %v2466 = vpop.xlane.xlu0 %2465
    %v2467 = vsel %vm79, %v2461, 0.0
    %2468 = vadd.xlane.f32.xlu0 %v2467
    %v2469 = vpop.xlane.xlu0 %2468
    %v2470 = vmul.f32 %v2466, %v758
    %v2471 = vmul.f32 %v2469, %v758
    %v2472 = vsub.f32 %v2460, %v2470
    %v2473 = vsub.f32 %v2461, %v2471
    %v2474 = vmul.f32 %v2472, %v2472
    %v2475 = vmul.f32 %v2473, %v2473
    %v2476 = vsel %vm79, %v2474, 0.0
    %2477 = vadd.xlane.f32.xlu0 %v2476
    %v2478 = vpop.xlane.xlu0 %2477
    %v2479 = vsel %vm79, %v2475, 0.0
    %2480 = vadd.xlane.f32.xlu0 %v2479
    %v2481 = vpop.xlane.xlu0 %2480
    %v2482 = vmul.f32 %v2478, %v758
    %v2483 = vmul.f32 %v2481, %v758
    %v2484 = vadd.f32 %v2482, 1e-05
    %v2485 = vadd.f32 %v2483, 1e-05
    %v2486 = vrsqrt.pop %v2484
    %v2487 = vrsqrt.pop %v2485
    %v2488 = vmul.f32 %v2472, %v2486
    %v2489 = vmul.f32 %v2473, %v2487
    %v2491 = vlaneseq
    %v2492 = vshrl.u32 %v2491, 7
    %v2493 = vsub.s32 0, %v2492
    %v2494 = vrot.slane %v2462, %v2493
    %v2496 = vmul.f32 %v2488, %v2494
    %v2497 = vmul.f32 %v2489, %v2494
    %v2499 = vlaneseq
    %v2500 = vshrl.u32 %v2499, 7
    %v2501 = vsub.s32 0, %v2500
    %v2502 = vrot.slane %v2463, %v2501
    %v2504 = vadd.f32 %v2496, %v2502
    %v2505 = vadd.f32 %v2497, %v2502
    %v2506 = vsel %vm79, %v2504, 0.0
    %v2507 = vrot.slane %v2506, 4
    %v2508 = vadd.f32 %v2506, %v2507
    %v2509 = vrot.slane %v2508, 2
    %v2510 = vadd.f32 %v2508, %v2509
    %v2511 = vrot.slane %v2510, 1
    %v2512 = vadd.f32 %v2510, %v2511
    %v2513 = vsel %vm79, %v2505, 0.0
    %v2514 = vrot.slane %v2513, 4
    %v2515 = vadd.f32 %v2513, %v2514
    %v2516 = vrot.slane %v2515, 2
    %v2517 = vadd.f32 %v2515, %v2516
    %v2518 = vrot.slane %v2517, 1
    %v2519 = vadd.f32 %v2517, %v2518
    %v2520 = vrcp.pop 8.0
    %v2521 = vmul.f32 %v2512, %v2520
    %v2522 = vmul.f32 %v2519, %v2520
    %v2523 = vld [vmem:[%s17] sm:$0xff]
    %v2524 = vld [vmem:[%s17 + $0x8] sm:$0xff]
    %v2525 = vld [vmem:[%s17 + $0x10] sm:$0xff]
    %v2526 = vld [vmem:[%s17 + $0x18] sm:$0xff]
    %v2527 = vld [vmem:[%s18] sm:$0x1]
    %v2529 = vlaneseq
    %v2530 = vshrl.u32 %v2529, 7
    %v2531 = vsub.s32 0, %v2530
    %v2532 = vrot.slane %v2527, %v2531
    %vm2536 = vcmask 1041409
    %v2537 = vsel %vm2536, %v2522, %v2521
    %v2538 = vsel %vm79, %v2537, 0
    %2540 = vmatprep.subr.mxu0 0.0
    %2541 = vmatpush1.msra.mxu0 0.0
    %2542 = vmatprep.subr.mxu0 0.0
    %2543 = vmatpush1.msra.mxu0 0.0
    %2544 = vmatprep.subr.mxu0 0.0
    %2545 = vmatpush1.msra.mxu0 0.0
    %2546 = vmatprep.subr.mxu0 0.0
    %2547 = vmatpush1.msra.mxu0 0.0
    %2548 = vmatprep.subr.mxu0 0.0
    %2549 = vmatpush1.msra.mxu0 0.0
    %2550 = vmatprep.subr.mxu0 0.0
    %2551 = vmatpush1.msra.mxu0 0.0
    %2552 = vmatprep.subr.mxu0 0.0
    %2553 = vmatpush1.msra.mxu0 0.0
    %2554 = vmatprep.subr.mxu0 0.0
    %2555 = vmatpush1.msra.mxu0 0.0
    %2556 = vmatprep.subr.mxu0 0.0
    %2557 = vmatpush1.msra.mxu0 0.0
    %2558 = vmatprep.subr.mxu0 0.0
    %2559 = vmatpush1.msra.mxu0 0.0
    %2560 = vmatprep.subr.mxu0 0.0
    %2561 = vmatpush1.msra.mxu0 0.0
    %2562 = vmatprep.subr.mxu0 0.0
    %2563 = vmatpush1.msra.mxu0 0.0
    %2564 = vmatprep.subr.mxu0 0.0
    %2565 = vmatpush1.msra.mxu0 %v2526
    %2566 = vmatprep.subr.mxu0 0.0
    %2567 = vmatpush1.msra.mxu0 %v2525
    %2568 = vmatprep.subr.mxu0 0.0
    %2569 = vmatpush1.msra.mxu0 %v2524
    %2570 = vmatprep.subr.mxu0 0.0
    %2571 = vmatpush1.msra.mxu0 %v2523
    %2572 = vmatprep.subr.mxu0 0.0
    %2573 = vmatpush2.msra.mxu0 0.0
    %2574 = vmatprep.subr.mxu0 0.0
    %2575 = vmatpush2.msra.mxu0 0.0
    %2576 = vmatprep.subr.mxu0 0.0
    %2577 = vmatpush2.msra.mxu0 0.0
    %2578 = vmatprep.subr.mxu0 0.0
    %2579 = vmatpush2.msra.mxu0 0.0
    %2580 = vmatprep.subr.mxu0 0.0
    %2581 = vmatpush2.msra.mxu0 0.0
    %2582 = vmatprep.subr.mxu0 0.0
    %2583 = vmatpush2.msra.mxu0 0.0
    %2584 = vmatprep.subr.mxu0 0.0
    %2585 = vmatpush2.msra.mxu0 0.0
    %2586 = vmatprep.subr.mxu0 0.0
    %2587 = vmatpush2.msra.mxu0 0.0
    %2588 = vmatprep.subr.mxu0 0.0
    %2589 = vmatpush2.msra.mxu0 0.0
    %2590 = vmatprep.subr.mxu0 0.0
    %2591 = vmatpush2.msra.mxu0 0.0
    %2592 = vmatprep.subr.mxu0 0.0
    %2593 = vmatpush2.msra.mxu0 0.0
    %2594 = vmatprep.subr.mxu0 0.0
    %2595 = vmatpush2.msra.mxu0 0.0
    %2596 = vmatprep.subr.mxu0 0.0
    %2597 = vmatpush2.msra.mxu0 0.0
    %2598 = vmatprep.subr.mxu0 0.0
    %2599 = vmatpush2.msra.mxu0 0.0
    %2600 = vmatprep.subr.mxu0 0.0
    %2601 = vmatpush2.msra.mxu0 0.0
    %2602 = vmatprep.subr.mxu0 0.0
    %2603 = vmatpush2.msra.mxu0 0.0
    %2604 = vmatprep.mubr.f32.mxu0 0.0
    %2605 = vmatmul.mubr.f32.gmra.mxu0 %v2538
    %v2606 = vpop.f32.mrf.mxu0
    %v2607 = vadd.f32 %v2532, %v2606
    %v2608 = vpop.f32.mrf.mxu0
    %2609 = vdwg.mxu0
    %v2610 = vmax.f32 %v2607, 0.0
    %v2611 = vld [vmem:[%s19] sm:$0x3]
    %v2612 = vmul.f32 %v2610, 0.5
    %v2613 = vmul.f32 %v2612, 1.442695
    %v2614 = vpow.pop %v2613
    %2616 = vrot.lane.b32.xlu0 %v2614, 112
    %v2617 = vpop.permute.xlu0 %2616
    %v2619 = vmul.f32 %v2611, %v2617
    %v2620 = vadd.f32 %v2610, %v2619
    %2622 = vrot.lane.b32.xlu0 %v2610, 16
    %v2623 = vpop.permute.xlu0 %2622
    %vm2625 = vcmask 130048
    %v2626 = vsel %vm2625, %v2620, %v2623
    %v2627 = vsel %vm79, %v2626, %v2623
    %vm2628 = vcmask 386048
    %2629 = vst.msk [vmem:[#allocation2] sm:$0x3] %vm2628, %v2627
    // Predicated region
    $region82: #{tpu_custom_call.1} parent=1 // pred_check
      _
    $region83: #{tpu_custom_call.1} parent=1 // pred_check_branch
      %2631 = sbr.rel (0) target = $region85
    $region84: #{tpu_custom_call.1} parent=1 // pred_region
      %s2633 = ssub.s32 32, 32
      %2634 = vsyncadd [#allocation3], %s2633
      %s2636 = sshll.u32 [#allocation2], 4
      %s2637 = int_to_ptr.vmem [resolvable:$true] %s2636
      %2639 = dma.vmem_to_hbm [thread:$0]  %s2637, 32, %s20, [#allocation3]
    $region85: #{tpu_custom_call.1} parent=1 // pred_fallthru
      _
    // Predicated region
    $region86: #{tpu_custom_call.1} parent=1 // pred_check
      _
    $region87: #{tpu_custom_call.1} parent=1 // pred_check_branch
      %2641 = sbr.rel (0) target = $region89
    $region88: #{tpu_custom_call.1} parent=1 // pred_region
      %2642 = dma.done [#allocation3], 32
    $region89: #{tpu_custom_call.1} parent=1 // pred_fallthru
      _
    %2643 = vsyncpa [#allocation3], 1

</llo_original>
